<compile_context>
chip_gen: v6e
topology: v6e:2x2x1
jax: 0.10.0
libtpu: 0.0.40
codegen_flags: <defaults>
</compile_context>

<pallas_src>
import functools

import numpy as np

import jax
import jax.numpy as jnp
from jax import lax
from jax.experimental import pallas as pl
from jax.experimental.pallas import tpu as pltpu


# ----------------------------------------------------------------------------
# Layer descriptions
# ----------------------------------------------------------------------------
# Every layer is described by the parameters of its *equivalent dense convolution*:
#   stride `s`, padding (ph, pw) and input dilation `d` (a transposed conv with stride
#   S == stride-1 conv over the S-dilated input with padding k-1-p and a spatially
#   flipped, channel-swapped kernel).
def build_ae_layers(in_channels, H, W, fmap_sizes, z_dim):
    layers = []
    c, h, w = in_channels, H, W

    # --- Encoder: Conv2d(k=3, s=2, p=1, bias=False) + LeakyReLU per fmap size ---
    for cout in fmap_sizes:
        ho, wo = (h + 2 - 3) // 2 + 1, (w + 2 - 3) // 2 + 1
        layers.append(dict(cin=c, cout=cout, hin=h, win=w, hout=ho, wout=wo,
                           kh=3, kw=3, s=2, ph=1, pw=1, d=1, leaky=True, tconv=False))
        c, h, w = cout, ho, wo

    # --- Encoder end (to_1x1=True): Conv2d(k=(h,w), s=1, p=0), no activation ---
    layers.append(dict(cin=c, cout=z_dim, hin=h, win=w, hout=1, wout=1,
                       kh=h, kw=w, s=1, ph=0, pw=0, d=1, leaky=False, tconv=False))
    h_lat, w_lat = h, w

    # --- Decoder start: ConvTranspose2d(z_dim -> fmaps[-1], k=(h_lat,w_lat), s=1, p=0)
    #     + LeakyReLU.  Equivalent conv: s=1, pad=k-1, d=1. ---
    rev = tuple(fmap_sizes[::-1])
    layers.append(dict(cin=z_dim, cout=rev[0], hin=1, win=1, hout=h_lat, wout=w_lat,
                       kh=h_lat, kw=w_lat, s=1, ph=h_lat - 1, pw=w_lat - 1, d=1,
                       leaky=True, tconv=True))
    c, h, w = rev[0], h_lat, w_lat

    # --- Decoder middle: ConvTranspose2d(k=4, s=2, p=1) + LeakyReLU ---
    for cout in rev[1:]:
        layers.append(dict(cin=c, cout=cout, hin=h, win=w, hout=2 * h, wout=2 * w,
                           kh=4, kw=4, s=1, ph=2, pw=2, d=2, leaky=True, tconv=True))
        c, h, w = cout, 2 * h, 2 * w

    # --- Decoder end: ConvTranspose2d(k=4, s=2, p=1) -> in_channels, no activation ---
    layers.append(dict(cin=c, cout=in_channels, hin=h, win=w, hout=2 * h, wout=2 * w,
                       kh=4, kw=4, s=1, ph=2, pw=2, d=2, leaky=False, tconv=True))
    return layers


def init_ae_weights(key, layers):
    """Torch-layout weights: Conv2d -> (Cout,Cin,kh,kw); ConvTranspose2d -> (Cin,Cout,kh,kw)."""
    ws = []
    keys = jax.random.split(key, len(layers))
    for k, L in zip(keys, layers):
        if L["tconv"]:
            shape = (L["cin"], L["cout"], L["kh"], L["kw"])
        else:
            shape = (L["cout"], L["cin"], L["kh"], L["kw"])
        fan_in = shape[1] * L["kh"] * L["kw"]
        ws.append(jax.random.normal(k, shape, jnp.float32) / np.sqrt(fan_in))
    return ws


# ----------------------------------------------------------------------------
# One-time operator packing (hoisted out of the hot path)
# ----------------------------------------------------------------------------
def pack_params(layers, weights):
    """Per layer, build
         Sw : (kw, Win, Wout)             0/1 width-selection operators (per-image,
                                          stride / pad / dilation folded in)
         U  : (Cout*Hout, kw*Cin*Hin)     weights combined with the height selection:
              U[co*Hout+oy, kx*Cin*Hin + ci*Hin + y] = W_eq[co, ci, d*y+ph-s*oy, kx]
                                                       (0 when ky is out of range)
       Both are cast to bf16 (Sw entries are 0/1 -> exact; U entries are bf16-rounded
       weights, the same rounding the reference applies)."""
    packed = []
    for L, w in zip(layers, weights):
        cin, cout = L["cin"], L["cout"]
        hin, win, hout, wout = L["hin"], L["win"], L["hout"], L["wout"]
        kh, kw, s, ph, pw, d = L["kh"], L["kw"], L["s"], L["ph"], L["pw"], L["d"]

        w_np = np.asarray(w, np.float32)
        if L["tconv"]:
            # transposed conv == conv with spatially flipped, channel-swapped kernel
            w_eq = np.transpose(w_np[:, :, ::-1, ::-1], (1, 0, 2, 3))   # (Cout,Cin,kh,kw)
        else:
            w_eq = w_np

        sw = np.zeros((kw, win, wout), np.float32)
        for kx in range(kw):
            for ox in range(wout):
                v = ox * s + kx - pw
                if v >= 0 and v % d == 0 and (v // d) < win:
                    sw[kx, v // d, ox] = 1.0

        u5 = np.zeros((cout, hout, kw, cin, hin), np.float32)
        for oy in range(hout):
            for y in range(hin):
                ky = d * y + ph - s * oy
                if 0 <= ky < kh:
                    # w_eq[:, :, ky, :] is (Cout, Cin, kw) -> want (Cout, kw, Cin)
                    u5[:, oy, :, :, y] = np.transpose(w_eq[:, :, ky, :], (0, 2, 1))
        u = u5.reshape(cout * hout, kw * cin * hin)

        packed.append((jnp.asarray(sw, jnp.bfloat16), jnp.asarray(u, jnp.bfloat16)))
    return tuple(packed)


# ----------------------------------------------------------------------------
# The fused Pallas kernel: one image per grid step, all 8 layers, VMEM resident
# ----------------------------------------------------------------------------
def _ae_fused_kernel(*refs, layer_meta):
    """refs = (x_ref, Sw_0, U_0, ..., Sw_{L-1}, U_{L-1}, out_ref).

    Activation layout per layer: (C*H, W)  -- channel-major rows, width on lanes.
    Per layer:
        A_kx = h @ Sw_kx                       (kw small dots, exact 0/1 selection)
        Y    = U_cat @ concat_kx(A_kx)         (one fat dot, contraction kw*Cin*Hin)
        Y    = LeakyReLU(Y)  (where the module has one), f32 epilogue on the VPU.
    The output layout (Cout*Hout, Wout) is directly the next layer's input layout.
    """
    x_ref, out_ref = refs[0], refs[-1]
    n_layers = len(layer_meta)
    h = x_ref[...]                                           # (C0*H0, W0) bf16
    for li, (kw_, leaky) in enumerate(layer_meta):
        sw_ref = refs[1 + 2 * li]                            # (kw, Win, Wout) bf16 0/1
        u_ref = refs[2 + 2 * li]                             # (Cout*Hout, kw*Cin*Hin) bf16
        win = h.shape[1]
        if win == 1:
            # Degenerate 1x1 spatial input (decoder start): VPU broadcast instead of
            # an MXU outer product (contraction dim would be 1).
            parts = [h * sw_ref[kx] for kx in range(kw_)]    # bf16, exact
        else:
            parts = [
                jnp.dot(h, sw_ref[kx], preferred_element_type=jnp.float32)
                .astype(jnp.bfloat16)                        # exact: 0/1 selection of bf16
                for kx in range(kw_)
            ]
        a = jnp.concatenate(parts, axis=0)                   # (kw*Cin*Hin, Wout) bf16
        y = jnp.dot(u_ref[...], a, preferred_element_type=jnp.float32)  # (Cout*Hout, Wout)
        if leaky:
            y = jnp.where(y >= 0, y, 0.01 * y)               # f32 VPU epilogue
        h = y.astype(jnp.bfloat16) if li + 1 < n_layers else y
    out_ref[...] = h                                         # final layer stays f32


def make_ae_forward(layers, batch):
    in_rows, in_cols = layers[0]["cin"] * layers[0]["hin"], layers[0]["win"]
    out_rows = layers[-1]["cout"] * layers[-1]["hout"]
    out_cols = layers[-1]["wout"]
    layer_meta = tuple((L["kw"], L["leaky"]) for L in layers)

    in_specs = [pl.BlockSpec((None, in_rows, in_cols), lambda n: (n, 0, 0))]
    for L in layers:
        sw_shape = (L["kw"], L["win"], L["wout"])
        u_shape = (L["cout"] * L["hout"], L["kw"] * L["cin"] * L["hin"])
        in_specs.append(pl.BlockSpec(sw_shape, lambda n: (0, 0, 0)))   # resident operator
        in_specs.append(pl.BlockSpec(u_shape, lambda n: (0, 0)))       # resident operator

    call = pl.pallas_call(
        functools.partial(_ae_fused_kernel, layer_meta=layer_meta),
        out_shape=jax.ShapeDtypeStruct((batch, out_rows, out_cols), jnp.float32),
        grid=(batch,),
        in_specs=in_specs,
        out_specs=pl.BlockSpec((None, out_rows, out_cols), lambda n: (n, 0, 0)),
        compiler_params=pltpu.CompilerParams(dimension_semantics=("parallel",)),
    )

    c0, h0, w0 = layers[0]["cin"], layers[0]["hin"], layers[0]["win"]
    cl, hl, wl = layers[-1]["cout"], layers[-1]["hout"], layers[-1]["wout"]

    @jax.jit
    def fwd(x, packed):
        flat = []
        for sw, u in packed:
            flat.extend([sw, u])
        # NCHW -> per-image (C*H, W): channel-major rows, width on lanes.
        x2 = x.reshape(batch, c0 * h0, w0).astype(jnp.bfloat16)
        y2 = call(x2, *flat)
        return y2.reshape(batch, cl, hl, wl)

    return fwd


# ----------------------------------------------------------------------------
# Pure-JAX reference (lax.conv_general_dilated) with the same bf16 rounding of
# inputs / weights / inter-layer activations; used only for the correctness check.
# ----------------------------------------------------------------------------
def ae_reference(x, weights, layers):
    h = x.astype(jnp.bfloat16).astype(jnp.float32)
    n_layers = len(layers)
    for i, (L, w) in enumerate(zip(layers, weights)):
        if L["tconv"]:
            w_eq = jnp.transpose(jnp.flip(w, axis=(2, 3)), (1, 0, 2, 3))
        else:
            w_eq = w
        w_eq = w_eq.astype(jnp.bfloat16).astype(jnp.float32)
        h = lax.conv_general_dilated(
            h, w_eq,
            window_strides=(L["s"], L["s"]),
            padding=((L["ph"], L["ph"]), (L["pw"], L["pw"])),
            lhs_dilation=(L["d"], L["d"]),
            dimension_numbers=("NCHW", "OIHW", "NCHW"),
            precision=lax.Precision.HIGHEST)
        if L["leaky"]:
            h = jnp.where(h >= 0, h, 0.01 * h)
        if i + 1 < n_layers:
            h = h.astype(jnp.bfloat16).astype(jnp.float32)
    return h


if __name__ == "__main__":
    # AE(input_size=(4,16,16), z_dim=32, fmap_sizes=(8,16,32), to_1x1=True)
    batch, in_channels, H, W = 2, 4, 16, 16
    fmap_sizes = (8, 16, 32)
    z_dim = 32

    key = jax.random.PRNGKey(0)
    k_params, k_x = jax.random.split(key)

    layers = build_ae_layers(in_channels, H, W, fmap_sizes, z_dim)
    weights = init_ae_weights(k_params, layers)
    packed = pack_params(layers, weights)                  # one-time operator packing
    fwd = make_ae_forward(layers, batch)

    x = jax.random.normal(k_x, (batch, in_channels, H, W), jnp.float32)

    x_rec = fwd(x, packed)
    x_rec = jax.block_until_ready(x_rec)

    assert x_rec.shape == (batch, in_channels, H, W), x_rec.shape
    assert bool(jnp.all(jnp.isfinite(x_rec)))

    # Kernel and reference share the same rounding structure (bf16 inputs/weights/
    # inter-layer activations, f32 accumulation), so the tolerance is tight.
    x_ref = jax.block_until_ready(ae_reference(x, weights, layers))
    np.testing.assert_allclose(np.asarray(x_rec), np.asarray(x_ref), rtol=1e-2, atol=1e-3)

    print("KERNEL_OK")
</pallas_src>

<mosaic_0001>
module attributes {stable_mosaic.version = 11 : i64} {
  func.func @_ae_fused_kernel(%arg0: i32, %arg1: memref<1x64x16xbf16, #tpu.memory_space<vmem>>, %arg2: memref<3x16x8xbf16, #tpu.memory_space<vmem>>, %arg3: memref<64x192xbf16, #tpu.memory_space<vmem>>, %arg4: memref<3x8x4xbf16, #tpu.memory_space<vmem>>, %arg5: memref<64x192xbf16, #tpu.memory_space<vmem>>, %arg6: memref<3x4x2xbf16, #tpu.memory_space<vmem>>, %arg7: memref<64x192xbf16, #tpu.memory_space<vmem>>, %arg8: memref<2x2x1xbf16, #tpu.memory_space<vmem>>, %arg9: memref<32x128xbf16, #tpu.memory_space<vmem>>, %arg10: memref<2x1x2xbf16, #tpu.memory_space<vmem>>, %arg11: memref<64x64xbf16, #tpu.memory_space<vmem>>, %arg12: memref<4x2x4xbf16, #tpu.memory_space<vmem>>, %arg13: memref<64x256xbf16, #tpu.memory_space<vmem>>, %arg14: memref<4x4x8xbf16, #tpu.memory_space<vmem>>, %arg15: memref<64x256xbf16, #tpu.memory_space<vmem>>, %arg16: memref<4x8x16xbf16, #tpu.memory_space<vmem>>, %arg17: memref<64x256xbf16, #tpu.memory_space<vmem>>, %arg18: memref<1x64x16xf32, #tpu.memory_space<vmem>>) attributes {dimension_semantics = [#tpu.dimension_semantics<parallel>], iteration_bounds = array<i64: 2>, scalar_prefetch = 0 : i64, scratch_operands = 0 : i64, tpu.core_type = #tpu.core_type<tc>, window_params = [{transform_indices = @transform_0, window_bounds = array<i64: 1, 64, 16>}, {pipeline_mode = #tpu.pipeline_mode<synchronous>, transform_indices = @transform_1, window_bounds = array<i64: 3, 16, 8>}, {pipeline_mode = #tpu.pipeline_mode<synchronous>, transform_indices = @transform_2, window_bounds = array<i64: 64, 192>}, {pipeline_mode = #tpu.pipeline_mode<synchronous>, transform_indices = @transform_3, window_bounds = array<i64: 3, 8, 4>}, {pipeline_mode = #tpu.pipeline_mode<synchronous>, transform_indices = @transform_4, window_bounds = array<i64: 64, 192>}, {pipeline_mode = #tpu.pipeline_mode<synchronous>, transform_indices = @transform_5, window_bounds = array<i64: 3, 4, 2>}, {pipeline_mode = #tpu.pipeline_mode<synchronous>, transform_indices = @transform_6, window_bounds = array<i64: 64, 192>}, {pipeline_mode = #tpu.pipeline_mode<synchronous>, transform_indices = @transform_7, window_bounds = array<i64: 2, 2, 1>}, {pipeline_mode = #tpu.pipeline_mode<synchronous>, transform_indices = @transform_8, window_bounds = array<i64: 32, 128>}, {pipeline_mode = #tpu.pipeline_mode<synchronous>, transform_indices = @transform_9, window_bounds = array<i64: 2, 1, 2>}, {pipeline_mode = #tpu.pipeline_mode<synchronous>, transform_indices = @transform_10, window_bounds = array<i64: 64, 64>}, {pipeline_mode = #tpu.pipeline_mode<synchronous>, transform_indices = @transform_11, window_bounds = array<i64: 4, 2, 4>}, {pipeline_mode = #tpu.pipeline_mode<synchronous>, transform_indices = @transform_12, window_bounds = array<i64: 64, 256>}, {pipeline_mode = #tpu.pipeline_mode<synchronous>, transform_indices = @transform_13, window_bounds = array<i64: 4, 4, 8>}, {pipeline_mode = #tpu.pipeline_mode<synchronous>, transform_indices = @transform_14, window_bounds = array<i64: 64, 256>}, {pipeline_mode = #tpu.pipeline_mode<synchronous>, transform_indices = @transform_15, window_bounds = array<i64: 4, 8, 16>}, {pipeline_mode = #tpu.pipeline_mode<synchronous>, transform_indices = @transform_16, window_bounds = array<i64: 64, 256>}, {transform_indices = @transform_17, window_bounds = array<i64: 1, 64, 16>}]} {
    %c0 = arith.constant 0 : index
    %c0_0 = arith.constant 0 : index
    %c0_1 = arith.constant 0 : index
    %0 = vector.load %arg1[%c0, %c0_0, %c0_1] : memref<1x64x16xbf16, #tpu.memory_space<vmem>>, vector<1x64x16xbf16>
    %1 = vector.shape_cast %0 : vector<1x64x16xbf16> to vector<64x16xbf16>
    %c0_2 = arith.constant 0 : index
    %c0_3 = arith.constant 0 : index
    %c0_4 = arith.constant 0 : index
    %2 = vector.load %arg2[%c0_2, %c0_3, %c0_4] : memref<3x16x8xbf16, #tpu.memory_space<vmem>>, vector<1x16x8xbf16>
    %3 = vector.shape_cast %2 : vector<1x16x8xbf16> to vector<16x8xbf16>
    %cst = arith.constant dense<0.000000e+00> : vector<64x8xf32>
    %4 = tpu.matmul %1, %3, %cst {dimension_numbers = #tpu.dot_dimension_numbers<[1], [0], [0], [1], [0, 0, 1, 1], [], []>} : vector<64x16xbf16>, vector<16x8xbf16>, vector<64x8xf32> -> vector<64x8xf32>
    %5 = arith.truncf %4 : vector<64x8xf32> to vector<64x8xbf16>
    %c1 = arith.constant 1 : index
    %c0_5 = arith.constant 0 : index
    %c0_6 = arith.constant 0 : index
    %6 = vector.load %arg2[%c1, %c0_5, %c0_6] : memref<3x16x8xbf16, #tpu.memory_space<vmem>>, vector<1x16x8xbf16>
    %7 = vector.shape_cast %6 : vector<1x16x8xbf16> to vector<16x8xbf16>
    %cst_7 = arith.constant dense<0.000000e+00> : vector<64x8xf32>
    %8 = tpu.matmul %1, %7, %cst_7 {dimension_numbers = #tpu.dot_dimension_numbers<[1], [0], [0], [1], [0, 0, 1, 1], [], []>} : vector<64x16xbf16>, vector<16x8xbf16>, vector<64x8xf32> -> vector<64x8xf32>
    %9 = arith.truncf %8 : vector<64x8xf32> to vector<64x8xbf16>
    %c2 = arith.constant 2 : index
    %c0_8 = arith.constant 0 : index
    %c0_9 = arith.constant 0 : index
    %10 = vector.load %arg2[%c2, %c0_8, %c0_9] : memref<3x16x8xbf16, #tpu.memory_space<vmem>>, vector<1x16x8xbf16>
    %11 = vector.shape_cast %10 : vector<1x16x8xbf16> to vector<16x8xbf16>
    %cst_10 = arith.constant dense<0.000000e+00> : vector<64x8xf32>
    %12 = tpu.matmul %1, %11, %cst_10 {dimension_numbers = #tpu.dot_dimension_numbers<[1], [0], [0], [1], [0, 0, 1, 1], [], []>} : vector<64x16xbf16>, vector<16x8xbf16>, vector<64x8xf32> -> vector<64x8xf32>
    %13 = arith.truncf %12 : vector<64x8xf32> to vector<64x8xbf16>
    %14 = tpu.concatenate %5, %9, %13 in 0 : vector<64x8xbf16>, vector<64x8xbf16>, vector<64x8xbf16> -> vector<192x8xbf16>
    %c0_11 = arith.constant 0 : index
    %c0_12 = arith.constant 0 : index
    %15 = vector.load %arg3[%c0_11, %c0_12] : memref<64x192xbf16, #tpu.memory_space<vmem>>, vector<64x192xbf16>
    %cst_13 = arith.constant dense<0.000000e+00> : vector<64x8xf32>
    %16 = tpu.matmul %15, %14, %cst_13 {dimension_numbers = #tpu.dot_dimension_numbers<[1], [0], [0], [1], [0, 0, 1, 1], [], []>} : vector<64x192xbf16>, vector<192x8xbf16>, vector<64x8xf32> -> vector<64x8xf32>
    %cst_14 = arith.constant 0.000000e+00 : f32
    %17 = vector.broadcast %cst_14 : f32 to vector<64x8xf32>
    %18 = arith.cmpf oge, %16, %17 : vector<64x8xf32>
    %cst_15 = arith.constant 0.00999999977 : f32
    %19 = vector.broadcast %cst_15 : f32 to vector<64x8xf32>
    %20 = arith.mulf %19, %16 : vector<64x8xf32>
    %21 = arith.select %18, %16, %20 : vector<64x8xi1>, vector<64x8xf32>
    %22 = arith.truncf %21 : vector<64x8xf32> to vector<64x8xbf16>
    %c0_16 = arith.constant 0 : index
    %c0_17 = arith.constant 0 : index
    %c0_18 = arith.constant 0 : index
    %23 = vector.load %arg4[%c0_16, %c0_17, %c0_18] : memref<3x8x4xbf16, #tpu.memory_space<vmem>>, vector<1x8x4xbf16>
    %24 = vector.shape_cast %23 : vector<1x8x4xbf16> to vector<8x4xbf16>
    %cst_19 = arith.constant dense<0.000000e+00> : vector<64x4xf32>
    %25 = tpu.matmul %22, %24, %cst_19 {dimension_numbers = #tpu.dot_dimension_numbers<[1], [0], [0], [1], [0, 0, 1, 1], [], []>} : vector<64x8xbf16>, vector<8x4xbf16>, vector<64x4xf32> -> vector<64x4xf32>
    %26 = arith.truncf %25 : vector<64x4xf32> to vector<64x4xbf16>
    %c1_20 = arith.constant 1 : index
    %c0_21 = arith.constant 0 : index
    %c0_22 = arith.constant 0 : index
    %27 = vector.load %arg4[%c1_20, %c0_21, %c0_22] : memref<3x8x4xbf16, #tpu.memory_space<vmem>>, vector<1x8x4xbf16>
    %28 = vector.shape_cast %27 : vector<1x8x4xbf16> to vector<8x4xbf16>
    %cst_23 = arith.constant dense<0.000000e+00> : vector<64x4xf32>
    %29 = tpu.matmul %22, %28, %cst_23 {dimension_numbers = #tpu.dot_dimension_numbers<[1], [0], [0], [1], [0, 0, 1, 1], [], []>} : vector<64x8xbf16>, vector<8x4xbf16>, vector<64x4xf32> -> vector<64x4xf32>
    %30 = arith.truncf %29 : vector<64x4xf32> to vector<64x4xbf16>
    %c2_24 = arith.constant 2 : index
    %c0_25 = arith.constant 0 : index
    %c0_26 = arith.constant 0 : index
    %31 = vector.load %arg4[%c2_24, %c0_25, %c0_26] : memref<3x8x4xbf16, #tpu.memory_space<vmem>>, vector<1x8x4xbf16>
    %32 = vector.shape_cast %31 : vector<1x8x4xbf16> to vector<8x4xbf16>
    %cst_27 = arith.constant dense<0.000000e+00> : vector<64x4xf32>
    %33 = tpu.matmul %22, %32, %cst_27 {dimension_numbers = #tpu.dot_dimension_numbers<[1], [0], [0], [1], [0, 0, 1, 1], [], []>} : vector<64x8xbf16>, vector<8x4xbf16>, vector<64x4xf32> -> vector<64x4xf32>
    %34 = arith.truncf %33 : vector<64x4xf32> to vector<64x4xbf16>
    %35 = tpu.concatenate %26, %30, %34 in 0 : vector<64x4xbf16>, vector<64x4xbf16>, vector<64x4xbf16> -> vector<192x4xbf16>
    %c0_28 = arith.constant 0 : index
    %c0_29 = arith.constant 0 : index
    %36 = vector.load %arg5[%c0_28, %c0_29] : memref<64x192xbf16, #tpu.memory_space<vmem>>, vector<64x192xbf16>
    %cst_30 = arith.constant dense<0.000000e+00> : vector<64x4xf32>
    %37 = tpu.matmul %36, %35, %cst_30 {dimension_numbers = #tpu.dot_dimension_numbers<[1], [0], [0], [1], [0, 0, 1, 1], [], []>} : vector<64x192xbf16>, vector<192x4xbf16>, vector<64x4xf32> -> vector<64x4xf32>
    %cst_31 = arith.constant 0.000000e+00 : f32
    %38 = vector.broadcast %cst_31 : f32 to vector<64x4xf32>
    %39 = arith.cmpf oge, %37, %38 : vector<64x4xf32>
    %cst_32 = arith.constant 0.00999999977 : f32
    %40 = vector.broadcast %cst_32 : f32 to vector<64x4xf32>
    %41 = arith.mulf %40, %37 : vector<64x4xf32>
    %42 = arith.select %39, %37, %41 : vector<64x4xi1>, vector<64x4xf32>
    %43 = arith.truncf %42 : vector<64x4xf32> to vector<64x4xbf16>
    %c0_33 = arith.constant 0 : index
    %c0_34 = arith.constant 0 : index
    %c0_35 = arith.constant 0 : index
    %44 = vector.load %arg6[%c0_33, %c0_34, %c0_35] : memref<3x4x2xbf16, #tpu.memory_space<vmem>>, vector<1x4x2xbf16>
    %45 = vector.shape_cast %44 : vector<1x4x2xbf16> to vector<4x2xbf16>
    %cst_36 = arith.constant dense<0.000000e+00> : vector<64x2xf32>
    %46 = tpu.matmul %43, %45, %cst_36 {dimension_numbers = #tpu.dot_dimension_numbers<[1], [0], [0], [1], [0, 0, 1, 1], [], []>} : vector<64x4xbf16>, vector<4x2xbf16>, vector<64x2xf32> -> vector<64x2xf32>
    %47 = arith.truncf %46 : vector<64x2xf32> to vector<64x2xbf16>
    %c1_37 = arith.constant 1 : index
    %c0_38 = arith.constant 0 : index
    %c0_39 = arith.constant 0 : index
    %48 = vector.load %arg6[%c1_37, %c0_38, %c0_39] : memref<3x4x2xbf16, #tpu.memory_space<vmem>>, vector<1x4x2xbf16>
    %49 = vector.shape_cast %48 : vector<1x4x2xbf16> to vector<4x2xbf16>
    %cst_40 = arith.constant dense<0.000000e+00> : vector<64x2xf32>
    %50 = tpu.matmul %43, %49, %cst_40 {dimension_numbers = #tpu.dot_dimension_numbers<[1], [0], [0], [1], [0, 0, 1, 1], [], []>} : vector<64x4xbf16>, vector<4x2xbf16>, vector<64x2xf32> -> vector<64x2xf32>
    %51 = arith.truncf %50 : vector<64x2xf32> to vector<64x2xbf16>
    %c2_41 = arith.constant 2 : index
    %c0_42 = arith.constant 0 : index
    %c0_43 = arith.constant 0 : index
    %52 = vector.load %arg6[%c2_41, %c0_42, %c0_43] : memref<3x4x2xbf16, #tpu.memory_space<vmem>>, vector<1x4x2xbf16>
    %53 = vector.shape_cast %52 : vector<1x4x2xbf16> to vector<4x2xbf16>
    %cst_44 = arith.constant dense<0.000000e+00> : vector<64x2xf32>
    %54 = tpu.matmul %43, %53, %cst_44 {dimension_numbers = #tpu.dot_dimension_numbers<[1], [0], [0], [1], [0, 0, 1, 1], [], []>} : vector<64x4xbf16>, vector<4x2xbf16>, vector<64x2xf32> -> vector<64x2xf32>
    %55 = arith.truncf %54 : vector<64x2xf32> to vector<64x2xbf16>
    %56 = tpu.concatenate %47, %51, %55 in 0 : vector<64x2xbf16>, vector<64x2xbf16>, vector<64x2xbf16> -> vector<192x2xbf16>
    %c0_45 = arith.constant 0 : index
    %c0_46 = arith.constant 0 : index
    %57 = vector.load %arg7[%c0_45, %c0_46] : memref<64x192xbf16, #tpu.memory_space<vmem>>, vector<64x192xbf16>
    %cst_47 = arith.constant dense<0.000000e+00> : vector<64x2xf32>
    %58 = tpu.matmul %57, %56, %cst_47 {dimension_numbers = #tpu.dot_dimension_numbers<[1], [0], [0], [1], [0, 0, 1, 1], [], []>} : vector<64x192xbf16>, vector<192x2xbf16>, vector<64x2xf32> -> vector<64x2xf32>
    %cst_48 = arith.constant 0.000000e+00 : f32
    %59 = vector.broadcast %cst_48 : f32 to vector<64x2xf32>
    %60 = arith.cmpf oge, %58, %59 : vector<64x2xf32>
    %cst_49 = arith.constant 0.00999999977 : f32
    %61 = vector.broadcast %cst_49 : f32 to vector<64x2xf32>
    %62 = arith.mulf %61, %58 : vector<64x2xf32>
    %63 = arith.select %60, %58, %62 : vector<64x2xi1>, vector<64x2xf32>
    %64 = arith.truncf %63 : vector<64x2xf32> to vector<64x2xbf16>
    %c0_50 = arith.constant 0 : index
    %c0_51 = arith.constant 0 : index
    %c0_52 = arith.constant 0 : index
    %65 = vector.load %arg8[%c0_50, %c0_51, %c0_52] : memref<2x2x1xbf16, #tpu.memory_space<vmem>>, vector<1x2x1xbf16>
    %66 = vector.shape_cast %65 : vector<1x2x1xbf16> to vector<2x1xbf16>
    %cst_53 = arith.constant dense<0.000000e+00> : vector<64x1xf32>
    %67 = tpu.matmul %64, %66, %cst_53 {dimension_numbers = #tpu.dot_dimension_numbers<[1], [0], [0], [1], [0, 0, 1, 1], [], []>} : vector<64x2xbf16>, vector<2x1xbf16>, vector<64x1xf32> -> vector<64x1xf32>
    %68 = arith.truncf %67 : vector<64x1xf32> to vector<64x1xbf16>
    %c1_54 = arith.constant 1 : index
    %c0_55 = arith.constant 0 : index
    %c0_56 = arith.constant 0 : index
    %69 = vector.load %arg8[%c1_54, %c0_55, %c0_56] : memref<2x2x1xbf16, #tpu.memory_space<vmem>>, vector<1x2x1xbf16>
    %70 = vector.shape_cast %69 : vector<1x2x1xbf16> to vector<2x1xbf16>
    %cst_57 = arith.constant dense<0.000000e+00> : vector<64x1xf32>
    %71 = tpu.matmul %64, %70, %cst_57 {dimension_numbers = #tpu.dot_dimension_numbers<[1], [0], [0], [1], [0, 0, 1, 1], [], []>} : vector<64x2xbf16>, vector<2x1xbf16>, vector<64x1xf32> -> vector<64x1xf32>
    %72 = arith.truncf %71 : vector<64x1xf32> to vector<64x1xbf16>
    %73 = tpu.concatenate %68, %72 in 0 : vector<64x1xbf16>, vector<64x1xbf16> -> vector<128x1xbf16>
    %c0_58 = arith.constant 0 : index
    %c0_59 = arith.constant 0 : index
    %74 = vector.load %arg9[%c0_58, %c0_59] : memref<32x128xbf16, #tpu.memory_space<vmem>>, vector<32x128xbf16>
    %cst_60 = arith.constant dense<0.000000e+00> : vector<32x1xf32>
    %75 = tpu.matmul %74, %73, %cst_60 {dimension_numbers = #tpu.dot_dimension_numbers<[1], [0], [0], [1], [0, 0, 1, 1], [], []>} : vector<32x128xbf16>, vector<128x1xbf16>, vector<32x1xf32> -> vector<32x1xf32>
    %76 = arith.truncf %75 : vector<32x1xf32> to vector<32x1xbf16>
    %c0_61 = arith.constant 0 : index
    %c0_62 = arith.constant 0 : index
    %c0_63 = arith.constant 0 : index
    %77 = vector.load %arg10[%c0_61, %c0_62, %c0_63] : memref<2x1x2xbf16, #tpu.memory_space<vmem>>, vector<1x1x2xbf16>
    %78 = vector.shape_cast %77 : vector<1x1x2xbf16> to vector<1x2xbf16>
    %79 = vector.broadcast %76 : vector<32x1xbf16> to vector<32x2xbf16>
    %80 = vector.broadcast %78 : vector<1x2xbf16> to vector<32x2xbf16>
    %81 = arith.mulf %79, %80 : vector<32x2xbf16>
    %c1_64 = arith.constant 1 : index
    %c0_65 = arith.constant 0 : index
    %c0_66 = arith.constant 0 : index
    %82 = vector.load %arg10[%c1_64, %c0_65, %c0_66] : memref<2x1x2xbf16, #tpu.memory_space<vmem>>, vector<1x1x2xbf16>
    %83 = vector.shape_cast %82 : vector<1x1x2xbf16> to vector<1x2xbf16>
    %84 = vector.broadcast %76 : vector<32x1xbf16> to vector<32x2xbf16>
    %85 = vector.broadcast %83 : vector<1x2xbf16> to vector<32x2xbf16>
    %86 = arith.mulf %84, %85 : vector<32x2xbf16>
    %87 = tpu.concatenate %81, %86 in 0 : vector<32x2xbf16>, vector<32x2xbf16> -> vector<64x2xbf16>
    %c0_67 = arith.constant 0 : index
    %c0_68 = arith.constant 0 : index
    %88 = vector.load %arg11[%c0_67, %c0_68] : memref<64x64xbf16, #tpu.memory_space<vmem>>, vector<64x64xbf16>
    %cst_69 = arith.constant dense<0.000000e+00> : vector<64x2xf32>
    %89 = tpu.matmul %88, %87, %cst_69 {dimension_numbers = #tpu.dot_dimension_numbers<[1], [0], [0], [1], [0, 0, 1, 1], [], []>} : vector<64x64xbf16>, vector<64x2xbf16>, vector<64x2xf32> -> vector<64x2xf32>
    %cst_70 = arith.constant 0.000000e+00 : f32
    %90 = vector.broadcast %cst_70 : f32 to vector<64x2xf32>
    %91 = arith.cmpf oge, %89, %90 : vector<64x2xf32>
    %cst_71 = arith.constant 0.00999999977 : f32
    %92 = vector.broadcast %cst_71 : f32 to vector<64x2xf32>
    %93 = arith.mulf %92, %89 : vector<64x2xf32>
    %94 = arith.select %91, %89, %93 : vector<64x2xi1>, vector<64x2xf32>
    %95 = arith.truncf %94 : vector<64x2xf32> to vector<64x2xbf16>
    %c0_72 = arith.constant 0 : index
    %c0_73 = arith.constant 0 : index
    %c0_74 = arith.constant 0 : index
    %96 = vector.load %arg12[%c0_72, %c0_73, %c0_74] : memref<4x2x4xbf16, #tpu.memory_space<vmem>>, vector<1x2x4xbf16>
    %97 = vector.shape_cast %96 : vector<1x2x4xbf16> to vector<2x4xbf16>
    %cst_75 = arith.constant dense<0.000000e+00> : vector<64x4xf32>
    %98 = tpu.matmul %95, %97, %cst_75 {dimension_numbers = #tpu.dot_dimension_numbers<[1], [0], [0], [1], [0, 0, 1, 1], [], []>} : vector<64x2xbf16>, vector<2x4xbf16>, vector<64x4xf32> -> vector<64x4xf32>
    %99 = arith.truncf %98 : vector<64x4xf32> to vector<64x4xbf16>
    %c1_76 = arith.constant 1 : index
    %c0_77 = arith.constant 0 : index
    %c0_78 = arith.constant 0 : index
    %100 = vector.load %arg12[%c1_76, %c0_77, %c0_78] : memref<4x2x4xbf16, #tpu.memory_space<vmem>>, vector<1x2x4xbf16>
    %101 = vector.shape_cast %100 : vector<1x2x4xbf16> to vector<2x4xbf16>
    %cst_79 = arith.constant dense<0.000000e+00> : vector<64x4xf32>
    %102 = tpu.matmul %95, %101, %cst_79 {dimension_numbers = #tpu.dot_dimension_numbers<[1], [0], [0], [1], [0, 0, 1, 1], [], []>} : vector<64x2xbf16>, vector<2x4xbf16>, vector<64x4xf32> -> vector<64x4xf32>
    %103 = arith.truncf %102 : vector<64x4xf32> to vector<64x4xbf16>
    %c2_80 = arith.constant 2 : index
    %c0_81 = arith.constant 0 : index
    %c0_82 = arith.constant 0 : index
    %104 = vector.load %arg12[%c2_80, %c0_81, %c0_82] : memref<4x2x4xbf16, #tpu.memory_space<vmem>>, vector<1x2x4xbf16>
    %105 = vector.shape_cast %104 : vector<1x2x4xbf16> to vector<2x4xbf16>
    %cst_83 = arith.constant dense<0.000000e+00> : vector<64x4xf32>
    %106 = tpu.matmul %95, %105, %cst_83 {dimension_numbers = #tpu.dot_dimension_numbers<[1], [0], [0], [1], [0, 0, 1, 1], [], []>} : vector<64x2xbf16>, vector<2x4xbf16>, vector<64x4xf32> -> vector<64x4xf32>
    %107 = arith.truncf %106 : vector<64x4xf32> to vector<64x4xbf16>
    %c3 = arith.constant 3 : index
    %c0_84 = arith.constant 0 : index
    %c0_85 = arith.constant 0 : index
    %108 = vector.load %arg12[%c3, %c0_84, %c0_85] : memref<4x2x4xbf16, #tpu.memory_space<vmem>>, vector<1x2x4xbf16>
    %109 = vector.shape_cast %108 : vector<1x2x4xbf16> to vector<2x4xbf16>
    %cst_86 = arith.constant dense<0.000000e+00> : vector<64x4xf32>
    %110 = tpu.matmul %95, %109, %cst_86 {dimension_numbers = #tpu.dot_dimension_numbers<[1], [0], [0], [1], [0, 0, 1, 1], [], []>} : vector<64x2xbf16>, vector<2x4xbf16>, vector<64x4xf32> -> vector<64x4xf32>
    %111 = arith.truncf %110 : vector<64x4xf32> to vector<64x4xbf16>
    %112 = tpu.concatenate %99, %103, %107, %111 in 0 : vector<64x4xbf16>, vector<64x4xbf16>, vector<64x4xbf16>, vector<64x4xbf16> -> vector<256x4xbf16>
    %c0_87 = arith.constant 0 : index
    %c0_88 = arith.constant 0 : index
    %113 = vector.load %arg13[%c0_87, %c0_88] : memref<64x256xbf16, #tpu.memory_space<vmem>>, vector<64x256xbf16>
    %cst_89 = arith.constant dense<0.000000e+00> : vector<64x4xf32>
    %114 = tpu.matmul %113, %112, %cst_89 {dimension_numbers = #tpu.dot_dimension_numbers<[1], [0], [0], [1], [0, 0, 1, 1], [], []>} : vector<64x256xbf16>, vector<256x4xbf16>, vector<64x4xf32> -> vector<64x4xf32>
    %cst_90 = arith.constant 0.000000e+00 : f32
    %115 = vector.broadcast %cst_90 : f32 to vector<64x4xf32>
    %116 = arith.cmpf oge, %114, %115 : vector<64x4xf32>
    %cst_91 = arith.constant 0.00999999977 : f32
    %117 = vector.broadcast %cst_91 : f32 to vector<64x4xf32>
    %118 = arith.mulf %117, %114 : vector<64x4xf32>
    %119 = arith.select %116, %114, %118 : vector<64x4xi1>, vector<64x4xf32>
    %120 = arith.truncf %119 : vector<64x4xf32> to vector<64x4xbf16>
    %c0_92 = arith.constant 0 : index
    %c0_93 = arith.constant 0 : index
    %c0_94 = arith.constant 0 : index
    %121 = vector.load %arg14[%c0_92, %c0_93, %c0_94] : memref<4x4x8xbf16, #tpu.memory_space<vmem>>, vector<1x4x8xbf16>
    %122 = vector.shape_cast %121 : vector<1x4x8xbf16> to vector<4x8xbf16>
    %cst_95 = arith.constant dense<0.000000e+00> : vector<64x8xf32>
    %123 = tpu.matmul %120, %122, %cst_95 {dimension_numbers = #tpu.dot_dimension_numbers<[1], [0], [0], [1], [0, 0, 1, 1], [], []>} : vector<64x4xbf16>, vector<4x8xbf16>, vector<64x8xf32> -> vector<64x8xf32>
    %124 = arith.truncf %123 : vector<64x8xf32> to vector<64x8xbf16>
    %c1_96 = arith.constant 1 : index
    %c0_97 = arith.constant 0 : index
    %c0_98 = arith.constant 0 : index
    %125 = vector.load %arg14[%c1_96, %c0_97, %c0_98] : memref<4x4x8xbf16, #tpu.memory_space<vmem>>, vector<1x4x8xbf16>
    %126 = vector.shape_cast %125 : vector<1x4x8xbf16> to vector<4x8xbf16>
    %cst_99 = arith.constant dense<0.000000e+00> : vector<64x8xf32>
    %127 = tpu.matmul %120, %126, %cst_99 {dimension_numbers = #tpu.dot_dimension_numbers<[1], [0], [0], [1], [0, 0, 1, 1], [], []>} : vector<64x4xbf16>, vector<4x8xbf16>, vector<64x8xf32> -> vector<64x8xf32>
    %128 = arith.truncf %127 : vector<64x8xf32> to vector<64x8xbf16>
    %c2_100 = arith.constant 2 : index
    %c0_101 = arith.constant 0 : index
    %c0_102 = arith.constant 0 : index
    %129 = vector.load %arg14[%c2_100, %c0_101, %c0_102] : memref<4x4x8xbf16, #tpu.memory_space<vmem>>, vector<1x4x8xbf16>
    %130 = vector.shape_cast %129 : vector<1x4x8xbf16> to vector<4x8xbf16>
    %cst_103 = arith.constant dense<0.000000e+00> : vector<64x8xf32>
    %131 = tpu.matmul %120, %130, %cst_103 {dimension_numbers = #tpu.dot_dimension_numbers<[1], [0], [0], [1], [0, 0, 1, 1], [], []>} : vector<64x4xbf16>, vector<4x8xbf16>, vector<64x8xf32> -> vector<64x8xf32>
    %132 = arith.truncf %131 : vector<64x8xf32> to vector<64x8xbf16>
    %c3_104 = arith.constant 3 : index
    %c0_105 = arith.constant 0 : index
    %c0_106 = arith.constant 0 : index
    %133 = vector.load %arg14[%c3_104, %c0_105, %c0_106] : memref<4x4x8xbf16, #tpu.memory_space<vmem>>, vector<1x4x8xbf16>
    %134 = vector.shape_cast %133 : vector<1x4x8xbf16> to vector<4x8xbf16>
    %cst_107 = arith.constant dense<0.000000e+00> : vector<64x8xf32>
    %135 = tpu.matmul %120, %134, %cst_107 {dimension_numbers = #tpu.dot_dimension_numbers<[1], [0], [0], [1], [0, 0, 1, 1], [], []>} : vector<64x4xbf16>, vector<4x8xbf16>, vector<64x8xf32> -> vector<64x8xf32>
    %136 = arith.truncf %135 : vector<64x8xf32> to vector<64x8xbf16>
    %137 = tpu.concatenate %124, %128, %132, %136 in 0 : vector<64x8xbf16>, vector<64x8xbf16>, vector<64x8xbf16>, vector<64x8xbf16> -> vector<256x8xbf16>
    %c0_108 = arith.constant 0 : index
    %c0_109 = arith.constant 0 : index
    %138 = vector.load %arg15[%c0_108, %c0_109] : memref<64x256xbf16, #tpu.memory_space<vmem>>, vector<64x256xbf16>
    %cst_110 = arith.constant dense<0.000000e+00> : vector<64x8xf32>
    %139 = tpu.matmul %138, %137, %cst_110 {dimension_numbers = #tpu.dot_dimension_numbers<[1], [0], [0], [1], [0, 0, 1, 1], [], []>} : vector<64x256xbf16>, vector<256x8xbf16>, vector<64x8xf32> -> vector<64x8xf32>
    %cst_111 = arith.constant 0.000000e+00 : f32
    %140 = vector.broadcast %cst_111 : f32 to vector<64x8xf32>
    %141 = arith.cmpf oge, %139, %140 : vector<64x8xf32>
    %cst_112 = arith.constant 0.00999999977 : f32
    %142 = vector.broadcast %cst_112 : f32 to vector<64x8xf32>
    %143 = arith.mulf %142, %139 : vector<64x8xf32>
    %144 = arith.select %141, %139, %143 : vector<64x8xi1>, vector<64x8xf32>
    %145 = arith.truncf %144 : vector<64x8xf32> to vector<64x8xbf16>
    %c0_113 = arith.constant 0 : index
    %c0_114 = arith.constant 0 : index
    %c0_115 = arith.constant 0 : index
    %146 = vector.load %arg16[%c0_113, %c0_114, %c0_115] : memref<4x8x16xbf16, #tpu.memory_space<vmem>>, vector<1x8x16xbf16>
    %147 = vector.shape_cast %146 : vector<1x8x16xbf16> to vector<8x16xbf16>
    %cst_116 = arith.constant dense<0.000000e+00> : vector<64x16xf32>
    %148 = tpu.matmul %145, %147, %cst_116 {dimension_numbers = #tpu.dot_dimension_numbers<[1], [0], [0], [1], [0, 0, 1, 1], [], []>} : vector<64x8xbf16>, vector<8x16xbf16>, vector<64x16xf32> -> vector<64x16xf32>
    %149 = arith.truncf %148 : vector<64x16xf32> to vector<64x16xbf16>
    %c1_117 = arith.constant 1 : index
    %c0_118 = arith.constant 0 : index
    %c0_119 = arith.constant 0 : index
    %150 = vector.load %arg16[%c1_117, %c0_118, %c0_119] : memref<4x8x16xbf16, #tpu.memory_space<vmem>>, vector<1x8x16xbf16>
    %151 = vector.shape_cast %150 : vector<1x8x16xbf16> to vector<8x16xbf16>
    %cst_120 = arith.constant dense<0.000000e+00> : vector<64x16xf32>
    %152 = tpu.matmul %145, %151, %cst_120 {dimension_numbers = #tpu.dot_dimension_numbers<[1], [0], [0], [1], [0, 0, 1, 1], [], []>} : vector<64x8xbf16>, vector<8x16xbf16>, vector<64x16xf32> -> vector<64x16xf32>
    %153 = arith.truncf %152 : vector<64x16xf32> to vector<64x16xbf16>
    %c2_121 = arith.constant 2 : index
    %c0_122 = arith.constant 0 : index
    %c0_123 = arith.constant 0 : index
    %154 = vector.load %arg16[%c2_121, %c0_122, %c0_123] : memref<4x8x16xbf16, #tpu.memory_space<vmem>>, vector<1x8x16xbf16>
    %155 = vector.shape_cast %154 : vector<1x8x16xbf16> to vector<8x16xbf16>
    %cst_124 = arith.constant dense<0.000000e+00> : vector<64x16xf32>
    %156 = tpu.matmul %145, %155, %cst_124 {dimension_numbers = #tpu.dot_dimension_numbers<[1], [0], [0], [1], [0, 0, 1, 1], [], []>} : vector<64x8xbf16>, vector<8x16xbf16>, vector<64x16xf32> -> vector<64x16xf32>
    %157 = arith.truncf %156 : vector<64x16xf32> to vector<64x16xbf16>
    %c3_125 = arith.constant 3 : index
    %c0_126 = arith.constant 0 : index
    %c0_127 = arith.constant 0 : index
    %158 = vector.load %arg16[%c3_125, %c0_126, %c0_127] : memref<4x8x16xbf16, #tpu.memory_space<vmem>>, vector<1x8x16xbf16>
    %159 = vector.shape_cast %158 : vector<1x8x16xbf16> to vector<8x16xbf16>
    %cst_128 = arith.constant dense<0.000000e+00> : vector<64x16xf32>
    %160 = tpu.matmul %145, %159, %cst_128 {dimension_numbers = #tpu.dot_dimension_numbers<[1], [0], [0], [1], [0, 0, 1, 1], [], []>} : vector<64x8xbf16>, vector<8x16xbf16>, vector<64x16xf32> -> vector<64x16xf32>
    %161 = arith.truncf %160 : vector<64x16xf32> to vector<64x16xbf16>
    %162 = tpu.concatenate %149, %153, %157, %161 in 0 : vector<64x16xbf16>, vector<64x16xbf16>, vector<64x16xbf16>, vector<64x16xbf16> -> vector<256x16xbf16>
    %c0_129 = arith.constant 0 : index
    %c0_130 = arith.constant 0 : index
    %163 = vector.load %arg17[%c0_129, %c0_130] : memref<64x256xbf16, #tpu.memory_space<vmem>>, vector<64x256xbf16>
    %cst_131 = arith.constant dense<0.000000e+00> : vector<64x16xf32>
    %164 = tpu.matmul %163, %162, %cst_131 {dimension_numbers = #tpu.dot_dimension_numbers<[1], [0], [0], [1], [0, 0, 1, 1], [], []>} : vector<64x256xbf16>, vector<256x16xbf16>, vector<64x16xf32> -> vector<64x16xf32>
    %c0_132 = arith.constant 0 : index
    %c0_133 = arith.constant 0 : index
    %c0_134 = arith.constant 0 : index
    %165 = vector.load %arg18[%c0_132, %c0_133, %c0_134] : memref<1x64x16xf32, #tpu.memory_space<vmem>>, vector<1x64x16xf32>
    %166 = vector.shape_cast %165 : vector<1x64x16xf32> to vector<64x16xf32>
    %167 = vector.shape_cast %164 : vector<64x16xf32> to vector<1x64x16xf32>
    tpu.vector_store %arg18[%c0_132, %c0_133, %c0_134], %167 {strides = array<i32>} : memref<1x64x16xf32, #tpu.memory_space<vmem>>, vector<1x64x16xf32>,
    return
  }
  func.func @transform_0(%arg0: i32) -> (i32, i32, i32) {
    %c0_i32 = arith.constant 0 : i32
    %c0_i32_0 = arith.constant 0 : i32
    %c0_i32_1 = arith.constant 0 : i32
    return %arg0, %c0_i32, %c0_i32_0 : i32, i32, i32
  }
  func.func @transform_1(%arg0: i32) -> (i32, i32, i32) {
    %c0_i32 = arith.constant 0 : i32
    %c0_i32_0 = arith.constant 0 : i32
    %c0_i32_1 = arith.constant 0 : i32
    %c0_i32_2 = arith.constant 0 : i32
    return %c0_i32, %c0_i32_0, %c0_i32_1 : i32, i32, i32
  }
  func.func @transform_2(%arg0: i32) -> (i32, i32) {
    %c0_i32 = arith.constant 0 : i32
    %c0_i32_0 = arith.constant 0 : i32
    %c0_i32_1 = arith.constant 0 : i32
    return %c0_i32, %c0_i32_0 : i32, i32
  }
  func.func @transform_3(%arg0: i32) -> (i32, i32, i32) {
    %c0_i32 = arith.constant 0 : i32
    %c0_i32_0 = arith.constant 0 : i32
    %c0_i32_1 = arith.constant 0 : i32
    %c0_i32_2 = arith.constant 0 : i32
    return %c0_i32, %c0_i32_0, %c0_i32_1 : i32, i32, i32
  }
  func.func @transform_4(%arg0: i32) -> (i32, i32) {
    %c0_i32 = arith.constant 0 : i32
    %c0_i32_0 = arith.constant 0 : i32
    %c0_i32_1 = arith.constant 0 : i32
    return %c0_i32, %c0_i32_0 : i32, i32
  }
  func.func @transform_5(%arg0: i32) -> (i32, i32, i32) {
    %c0_i32 = arith.constant 0 : i32
    %c0_i32_0 = arith.constant 0 : i32
    %c0_i32_1 = arith.constant 0 : i32
    %c0_i32_2 = arith.constant 0 : i32
    return %c0_i32, %c0_i32_0, %c0_i32_1 : i32, i32, i32
  }
  func.func @transform_6(%arg0: i32) -> (i32, i32) {
    %c0_i32 = arith.constant 0 : i32
    %c0_i32_0 = arith.constant 0 : i32
    %c0_i32_1 = arith.constant 0 : i32
    return %c0_i32, %c0_i32_0 : i32, i32
  }
  func.func @transform_7(%arg0: i32) -> (i32, i32, i32) {
    %c0_i32 = arith.constant 0 : i32
    %c0_i32_0 = arith.constant 0 : i32
    %c0_i32_1 = arith.constant 0 : i32
    %c0_i32_2 = arith.constant 0 : i32
    return %c0_i32, %c0_i32_0, %c0_i32_1 : i32, i32, i32
  }
  func.func @transform_8(%arg0: i32) -> (i32, i32) {
    %c0_i32 = arith.constant 0 : i32
    %c0_i32_0 = arith.constant 0 : i32
    %c0_i32_1 = arith.constant 0 : i32
    return %c0_i32, %c0_i32_0 : i32, i32
  }
  func.func @transform_9(%arg0: i32) -> (i32, i32, i32) {
    %c0_i32 = arith.constant 0 : i32
    %c0_i32_0 = arith.constant 0 : i32
    %c0_i32_1 = arith.constant 0 : i32
    %c0_i32_2 = arith.constant 0 : i32
    return %c0_i32, %c0_i32_0, %c0_i32_1 : i32, i32, i32
  }
  func.func @transform_10(%arg0: i32) -> (i32, i32) {
    %c0_i32 = arith.constant 0 : i32
    %c0_i32_0 = arith.constant 0 : i32
    %c0_i32_1 = arith.constant 0 : i32
    return %c0_i32, %c0_i32_0 : i32, i32
  }
  func.func @transform_11(%arg0: i32) -> (i32, i32, i32) {
    %c0_i32 = arith.constant 0 : i32
    %c0_i32_0 = arith.constant 0 : i32
    %c0_i32_1 = arith.constant 0 : i32
    %c0_i32_2 = arith.constant 0 : i32
    return %c0_i32, %c0_i32_0, %c0_i32_1 : i32, i32, i32
  }
  func.func @transform_12(%arg0: i32) -> (i32, i32) {
    %c0_i32 = arith.constant 0 : i32
    %c0_i32_0 = arith.constant 0 : i32
    %c0_i32_1 = arith.constant 0 : i32
    return %c0_i32, %c0_i32_0 : i32, i32
  }
  func.func @transform_13(%arg0: i32) -> (i32, i32, i32) {
    %c0_i32 = arith.constant 0 : i32
    %c0_i32_0 = arith.constant 0 : i32
    %c0_i32_1 = arith.constant 0 : i32
    %c0_i32_2 = arith.constant 0 : i32
    return %c0_i32, %c0_i32_0, %c0_i32_1 : i32, i32, i32
  }
  func.func @transform_14(%arg0: i32) -> (i32, i32) {
    %c0_i32 = arith.constant 0 : i32
    %c0_i32_0 = arith.constant 0 : i32
    %c0_i32_1 = arith.constant 0 : i32
    return %c0_i32, %c0_i32_0 : i32, i32
  }
  func.func @transform_15(%arg0: i32) -> (i32, i32, i32) {
    %c0_i32 = arith.constant 0 : i32
    %c0_i32_0 = arith.constant 0 : i32
    %c0_i32_1 = arith.constant 0 : i32
    %c0_i32_2 = arith.constant 0 : i32
    return %c0_i32, %c0_i32_0, %c0_i32_1 : i32, i32, i32
  }
  func.func @transform_16(%arg0: i32) -> (i32, i32) {
    %c0_i32 = arith.constant 0 : i32
    %c0_i32_0 = arith.constant 0 : i32
    %c0_i32_1 = arith.constant 0 : i32
    return %c0_i32, %c0_i32_0 : i32, i32
  }
  func.func @transform_17(%arg0: i32) -> (i32, i32, i32) {
    %c0_i32 = arith.constant 0 : i32
    %c0_i32_0 = arith.constant 0 : i32
    %c0_i32_1 = arith.constant 0 : i32
    return %arg0, %c0_i32, %c0_i32_0 : i32, i32, i32
  }
}

</mosaic_0001>

<llo_original>
// kernel: fwd.1
$region0: #{fwd.1}
  #allocation0 [shape = 'u32[]', space=smem, size = 0x4, offset = 0x4, fixed_abs, tag = 'smem constant byte address 0x4 - core index']
  #allocation1 [shape = 'u32[144,128]{1,0:T(1,128)}', space=vmem, size = 0x12000, scoped, tag = 'internal scratch']
  %s0 = inlined_call_operand.vmem [shape: bf16[2,64,16], index: 0, kind: input, shape index: {}]
  %s1 = inlined_call_operand.vmem [shape: bf16[3,16,8], index: 1, kind: input, shape index: {}]
  %s2 = inlined_call_operand.vmem [shape: bf16[64,192], index: 2, kind: input, shape index: {}]
  %s3 = inlined_call_operand.vmem [shape: bf16[3,8,4], index: 3, kind: input, shape index: {}]
  %s4 = inlined_call_operand.vmem [shape: bf16[64,192], index: 4, kind: input, shape index: {}]
  %s5 = inlined_call_operand.vmem [shape: bf16[3,4,2], index: 5, kind: input, shape index: {}]
  %s6 = inlined_call_operand.vmem [shape: bf16[64,192], index: 6, kind: input, shape index: {}]
  %s7 = inlined_call_operand.vmem [shape: bf16[2,2,1], index: 7, kind: input, shape index: {}]
  %s8 = inlined_call_operand.vmem [shape: bf16[32,128], index: 8, kind: input, shape index: {}]
  %s9 = inlined_call_operand.vmem [shape: bf16[2,1,2], index: 9, kind: input, shape index: {}]
  %s10 = inlined_call_operand.hbm [shape: bf16[64,64], index: 10, kind: input, shape index: {}]
  %s11 = inlined_call_operand.hbm [shape: bf16[4,2,4], index: 11, kind: input, shape index: {}]
  %s12 = inlined_call_operand.vmem [shape: bf16[64,256], index: 12, kind: input, shape index: {}]
  %s13 = inlined_call_operand.hbm [shape: bf16[4,4,8], index: 13, kind: input, shape index: {}]
  %s14 = inlined_call_operand.hbm [shape: bf16[64,256], index: 14, kind: input, shape index: {}]
  %s15 = inlined_call_operand.vmem [shape: bf16[4,8,16], index: 15, kind: input, shape index: {}]
  %s16 = inlined_call_operand.hbm [shape: bf16[64,256], index: 16, kind: input, shape index: {}]
  %s17 = inlined_call_operand.hbm [shape: f32[2,64,16], index: 17, kind: output, shape index: {}]
  %s18 = sld [smem:[#allocation0]]
  $region121: #{fwd.1} parent=0
    _
  %s20 = ssub.s32 1, %s18
  %s21 = scalar_select 0, %s20, %s18
  $region1: #{fwd.1} parent=0
    #allocation2 [shape = 'u8[16384]{0}', space=vmem, size = 0x4000, scoped, tag = 'input window, operand 10, single buffered']
    #allocation3 [shape = 's32[2]{0}', space=sflag, size = 0x8, scoped, tag = 'scoped memory for fwd.1']
    #allocation4 [shape = 's32[2]{0}', space=sflag, size = 0x8, scoped, tag = 'scoped memory for fwd.1']
    #allocation5 [shape = 'u8[2048]{0}', space=vmem, size = 0x800, scoped, tag = 'input window, operand 11, single buffered']
    #allocation6 [shape = 's32[1]{0}', space=sflag, size = 0x4, scoped, tag = 'scoped memory for fwd.1']
    #allocation7 [shape = 'u8[4096]{0}', space=vmem, size = 0x1000, scoped, tag = 'input window, operand 13, single buffered']
    #allocation8 [shape = 'u8[32768]{0}', space=vmem, size = 0x8000, scoped, tag = 'input window, operand 14, single buffered']
    #allocation9 [shape = 's32[1]{0}', space=sflag, size = 0x4, scoped, tag = 'scoped memory for fwd.1']
    #allocation10 [shape = 'u8[32768]{0}', space=vmem, size = 0x8000, scoped, tag = 'input window, operand 16, single buffered']
    #allocation11 [shape = 'u8[65536]{0}', space=vmem, size = 0x10000, scoped, tag = 'output window, operand 0']
    %22 = vsyncpa [#allocation3], 0
    %23 = vsyncpa [#allocation6], 0
    %24 = vsyncpa [#allocation9], 0
    %25 = vsyncpa [#allocation4], 0
    %s26 = scalar_lea.sflag [#allocation4], 1
    %27 = vsyncpa %s26, 0
    loop: start=0, step=1, limit=4
    $region2: #{fwd.1} parent=1 // loop_pre_header
      _
    $region3: #{fwd.1} parent=1 // loop_header
      %s29 = sphi 0, %s33
      %p30 = scmp.ge.s32.totalorder %s29, 4
      %s39 = sphi 0, %s41
      %s42 = sphi 0, %s39
      %s43 = sphi 0, %s42
      %s59 = sphi 0, %s43
      %s63 = sphi 0, %s63
      %s65 = sphi 0, %s63
      %s66 = sphi 0, %s65
      %s80 = sphi 0, %s66
      %s84 = sphi 0, %s84
      %s86 = sphi 0, %s84
      %s87 = sphi 0, %s86
      %s101 = sphi 0, %s87
      %s105 = sphi 0, %s105
      %s107 = sphi 0, %s105
      %s108 = sphi 0, %s107
      %s122 = sphi 0, %s108
      %s126 = sphi 0, %s126
      %s128 = sphi 0, %s126
      %s129 = sphi 0, %s128
      %s143 = sphi 0, %s129
      %s147 = sphi 0, %s147
      %s149 = sphi 0, %s147
      %s150 = sphi 0, %s149
      %s164 = sphi 0, %s150
      %s168 = sphi 0, %s168
      %s170 = sphi 0, %s168
      %s171 = sphi 0, %s170
      %s185 = sphi 0, %s171
      %s189 = sphi 0, %s189
      %s191 = sphi 0, %s189
      %s192 = sphi 0, %s191
      %s206 = sphi 0, %s192
      %s210 = sphi 0, %s210
      %s212 = sphi 0, %s210
      %s213 = sphi 0, %s212
      %s227 = sphi 0, %s213
      %s231 = sphi 0, %s231
      %s233 = sphi 0, %s231
      %s234 = sphi 0, %s233
      %s248 = sphi 0, %s234
      %s252 = sphi 0, %s252
      %s254 = sphi 0, %s252
      %s255 = sphi 0, %s254
      %s269 = sphi 0, %s255
      %s273 = sphi 0, %s273
      %s275 = sphi 0, %s273
      %s276 = sphi 0, %s275
      %s290 = sphi 0, %s276
      %s294 = sphi 0, %s294
      %s296 = sphi 0, %s294
      %s297 = sphi 0, %s296
      %s311 = sphi 0, %s297
      %s315 = sphi 0, %s315
      %s317 = sphi 0, %s315
      %s318 = sphi 0, %s317
      %s332 = sphi 0, %s318
      %s336 = sphi 0, %s336
      %s338 = sphi 0, %s336
      %s339 = sphi 0, %s338
      %s353 = sphi 0, %s339
      %s357 = sphi 0, %s357
      %s359 = sphi 0, %s357
      %s360 = sphi 0, %s359
      %s374 = sphi 0, %s360
      %s378 = sphi 0, %s378
      %s380 = sphi 0, %s378
      %s381 = sphi 0, %s380
      %s395 = sphi 0, %s381
      %s401 = sphi 0, %s403
      %s404 = sphi 0, %s401
      %s405 = sphi 0, %s404
      %s421 = sphi 0, %s405
    $region4: #{fwd.1} parent=1 // loop_header_branch
      %32 = sbr.rel (%p30) target = $region8
    $region5: #{fwd.1} parent=1 // loop_body
      %s34 = ssub.s32 %s29, 1
      %s35 = ssub.s32 %s29, 2
      %s36 = sadd.s32 %s29, 1
      %s37 = ssub.s32 %s29, %s36
      %p38 = scmp.eq.s32.totalorder %s37, 0
      %s40 = sadd.s32 %s39, 1
      %s41 = scalar_select %p38, %s39, %s40
      %p44 = pneg %p38
      %p45 = scmp.eq.s32.totalorder %s29, 1
      %p46 = por %p44, %p45
      %p47 = scmp.ne.s32.totalorder %s39, %s42
      %p48 = scmp.eq.s32.totalorder %s29, 0
      %p49 = por %p47, %p48
      %p50 = scmp.ne.s32.totalorder %s39, %s42
      %p51 = scmp.eq.s32.totalorder %s34, 1
      %p52 = por %p50, %p51
      %p53 = scmp.ne.s32.totalorder %s42, %s43
      %p54 = scmp.eq.s32.totalorder %s34, 0
      %p55 = por %p53, %p54
      %p56 = scmp.ne.s32.totalorder %s42, %s43
      %p57 = scmp.eq.s32.totalorder %s35, 1
      %p58 = por %p56, %p57
      %p60 = scmp.ne.s32.totalorder %s43, %s59
      %p61 = scmp.eq.s32.totalorder %s35, 0
      %p62 = por %p60, %p61
      %s64 = sadd.s32 %s63, 1
      %p67 = scmp.eq.s32.totalorder %s29, 1
      %p68 = scmp.ne.s32.totalorder %s63, %s65
      %p69 = scmp.eq.s32.totalorder %s29, 0
      %p70 = por %p68, %p69
      %p71 = scmp.ne.s32.totalorder %s63, %s65
      %p72 = scmp.eq.s32.totalorder %s34, 1
      %p73 = por %p71, %p72
      %p74 = scmp.ne.s32.totalorder %s65, %s66
      %p75 = scmp.eq.s32.totalorder %s34, 0
      %p76 = por %p74, %p75
      %p77 = scmp.ne.s32.totalorder %s65, %s66
      %p78 = scmp.eq.s32.totalorder %s35, 1
      %p79 = por %p77, %p78
      %p81 = scmp.ne.s32.totalorder %s66, %s80
      %p82 = scmp.eq.s32.totalorder %s35, 0
      %p83 = por %p81, %p82
      %s85 = sadd.s32 %s84, 1
      %p88 = scmp.eq.s32.totalorder %s29, 1
      %p89 = scmp.ne.s32.totalorder %s84, %s86
      %p90 = scmp.eq.s32.totalorder %s29, 0
      %p91 = por %p89, %p90
      %p92 = scmp.ne.s32.totalorder %s84, %s86
      %p93 = scmp.eq.s32.totalorder %s34, 1
      %p94 = por %p92, %p93
      %p95 = scmp.ne.s32.totalorder %s86, %s87
      %p96 = scmp.eq.s32.totalorder %s34, 0
      %p97 = por %p95, %p96
      %p98 = scmp.ne.s32.totalorder %s86, %s87
      %p99 = scmp.eq.s32.totalorder %s35, 1
      %p100 = por %p98, %p99
      %p102 = scmp.ne.s32.totalorder %s87, %s101
      %p103 = scmp.eq.s32.totalorder %s35, 0
      %p104 = por %p102, %p103
      %s106 = sadd.s32 %s105, 1
      %p109 = scmp.eq.s32.totalorder %s29, 1
      %p110 = scmp.ne.s32.totalorder %s105, %s107
      %p111 = scmp.eq.s32.totalorder %s29, 0
      %p112 = por %p110, %p111
      %p113 = scmp.ne.s32.totalorder %s105, %s107
      %p114 = scmp.eq.s32.totalorder %s34, 1
      %p115 = por %p113, %p114
      %p116 = scmp.ne.s32.totalorder %s107, %s108
      %p117 = scmp.eq.s32.totalorder %s34, 0
      %p118 = por %p116, %p117
      %p119 = scmp.ne.s32.totalorder %s107, %s108
      %p120 = scmp.eq.s32.totalorder %s35, 1
      %p121 = por %p119, %p120
      %p123 = scmp.ne.s32.totalorder %s108, %s122
      %p124 = scmp.eq.s32.totalorder %s35, 0
      %p125 = por %p123, %p124
      %s127 = sadd.s32 %s126, 1
      %p130 = scmp.eq.s32.totalorder %s29, 1
      %p131 = scmp.ne.s32.totalorder %s126, %s128
      %p132 = scmp.eq.s32.totalorder %s29, 0
      %p133 = por %p131, %p132
      %p134 = scmp.ne.s32.totalorder %s126, %s128
      %p135 = scmp.eq.s32.totalorder %s34, 1
      %p136 = por %p134, %p135
      %p137 = scmp.ne.s32.totalorder %s128, %s129
      %p138 = scmp.eq.s32.totalorder %s34, 0
      %p139 = por %p137, %p138
      %p140 = scmp.ne.s32.totalorder %s128, %s129
      %p141 = scmp.eq.s32.totalorder %s35, 1
      %p142 = por %p140, %p141
      %p144 = scmp.ne.s32.totalorder %s129, %s143
      %p145 = scmp.eq.s32.totalorder %s35, 0
      %p146 = por %p144, %p145
      %s148 = sadd.s32 %s147, 1
      %p151 = scmp.eq.s32.totalorder %s29, 1
      %p152 = scmp.ne.s32.totalorder %s147, %s149
      %p153 = scmp.eq.s32.totalorder %s29, 0
      %p154 = por %p152, %p153
      %p155 = scmp.ne.s32.totalorder %s147, %s149
      %p156 = scmp.eq.s32.totalorder %s34, 1
      %p157 = por %p155, %p156
      %p158 = scmp.ne.s32.totalorder %s149, %s150
      %p159 = scmp.eq.s32.totalorder %s34, 0
      %p160 = por %p158, %p159
      %p161 = scmp.ne.s32.totalorder %s149, %s150
      %p162 = scmp.eq.s32.totalorder %s35, 1
      %p163 = por %p161, %p162
      %p165 = scmp.ne.s32.totalorder %s150, %s164
      %p166 = scmp.eq.s32.totalorder %s35, 0
      %p167 = por %p165, %p166
      %s169 = sadd.s32 %s168, 1
      %p172 = scmp.eq.s32.totalorder %s29, 1
      %p173 = scmp.ne.s32.totalorder %s168, %s170
      %p174 = scmp.eq.s32.totalorder %s29, 0
      %p175 = por %p173, %p174
      %p176 = scmp.ne.s32.totalorder %s168, %s170
      %p177 = scmp.eq.s32.totalorder %s34, 1
      %p178 = por %p176, %p177
      %p179 = scmp.ne.s32.totalorder %s170, %s171
      %p180 = scmp.eq.s32.totalorder %s34, 0
      %p181 = por %p179, %p180
      %p182 = scmp.ne.s32.totalorder %s170, %s171
      %p183 = scmp.eq.s32.totalorder %s35, 1
      %p184 = por %p182, %p183
      %p186 = scmp.ne.s32.totalorder %s171, %s185
      %p187 = scmp.eq.s32.totalorder %s35, 0
      %p188 = por %p186, %p187
      %s190 = sadd.s32 %s189, 1
      %p193 = scmp.eq.s32.totalorder %s29, 1
      %p194 = scmp.ne.s32.totalorder %s189, %s191
      %p195 = scmp.eq.s32.totalorder %s29, 0
      %p196 = por %p194, %p195
      %p197 = scmp.ne.s32.totalorder %s189, %s191
      %p198 = scmp.eq.s32.totalorder %s34, 1
      %p199 = por %p197, %p198
      %p200 = scmp.ne.s32.totalorder %s191, %s192
      %p201 = scmp.eq.s32.totalorder %s34, 0
      %p202 = por %p200, %p201
      %p203 = scmp.ne.s32.totalorder %s191, %s192
      %p204 = scmp.eq.s32.totalorder %s35, 1
      %p205 = por %p203, %p204
      %p207 = scmp.ne.s32.totalorder %s192, %s206
      %p208 = scmp.eq.s32.totalorder %s35, 0
      %p209 = por %p207, %p208
      %s211 = sadd.s32 %s210, 1
      %p214 = scmp.eq.s32.totalorder %s29, 1
      %p215 = scmp.ne.s32.totalorder %s210, %s212
      %p216 = scmp.eq.s32.totalorder %s29, 0
      %p217 = por %p215, %p216
      %p218 = scmp.ne.s32.totalorder %s210, %s212
      %p219 = scmp.eq.s32.totalorder %s34, 1
      %p220 = por %p218, %p219
      %p221 = scmp.ne.s32.totalorder %s212, %s213
      %p222 = scmp.eq.s32.totalorder %s34, 0
      %p223 = por %p221, %p222
      %p224 = scmp.ne.s32.totalorder %s212, %s213
      %p225 = scmp.eq.s32.totalorder %s35, 1
      %p226 = por %p224, %p225
      %p228 = scmp.ne.s32.totalorder %s213, %s227
      %p229 = scmp.eq.s32.totalorder %s35, 0
      %p230 = por %p228, %p229
      %s232 = sadd.s32 %s231, 1
      %p235 = scmp.eq.s32.totalorder %s29, 1
      %p236 = scmp.ne.s32.totalorder %s231, %s233
      %p237 = scmp.eq.s32.totalorder %s29, 0
      %p238 = por %p236, %p237
      %p239 = scmp.ne.s32.totalorder %s231, %s233
      %p240 = scmp.eq.s32.totalorder %s34, 1
      %p241 = por %p239, %p240
      %p242 = scmp.ne.s32.totalorder %s233, %s234
      %p243 = scmp.eq.s32.totalorder %s34, 0
      %p244 = por %p242, %p243
      %p245 = scmp.ne.s32.totalorder %s233, %s234
      %p246 = scmp.eq.s32.totalorder %s35, 1
      %p247 = por %p245, %p246
      %p249 = scmp.ne.s32.totalorder %s234, %s248
      %p250 = scmp.eq.s32.totalorder %s35, 0
      %p251 = por %p249, %p250
      %s253 = sadd.s32 %s252, 1
      %p256 = scmp.eq.s32.totalorder %s29, 1
      %p257 = scmp.ne.s32.totalorder %s252, %s254
      %p258 = scmp.eq.s32.totalorder %s29, 0
      %p259 = por %p257, %p258
      %p260 = scmp.ne.s32.totalorder %s252, %s254
      %p261 = scmp.eq.s32.totalorder %s34, 1
      %p262 = por %p260, %p261
      %p263 = scmp.ne.s32.totalorder %s254, %s255
      %p264 = scmp.eq.s32.totalorder %s34, 0
      %p265 = por %p263, %p264
      %p266 = scmp.ne.s32.totalorder %s254, %s255
      %p267 = scmp.eq.s32.totalorder %s35, 1
      %p268 = por %p266, %p267
      %p270 = scmp.ne.s32.totalorder %s255, %s269
      %p271 = scmp.eq.s32.totalorder %s35, 0
      %p272 = por %p270, %p271
      %s274 = sadd.s32 %s273, 1
      %p277 = scmp.eq.s32.totalorder %s29, 1
      %p278 = scmp.ne.s32.totalorder %s273, %s275
      %p279 = scmp.eq.s32.totalorder %s29, 0
      %p280 = por %p278, %p279
      %p281 = scmp.ne.s32.totalorder %s273, %s275
      %p282 = scmp.eq.s32.totalorder %s34, 1
      %p283 = por %p281, %p282
      %p284 = scmp.ne.s32.totalorder %s275, %s276
      %p285 = scmp.eq.s32.totalorder %s34, 0
      %p286 = por %p284, %p285
      %p287 = scmp.ne.s32.totalorder %s275, %s276
      %p288 = scmp.eq.s32.totalorder %s35, 1
      %p289 = por %p287, %p288
      %p291 = scmp.ne.s32.totalorder %s276, %s290
      %p292 = scmp.eq.s32.totalorder %s35, 0
      %p293 = por %p291, %p292
      %s295 = sadd.s32 %s294, 1
      %p298 = scmp.eq.s32.totalorder %s29, 1
      %p299 = scmp.ne.s32.totalorder %s294, %s296
      %p300 = scmp.eq.s32.totalorder %s29, 0
      %p301 = por %p299, %p300
      %p302 = scmp.ne.s32.totalorder %s294, %s296
      %p303 = scmp.eq.s32.totalorder %s34, 1
      %p304 = por %p302, %p303
      %p305 = scmp.ne.s32.totalorder %s296, %s297
      %p306 = scmp.eq.s32.totalorder %s34, 0
      %p307 = por %p305, %p306
      %p308 = scmp.ne.s32.totalorder %s296, %s297
      %p309 = scmp.eq.s32.totalorder %s35, 1
      %p310 = por %p308, %p309
      %p312 = scmp.ne.s32.totalorder %s297, %s311
      %p313 = scmp.eq.s32.totalorder %s35, 0
      %p314 = por %p312, %p313
      %s316 = sadd.s32 %s315, 1
      %p319 = scmp.eq.s32.totalorder %s29, 1
      %p320 = scmp.ne.s32.totalorder %s315, %s317
      %p321 = scmp.eq.s32.totalorder %s29, 0
      %p322 = por %p320, %p321
      %p323 = scmp.ne.s32.totalorder %s315, %s317
      %p324 = scmp.eq.s32.totalorder %s34, 1
      %p325 = por %p323, %p324
      %p326 = scmp.ne.s32.totalorder %s317, %s318
      %p327 = scmp.eq.s32.totalorder %s34, 0
      %p328 = por %p326, %p327
      %p329 = scmp.ne.s32.totalorder %s317, %s318
      %p330 = scmp.eq.s32.totalorder %s35, 1
      %p331 = por %p329, %p330
      %p333 = scmp.ne.s32.totalorder %s318, %s332
      %p334 = scmp.eq.s32.totalorder %s35, 0
      %p335 = por %p333, %p334
      %s337 = sadd.s32 %s336, 1
      %p340 = scmp.eq.s32.totalorder %s29, 1
      %p341 = scmp.ne.s32.totalorder %s336, %s338
      %p342 = scmp.eq.s32.totalorder %s29, 0
      %p343 = por %p341, %p342
      %p344 = scmp.ne.s32.totalorder %s336, %s338
      %p345 = scmp.eq.s32.totalorder %s34, 1
      %p346 = por %p344, %p345
      %p347 = scmp.ne.s32.totalorder %s338, %s339
      %p348 = scmp.eq.s32.totalorder %s34, 0
      %p349 = por %p347, %p348
      %p350 = scmp.ne.s32.totalorder %s338, %s339
      %p351 = scmp.eq.s32.totalorder %s35, 1
      %p352 = por %p350, %p351
      %p354 = scmp.ne.s32.totalorder %s339, %s353
      %p355 = scmp.eq.s32.totalorder %s35, 0
      %p356 = por %p354, %p355
      %s358 = sadd.s32 %s357, 1
      %p361 = scmp.eq.s32.totalorder %s29, 1
      %p362 = scmp.ne.s32.totalorder %s357, %s359
      %p363 = scmp.eq.s32.totalorder %s29, 0
      %p364 = por %p362, %p363
      %p365 = scmp.ne.s32.totalorder %s357, %s359
      %p366 = scmp.eq.s32.totalorder %s34, 1
      %p367 = por %p365, %p366
      %p368 = scmp.ne.s32.totalorder %s359, %s360
      %p369 = scmp.eq.s32.totalorder %s34, 0
      %p370 = por %p368, %p369
      %p371 = scmp.ne.s32.totalorder %s359, %s360
      %p372 = scmp.eq.s32.totalorder %s35, 1
      %p373 = por %p371, %p372
      %p375 = scmp.ne.s32.totalorder %s360, %s374
      %p376 = scmp.eq.s32.totalorder %s35, 0
      %p377 = por %p375, %p376
      %s379 = sadd.s32 %s378, 1
      %p382 = scmp.eq.s32.totalorder %s29, 1
      %p383 = scmp.ne.s32.totalorder %s378, %s380
      %p384 = scmp.eq.s32.totalorder %s29, 0
      %p385 = por %p383, %p384
      %p386 = scmp.ne.s32.totalorder %s378, %s380
      %p387 = scmp.eq.s32.totalorder %s34, 1
      %p388 = por %p386, %p387
      %p389 = scmp.ne.s32.totalorder %s380, %s381
      %p390 = scmp.eq.s32.totalorder %s34, 0
      %p391 = por %p389, %p390
      %p392 = scmp.ne.s32.totalorder %s380, %s381
      %p393 = scmp.eq.s32.totalorder %s35, 1
      %p394 = por %p392, %p393
      %p396 = scmp.ne.s32.totalorder %s381, %s395
      %p397 = scmp.eq.s32.totalorder %s35, 0
      %p398 = por %p396, %p397
      %s399 = ssub.s32 %s29, %s36
      %p400 = scmp.eq.s32.totalorder %s399, 0
      %s402 = sadd.s32 %s401, 1
      %s403 = scalar_select %p400, %s401, %s402
      %p406 = pneg %p400
      %p407 = scmp.eq.s32.totalorder %s29, 1
      %p408 = por %p406, %p407
      %p409 = scmp.ne.s32.totalorder %s401, %s404
      %p410 = scmp.eq.s32.totalorder %s29, 0
      %p411 = por %p409, %p410
      %p412 = scmp.ne.s32.totalorder %s401, %s404
      %p413 = scmp.eq.s32.totalorder %s34, 1
      %p414 = por %p412, %p413
      %p415 = scmp.ne.s32.totalorder %s404, %s405
      %p416 = scmp.eq.s32.totalorder %s34, 0
      %p417 = por %p415, %p416
      %p418 = scmp.ne.s32.totalorder %s404, %s405
      %p419 = scmp.eq.s32.totalorder %s35, 1
      %p420 = por %p418, %p419
      %p422 = scmp.ne.s32.totalorder %s405, %s421
      %p423 = scmp.eq.s32.totalorder %s35, 0
      %p424 = por %p422, %p423
      %p425 = scmp.le.s32.totalorder 1, %s29
      %p426 = scmp.lt.s32.totalorder %s29, 3
      %p427 = pnand %p425, %p426
      %p428 = pneg %p427
      // Predicated region
      $region9: #{fwd.1} parent=5 // pred_check
        _
      $region10: #{fwd.1} parent=5 // pred_check_branch
        %430 = sbr.rel (%p427) target = $region12
      $region11: #{fwd.1} parent=5 // pred_region
        %s431 = ssub.s32 %s29, 1
        // Predicated region
        $region13: #{fwd.1} parent=11 // pred_check
          %p432 = pneg %p76
        $region14: #{fwd.1} parent=11 // pred_check_branch
          %434 = sbr.rel (%p432) target = $region16
        $region15: #{fwd.1} parent=11 // pred_region
          _
        $region16: #{fwd.1} parent=11 // pred_fallthru
          _
        // Predicated region
        $region17: #{fwd.1} parent=11 // pred_check
          %p435 = pneg %p97
        $region18: #{fwd.1} parent=11 // pred_check_branch
          %437 = sbr.rel (%p435) target = $region20
        $region19: #{fwd.1} parent=11 // pred_region
          _
        $region20: #{fwd.1} parent=11 // pred_fallthru
          _
        // Predicated region
        $region21: #{fwd.1} parent=11 // pred_check
          %p438 = pneg %p118
        $region22: #{fwd.1} parent=11 // pred_check_branch
          %440 = sbr.rel (%p438) target = $region24
        $region23: #{fwd.1} parent=11 // pred_region
          _
        $region24: #{fwd.1} parent=11 // pred_fallthru
          _
        // Predicated region
        $region25: #{fwd.1} parent=11 // pred_check
          %p441 = pneg %p139
        $region26: #{fwd.1} parent=11 // pred_check_branch
          %443 = sbr.rel (%p441) target = $region28
        $region27: #{fwd.1} parent=11 // pred_region
          _
        $region28: #{fwd.1} parent=11 // pred_fallthru
          _
        // Predicated region
        $region29: #{fwd.1} parent=11 // pred_check
          %p444 = pneg %p160
        $region30: #{fwd.1} parent=11 // pred_check_branch
          %446 = sbr.rel (%p444) target = $region32
        $region31: #{fwd.1} parent=11 // pred_region
          _
        $region32: #{fwd.1} parent=11 // pred_fallthru
          _
        // Predicated region
        $region33: #{fwd.1} parent=11 // pred_check
          %p447 = pneg %p181
        $region34: #{fwd.1} parent=11 // pred_check_branch
          %449 = sbr.rel (%p447) target = $region36
        $region35: #{fwd.1} parent=11 // pred_region
          _
        $region36: #{fwd.1} parent=11 // pred_fallthru
          _
        // Predicated region
        $region37: #{fwd.1} parent=11 // pred_check
          %p450 = pneg %p202
        $region38: #{fwd.1} parent=11 // pred_check_branch
          %452 = sbr.rel (%p450) target = $region40
        $region39: #{fwd.1} parent=11 // pred_region
          _
        $region40: #{fwd.1} parent=11 // pred_fallthru
          _
        // Predicated region
        $region41: #{fwd.1} parent=11 // pred_check
          %p453 = pneg %p223
        $region42: #{fwd.1} parent=11 // pred_check_branch
          %455 = sbr.rel (%p453) target = $region44
        $region43: #{fwd.1} parent=11 // pred_region
          _
        $region44: #{fwd.1} parent=11 // pred_fallthru
          _
        // Predicated region
        $region45: #{fwd.1} parent=11 // pred_check
          %p456 = pneg %p244
        $region46: #{fwd.1} parent=11 // pred_check_branch
          %458 = sbr.rel (%p456) target = $region48
        $region47: #{fwd.1} parent=11 // pred_region
          _
        $region48: #{fwd.1} parent=11 // pred_fallthru
          _
        // Predicated region
        $region49: #{fwd.1} parent=11 // pred_check
          %p459 = pneg %p265
        $region50: #{fwd.1} parent=11 // pred_check_branch
          %461 = sbr.rel (%p459) target = $region52
        $region51: #{fwd.1} parent=11 // pred_region
          %s463 = ssub.s32 512, 512
          %464 = vsyncadd [#allocation3], %s463
          %s465 = sshll.u32 [#allocation2], 4
          %s466 = int_to_ptr.vmem [resolvable:$true] %s465
          %471 = dma.hbm_to_vmem [thread:$0]  %s10, 512, %s466, [#allocation3], 64, 64, 4
        $region52: #{fwd.1} parent=11 // pred_fallthru
          _
        // Predicated region
        $region53: #{fwd.1} parent=11 // pred_check
          %p472 = pneg %p286
        $region54: #{fwd.1} parent=11 // pred_check_branch
          %474 = sbr.rel (%p472) target = $region56
        $region55: #{fwd.1} parent=11 // pred_region
          %s476 = ssub.s32 64, 64
          %477 = vsyncadd [#allocation6], %s476
          %s478 = sshll.u32 [#allocation5], 4
          %s479 = int_to_ptr.vmem [resolvable:$true] %s478
          %484 = dma.hbm_to_vmem [thread:$0]  %s11, 64, %s479, [#allocation6], 16, 16, 1
        $region56: #{fwd.1} parent=11 // pred_fallthru
          _
        // Predicated region
        $region57: #{fwd.1} parent=11 // pred_check
          %p485 = pneg %p307
        $region58: #{fwd.1} parent=11 // pred_check_branch
          %487 = sbr.rel (%p485) target = $region60
        $region59: #{fwd.1} parent=11 // pred_region
          _
        $region60: #{fwd.1} parent=11 // pred_fallthru
          _
        // Predicated region
        $region61: #{fwd.1} parent=11 // pred_check
          %p488 = pneg %p328
        $region62: #{fwd.1} parent=11 // pred_check_branch
          %490 = sbr.rel (%p488) target = $region64
        $region63: #{fwd.1} parent=11 // pred_region
          %s492 = ssub.s32 128, 128
          %493 = vsyncadd [#allocation6], %s492
          %s494 = sshll.u32 [#allocation7], 4
          %s495 = int_to_ptr.vmem [resolvable:$true] %s494
          %500 = dma.hbm_to_vmem [thread:$0]  %s13, 128, %s495, [#allocation6], 32, 32, 2
        $region64: #{fwd.1} parent=11 // pred_fallthru
          _
        // Predicated region
        $region65: #{fwd.1} parent=11 // pred_check
          %p501 = pneg %p349
        $region66: #{fwd.1} parent=11 // pred_check_branch
          %503 = sbr.rel (%p501) target = $region68
        $region67: #{fwd.1} parent=11 // pred_region
          %s505 = ssub.s32 1024, 1024
          %506 = vsyncadd [#allocation9], %s505
          %s507 = sshll.u32 [#allocation8], 4
          %s508 = int_to_ptr.vmem [resolvable:$true] %s507
          %513 = dma.hbm_to_vmem [thread:$0]  %s14, 1024, %s508, [#allocation9], 128, 128, 8
        $region68: #{fwd.1} parent=11 // pred_fallthru
          _
        // Predicated region
        $region69: #{fwd.1} parent=11 // pred_check
          %p514 = pneg %p370
        $region70: #{fwd.1} parent=11 // pred_check_branch
          %516 = sbr.rel (%p514) target = $region72
        $region71: #{fwd.1} parent=11 // pred_region
          _
        $region72: #{fwd.1} parent=11 // pred_fallthru
          _
        // Predicated region
        $region73: #{fwd.1} parent=11 // pred_check
          %p517 = pneg %p391
        $region74: #{fwd.1} parent=11 // pred_check_branch
          %519 = sbr.rel (%p517) target = $region76
        $region75: #{fwd.1} parent=11 // pred_region
          %s521 = ssub.s32 1024, 1024
          %522 = vsyncadd [#allocation9], %s521
          %s523 = sshll.u32 [#allocation10], 4
          %s524 = int_to_ptr.vmem [resolvable:$true] %s523
          %529 = dma.hbm_to_vmem [thread:$0]  %s16, 1024, %s524, [#allocation9], 128, 128, 8
        $region76: #{fwd.1} parent=11 // pred_fallthru
          _
      $region12: #{fwd.1} parent=5 // pred_fallthru
        _
      %p530 = scmp.lt.s32.totalorder %s29, 2
      // Predicated region
      $region77: #{fwd.1} parent=5 // pred_check
        %p531 = pneg %p530
      $region78: #{fwd.1} parent=5 // pred_check_branch
        %533 = sbr.rel (%p531) target = $region80
      $region79: #{fwd.1} parent=5 // pred_region
        // Predicated region
        $region81: #{fwd.1} parent=79 // pred_check
          %p534 = pneg %p49
        $region82: #{fwd.1} parent=79 // pred_check_branch
          %536 = sbr.rel (%p534) target = $region84
        $region83: #{fwd.1} parent=79 // pred_region
          %p537 = scmp.lt.s32.totalorder %s29, 1
          %s538 = scalar_select %p537, %s29, 1
          %s539 = smul.addr %s538, 8
          %s540 = smul.addr %s539, 4
          %s541 = scalar_lea.vmem %s0, %s540
        $region84: #{fwd.1} parent=79 // pred_fallthru
          _
      $region80: #{fwd.1} parent=5 // pred_fallthru
        _
      %p542 = scmp.le.s32.totalorder 1, %s29
      %p543 = scmp.lt.s32.totalorder %s29, 3
      %p544 = pnand %p542, %p543
      %p545 = pneg %p544
      // Predicated region
      $region85: #{fwd.1} parent=5 // pred_check
        _
      $region86: #{fwd.1} parent=5 // pred_check_branch
        %547 = sbr.rel (%p544) target = $region88
      $region87: #{fwd.1} parent=5 // pred_region
        %s548 = ssub.s32 %s29, 1
        // Predicated region
        $region89: #{fwd.1} parent=87 // pred_check
          %p549 = pneg %p265
        $region90: #{fwd.1} parent=87 // pred_check_branch
          %551 = sbr.rel (%p549) target = $region92
        $region91: #{fwd.1} parent=87 // pred_region
          %552 = dma.done [#allocation3], 512
        $region92: #{fwd.1} parent=87 // pred_fallthru
          _
        // Predicated region
        $region93: #{fwd.1} parent=87 // pred_check
          %p553 = pneg %p286
        $region94: #{fwd.1} parent=87 // pred_check_branch
          %555 = sbr.rel (%p553) target = $region96
        $region95: #{fwd.1} parent=87 // pred_region
          %556 = dma.done [#allocation6], 64
        $region96: #{fwd.1} parent=87 // pred_fallthru
          _
        // Predicated region
        $region97: #{fwd.1} parent=87 // pred_check
          %p557 = pneg %p328
        $region98: #{fwd.1} parent=87 // pred_check_branch
          %559 = sbr.rel (%p557) target = $region100
        $region99: #{fwd.1} parent=87 // pred_region
          %560 = dma.done [#allocation6], 128
        $region100: #{fwd.1} parent=87 // pred_fallthru
          _
        // Predicated region
        $region101: #{fwd.1} parent=87 // pred_check
          %p561 = pneg %p349
        $region102: #{fwd.1} parent=87 // pred_check_branch
          %563 = sbr.rel (%p561) target = $region104
        $region103: #{fwd.1} parent=87 // pred_region
          %564 = dma.done [#allocation9], 1024
        $region104: #{fwd.1} parent=87 // pred_fallthru
          _
        // Predicated region
        $region105: #{fwd.1} parent=87 // pred_check
          %p565 = pneg %p391
        $region106: #{fwd.1} parent=87 // pred_check_branch
          %567 = sbr.rel (%p565) target = $region108
        $region107: #{fwd.1} parent=87 // pred_region
          %568 = dma.done [#allocation9], 1024
        $region108: #{fwd.1} parent=87 // pred_fallthru
          _
        %p569 = scmp.lt.s32.totalorder %s34, 1
        %s570 = scalar_select %p569, %s34, 1
        %s571 = smul.addr %s570, 8
        %s572 = smul.addr %s571, 4
        %s573 = scalar_lea.vmem %s0, %s572
        %p574 = pneg %p55
        %p575 = pneg %p52
        %p576 = pneg %p76
        %p577 = pneg %p73
        %p578 = pneg %p97
        %p579 = pneg %p94
        %p580 = pneg %p118
        %p581 = pneg %p115
        %p582 = pneg %p139
        %p583 = pneg %p136
        %p584 = pneg %p160
        %p585 = pneg %p157
        %p586 = pneg %p181
        %p587 = pneg %p178
        %p588 = pneg %p202
        %p589 = pneg %p199
        %p590 = pneg %p223
        %p591 = pneg %p220
        %p592 = pneg %p244
        %p593 = pneg %p241
        %p594 = pneg %p265
        %p595 = pneg %p262
        %p596 = pneg %p286
        %p597 = pneg %p283
        %p598 = pneg %p307
        %p599 = pneg %p304
        %p600 = pneg %p328
        %p601 = pneg %p325
        %p602 = pneg %p349
        %p603 = pneg %p346
        %p604 = pneg %p370
        %p605 = pneg %p367
        %p606 = pneg %p391
        %p607 = pneg %p388
        %p608 = pneg %p417
        %p609 = pneg %p414
        %s610 = sand.u32 %s404, 1
        %s611 = scalar_lea.sflag [#allocation4], %s610
        %s612 = sand.u32 %s404, 1
        %s613 = smul.addr %s612, 64
        %s614 = scalar_lea.vmem [#allocation11], %s613
        %p615 = scmp.lt.s32.totalorder %s34, 1
        %s616 = scalar_select %p615, %s34, 1
        %s617 = smul.addr %s616, 8
        %s618 = smul.addr %s617, 4
        %s619 = scalar_lea.vmem %s0, %s618
        %v621 = vld [vmem:[%s619] sm:$0xf]
        %v622 = vld [vmem:[%s619 + $0x4] sm:$0xf]
        %v623 = vld [vmem:[%s619 + $0x8] sm:$0xf]
        %v624 = vld [vmem:[%s619 + $0xc] sm:$0xf]
        %v625 = vld [vmem:[%s619 + $0x10] sm:$0xf]
        %v626 = vld [vmem:[%s619 + $0x14] sm:$0xf]
        %v627 = vld [vmem:[%s619 + $0x18] sm:$0xf]
        %v628 = vld [vmem:[%s619 + $0x1c] sm:$0xf]
        %v629 = vld [vmem:[%s1] sm:$0xf]
        %v630 = vld [vmem:[%s1 + $0x4] sm:$0xf]
        %v639 = vunpack.c.l.b16 %v621
        %v640 = vunpack.c.l.b16 %v622
        %v641 = vunpack.c.l.b16 %v623
        %v642 = vunpack.c.l.b16 %v624
        %v643 = vunpack.c.l.b16 %v625
        %v644 = vunpack.c.l.b16 %v626
        %v645 = vunpack.c.l.b16 %v627
        %v646 = vunpack.c.l.b16 %v628
        %v647 = vpack.c.b16 %v640, %v639
        %v648 = vpack.c.b16 %v642, %v641
        %v649 = vpack.c.b16 %v644, %v643
        %v650 = vpack.c.b16 %v646, %v645
        %v653 = vunpack.c.l.b16 %v629
        %v654 = vunpack.c.l.b16 %v630
        %v655 = vpack.c.b16 %v654, %v653
        %vm657 = vcmask 130048
        %v659 = vsel %vm657, %v647, 0
        %v662 = vsel %vm657, %v648, 0
        %v665 = vsel %vm657, %v649, 0
        %v668 = vsel %vm657, %v650, 0
        %670 = vmatprep.subr.bf16.mxu0 0
        %671 = vmatpush1.bf16.msra.mxu0 0
        %672 = vmatprep.subr.bf16.mxu0 0
        %673 = vmatpush1.bf16.msra.mxu0 0
        %674 = vmatprep.subr.bf16.mxu0 0
        %675 = vmatpush1.bf16.msra.mxu0 0
        %676 = vmatprep.subr.bf16.mxu0 0
        %677 = vmatpush1.bf16.msra.mxu0 0
        %678 = vmatprep.subr.bf16.mxu0 0
        %679 = vmatpush1.bf16.msra.mxu0 0
        %680 = vmatprep.subr.bf16.mxu0 0
        %681 = vmatpush1.bf16.msra.mxu0 0
        %682 = vmatprep.subr.bf16.mxu0 0
        %683 = vmatpush1.bf16.msra.mxu0 0
        %684 = vmatprep.subr.bf16.mxu0 0
        %685 = vmatpush1.bf16.msra.mxu0 %v655
        %686 = vmatprep.subr.bf16.mxu0 0
        %687 = vmatpush2.bf16.msra.mxu0 0
        %688 = vmatprep.subr.bf16.mxu0 0
        %689 = vmatpush2.bf16.msra.mxu0 0
        %690 = vmatprep.subr.bf16.mxu0 0
        %691 = vmatpush2.bf16.msra.mxu0 0
        %692 = vmatprep.subr.bf16.mxu0 0
        %693 = vmatpush2.bf16.msra.mxu0 0
        %694 = vmatprep.subr.bf16.mxu0 0
        %695 = vmatpush2.bf16.msra.mxu0 0
        %696 = vmatprep.subr.bf16.mxu0 0
        %697 = vmatpush2.bf16.msra.mxu0 0
        %698 = vmatprep.subr.bf16.mxu0 0
        %699 = vmatpush2.bf16.msra.mxu0 0
        %700 = vmatprep.subr.bf16.mxu0 0
        %701 = vmatpush2.bf16.msra.mxu0 0
        %702 = vmatprep.mubr.bf16.mxu0 0
        %703 = vmatmul.mubr.bf16.gmra.mxu0 %v659
        %v704 = vpop.f32.mrf.mxu0
        %v705 = vadd.f32 0.0, %v704
        %v706 = vpop.f32.mrf.mxu0
        %v707 = vpop.f32.mrf.mxu0
        %v708 = vadd.f32 0.0, %v707
        %v709 = vpop.f32.mrf.mxu0
        %710 = vmatprep.mubr.bf16.mxu0 0
        %711 = vmatmul.mubr.bf16.gmra.mxu0 %v662
        %v712 = vpop.f32.mrf.mxu0
        %v713 = vadd.f32 0.0, %v712
        %v714 = vpop.f32.mrf.mxu0
        %v715 = vpop.f32.mrf.mxu0
        %v716 = vadd.f32 0.0, %v715
        %v717 = vpop.f32.mrf.mxu0
        %718 = vmatprep.mubr.bf16.mxu0 0
        %719 = vmatmul.mubr.bf16.gmra.mxu0 %v665
        %v720 = vpop.f32.mrf.mxu0
        %v721 = vadd.f32 0.0, %v720
        %v722 = vpop.f32.mrf.mxu0
        %v723 = vpop.f32.mrf.mxu0
        %v724 = vadd.f32 0.0, %v723
        %v725 = vpop.f32.mrf.mxu0
        %726 = vmatprep.mubr.bf16.mxu0 0
        %727 = vmatmul.mubr.bf16.gmra.mxu0 %v668
        %v728 = vpop.f32.mrf.mxu0
        %v729 = vadd.f32 0.0, %v728
        %v730 = vpop.f32.mrf.mxu0
        %v731 = vpop.f32.mrf.mxu0
        %v732 = vadd.f32 0.0, %v731
        %v733 = vpop.f32.mrf.mxu0
        %734 = vdwg.mxu0
        %v735 = vpack.c.bf16 %v708, %v705
        %v736 = vpack.c.bf16 %v716, %v713
        %v737 = vpack.c.bf16 %v724, %v721
        %v738 = vpack.c.bf16 %v732, %v729
        %s739 = scalar_lea.vmem %s1, 8
        %v740 = vld [vmem:[%s739] sm:$0xf]
        %v741 = vld [vmem:[%s739 + $0x4] sm:$0xf]
        %v744 = vunpack.c.l.b16 %v740
        %v745 = vunpack.c.l.b16 %v741
        %v746 = vpack.c.b16 %v745, %v744
        %748 = vmatprep.subr.bf16.mxu0 0
        %749 = vmatpush1.bf16.msra.mxu0 0
        %750 = vmatprep.subr.bf16.mxu0 0
        %751 = vmatpush1.bf16.msra.mxu0 0
        %752 = vmatprep.subr.bf16.mxu0 0
        %753 = vmatpush1.bf16.msra.mxu0 0
        %754 = vmatprep.subr.bf16.mxu0 0
        %755 = vmatpush1.bf16.msra.mxu0 0
        %756 = vmatprep.subr.bf16.mxu0 0
        %757 = vmatpush1.bf16.msra.mxu0 0
        %758 = vmatprep.subr.bf16.mxu0 0
        %759 = vmatpush1.bf16.msra.mxu0 0
        %760 = vmatprep.subr.bf16.mxu0 0
        %761 = vmatpush1.bf16.msra.mxu0 0
        %762 = vmatprep.subr.bf16.mxu0 0
        %763 = vmatpush1.bf16.msra.mxu0 %v746
        %764 = vmatprep.subr.bf16.mxu0 0
        %765 = vmatpush2.bf16.msra.mxu0 0
        %766 = vmatprep.subr.bf16.mxu0 0
        %767 = vmatpush2.bf16.msra.mxu0 0
        %768 = vmatprep.subr.bf16.mxu0 0
        %769 = vmatpush2.bf16.msra.mxu0 0
        %770 = vmatprep.subr.bf16.mxu0 0
        %771 = vmatpush2.bf16.msra.mxu0 0
        %772 = vmatprep.subr.bf16.mxu0 0
        %773 = vmatpush2.bf16.msra.mxu0 0
        %774 = vmatprep.subr.bf16.mxu0 0
        %775 = vmatpush2.bf16.msra.mxu0 0
        %776 = vmatprep.subr.bf16.mxu0 0
        %777 = vmatpush2.bf16.msra.mxu0 0
        %778 = vmatprep.subr.bf16.mxu0 0
        %779 = vmatpush2.bf16.msra.mxu0 0
        %780 = vmatprep.mubr.bf16.mxu0 0
        %781 = vmatmul.mubr.bf16.gmra.mxu0 %v659
        %v782 = vpop.f32.mrf.mxu0
        %v783 = vadd.f32 0.0, %v782
        %v784 = vpop.f32.mrf.mxu0
        %v785 = vpop.f32.mrf.mxu0
        %v786 = vadd.f32 0.0, %v785
        %v787 = vpop.f32.mrf.mxu0
        %788 = vmatprep.mubr.bf16.mxu0 0
        %789 = vmatmul.mubr.bf16.gmra.mxu0 %v662
        %v790 = vpop.f32.mrf.mxu0
        %v791 = vadd.f32 0.0, %v790
        %v792 = vpop.f32.mrf.mxu0
        %v793 = vpop.f32.mrf.mxu0
        %v794 = vadd.f32 0.0, %v793
        %v795 = vpop.f32.mrf.mxu0
        %796 = vmatprep.mubr.bf16.mxu0 0
        %797 = vmatmul.mubr.bf16.gmra.mxu0 %v665
        %v798 = vpop.f32.mrf.mxu0
        %v799 = vadd.f32 0.0, %v798
        %v800 = vpop.f32.mrf.mxu0
        %v801 = vpop.f32.mrf.mxu0
        %v802 = vadd.f32 0.0, %v801
        %v803 = vpop.f32.mrf.mxu0
        %804 = vmatprep.mubr.bf16.mxu0 0
        %805 = vmatmul.mubr.bf16.gmra.mxu0 %v668
        %v806 = vpop.f32.mrf.mxu0
        %v807 = vadd.f32 0.0, %v806
        %v808 = vpop.f32.mrf.mxu0
        %v809 = vpop.f32.mrf.mxu0
        %v810 = vadd.f32 0.0, %v809
        %v811 = vpop.f32.mrf.mxu0
        %812 = vdwg.mxu0
        %v813 = vpack.c.bf16 %v786, %v783
        %v814 = vpack.c.bf16 %v794, %v791
        %v815 = vpack.c.bf16 %v802, %v799
        %v816 = vpack.c.bf16 %v810, %v807
        %s817 = scalar_lea.vmem %s1, 16
        %v818 = vld [vmem:[%s817] sm:$0xf]
        %v819 = vld [vmem:[%s817 + $0x4] sm:$0xf]
        %v822 = vunpack.c.l.b16 %v818
        %v823 = vunpack.c.l.b16 %v819
        %v824 = vpack.c.b16 %v823, %v822
        %826 = vmatprep.subr.bf16.mxu0 0
        %827 = vmatpush1.bf16.msra.mxu0 0
        %828 = vmatprep.subr.bf16.mxu0 0
        %829 = vmatpush1.bf16.msra.mxu0 0
        %830 = vmatprep.subr.bf16.mxu0 0
        %831 = vmatpush1.bf16.msra.mxu0 0
        %832 = vmatprep.subr.bf16.mxu0 0
        %833 = vmatpush1.bf16.msra.mxu0 0
        %834 = vmatprep.subr.bf16.mxu0 0
        %835 = vmatpush1.bf16.msra.mxu0 0
        %836 = vmatprep.subr.bf16.mxu0 0
        %837 = vmatpush1.bf16.msra.mxu0 0
        %838 = vmatprep.subr.bf16.mxu0 0
        %839 = vmatpush1.bf16.msra.mxu0 0
        %840 = vmatprep.subr.bf16.mxu0 0
        %841 = vmatpush1.bf16.msra.mxu0 %v824
        %842 = vmatprep.subr.bf16.mxu0 0
        %843 = vmatpush2.bf16.msra.mxu0 0
        %844 = vmatprep.subr.bf16.mxu0 0
        %845 = vmatpush2.bf16.msra.mxu0 0
        %846 = vmatprep.subr.bf16.mxu0 0
        %847 = vmatpush2.bf16.msra.mxu0 0
        %848 = vmatprep.subr.bf16.mxu0 0
        %849 = vmatpush2.bf16.msra.mxu0 0
        %850 = vmatprep.subr.bf16.mxu0 0
        %851 = vmatpush2.bf16.msra.mxu0 0
        %852 = vmatprep.subr.bf16.mxu0 0
        %853 = vmatpush2.bf16.msra.mxu0 0
        %854 = vmatprep.subr.bf16.mxu0 0
        %855 = vmatpush2.bf16.msra.mxu0 0
        %856 = vmatprep.subr.bf16.mxu0 0
        %857 = vmatpush2.bf16.msra.mxu0 0
        %858 = vmatprep.mubr.bf16.mxu0 0
        %859 = vmatmul.mubr.bf16.gmra.mxu0 %v659
        %v860 = vpop.f32.mrf.mxu0
        %v861 = vadd.f32 0.0, %v860
        %v862 = vpop.f32.mrf.mxu0
        %v863 = vpop.f32.mrf.mxu0
        %v864 = vadd.f32 0.0, %v863
        %v865 = vpop.f32.mrf.mxu0
        %866 = vmatprep.mubr.bf16.mxu0 0
        %867 = vmatmul.mubr.bf16.gmra.mxu0 %v662
        %v868 = vpop.f32.mrf.mxu0
        %v869 = vadd.f32 0.0, %v868
        %v870 = vpop.f32.mrf.mxu0
        %v871 = vpop.f32.mrf.mxu0
        %v872 = vadd.f32 0.0, %v871
        %v873 = vpop.f32.mrf.mxu0
        %874 = vmatprep.mubr.bf16.mxu0 0
        %875 = vmatmul.mubr.bf16.gmra.mxu0 %v665
        %v876 = vpop.f32.mrf.mxu0
        %v877 = vadd.f32 0.0, %v876
        %v878 = vpop.f32.mrf.mxu0
        %v879 = vpop.f32.mrf.mxu0
        %v880 = vadd.f32 0.0, %v879
        %v881 = vpop.f32.mrf.mxu0
        %882 = vmatprep.mubr.bf16.mxu0 0
        %883 = vmatmul.mubr.bf16.gmra.mxu0 %v668
        %v884 = vpop.f32.mrf.mxu0
        %v885 = vadd.f32 0.0, %v884
        %v886 = vpop.f32.mrf.mxu0
        %v887 = vpop.f32.mrf.mxu0
        %v888 = vadd.f32 0.0, %v887
        %v889 = vpop.f32.mrf.mxu0
        %890 = vdwg.mxu0
        %v891 = vpack.c.bf16 %v864, %v861
        %v892 = vpack.c.bf16 %v872, %v869
        %v893 = vpack.c.bf16 %v880, %v877
        %v894 = vpack.c.bf16 %v888, %v885
        %v895 = vld [vmem:[%s2] sm:$0xff]
        %v896 = vld [vmem:[%s2 + $0x8] sm:$0xff]
        %v897 = vld [vmem:[%s2 + $0x10] sm:$0xff]
        %v898 = vld [vmem:[%s2 + $0x18] sm:$0xff]
        %v899 = vld [vmem:[%s2 + $0x20] sm:$0xff]
        %v900 = vld [vmem:[%s2 + $0x28] sm:$0xff]
        %v901 = vld [vmem:[%s2 + $0x30] sm:$0xff]
        %v902 = vld [vmem:[%s2 + $0x38] sm:$0xff]
        %v911 = vunpack.c.l.b16 %v895
        %v912 = vunpack.c.h.b16 %v895
        %v913 = vunpack.c.l.b16 %v896
        %v914 = vunpack.c.h.b16 %v896
        %v915 = vunpack.c.l.b16 %v897
        %v916 = vunpack.c.h.b16 %v897
        %v917 = vunpack.c.l.b16 %v898
        %v918 = vunpack.c.h.b16 %v898
        %v919 = vunpack.c.l.b16 %v899
        %v920 = vunpack.c.h.b16 %v899
        %v921 = vunpack.c.l.b16 %v900
        %v922 = vunpack.c.h.b16 %v900
        %v923 = vunpack.c.l.b16 %v901
        %v924 = vunpack.c.h.b16 %v901
        %v925 = vunpack.c.l.b16 %v902
        %v926 = vunpack.c.h.b16 %v902
        %v927 = vpack.c.b16 %v913, %v911
        %v928 = vpack.c.b16 %v914, %v912
        %v929 = vpack.c.b16 %v917, %v915
        %v930 = vpack.c.b16 %v918, %v916
        %v931 = vpack.c.b16 %v921, %v919
        %v932 = vpack.c.b16 %v922, %v920
        %v933 = vpack.c.b16 %v925, %v923
        %v934 = vpack.c.b16 %v926, %v924
        %vm939 = vcmask 523264
        %v941 = vsel %vm939, %v928, 0
        %v944 = vsel %vm939, %v930, 0
        %v947 = vsel %vm939, %v932, 0
        %v950 = vsel %vm939, %v934, 0
        %952 = vmatprep.subr.bf16.mxu0 0
        %953 = vmatpush1.bf16.msra.mxu0 %v816
        %954 = vmatprep.subr.bf16.mxu0 0
        %955 = vmatpush1.bf16.msra.mxu0 %v815
        %956 = vmatprep.subr.bf16.mxu0 0
        %957 = vmatpush1.bf16.msra.mxu0 %v814
        %958 = vmatprep.subr.bf16.mxu0 0
        %959 = vmatpush1.bf16.msra.mxu0 %v813
        %960 = vmatprep.subr.bf16.mxu0 0
        %961 = vmatpush1.bf16.msra.mxu0 %v738
        %962 = vmatprep.subr.bf16.mxu0 0
        %963 = vmatpush1.bf16.msra.mxu0 %v737
        %964 = vmatprep.subr.bf16.mxu0 0
        %965 = vmatpush1.bf16.msra.mxu0 %v736
        %966 = vmatprep.subr.bf16.mxu0 0
        %967 = vmatpush1.bf16.msra.mxu0 %v735
        %968 = vmatprep.subr.bf16.mxu0 0
        %969 = vmatpush2.bf16.msra.mxu0 0
        %970 = vmatprep.subr.bf16.mxu0 0
        %971 = vmatpush2.bf16.msra.mxu0 0
        %972 = vmatprep.subr.bf16.mxu0 0
        %973 = vmatpush2.bf16.msra.mxu0 0
        %974 = vmatprep.subr.bf16.mxu0 0
        %975 = vmatpush2.bf16.msra.mxu0 0
        %976 = vmatprep.subr.bf16.mxu0 0
        %977 = vmatpush2.bf16.msra.mxu0 %v894
        %978 = vmatprep.subr.bf16.mxu0 0
        %979 = vmatpush2.bf16.msra.mxu0 %v893
        %980 = vmatprep.subr.bf16.mxu0 0
        %981 = vmatpush2.bf16.msra.mxu0 %v892
        %982 = vmatprep.subr.bf16.mxu0 0
        %983 = vmatpush2.bf16.msra.mxu0 %v891
        %984 = vmatprep.mubr.bf16.mxu0 %v941
        %985 = vmatmul.mubr.bf16.gmra.mxu0 %v927
        %v986 = vpop.f32.mrf.mxu0
        %v987 = vadd.f32 0.0, %v986
        %v988 = vpop.f32.mrf.mxu0
        %v989 = vpop.f32.mrf.mxu0
        %v990 = vadd.f32 0.0, %v989
        %v991 = vpop.f32.mrf.mxu0
        %992 = vmatprep.mubr.bf16.mxu0 %v944
        %993 = vmatmul.mubr.bf16.gmra.mxu0 %v929
        %v994 = vpop.f32.mrf.mxu0
        %v995 = vadd.f32 0.0, %v994
        %v996 = vpop.f32.mrf.mxu0
        %v997 = vpop.f32.mrf.mxu0
        %v998 = vadd.f32 0.0, %v997
        %v999 = vpop.f32.mrf.mxu0
        %1000 = vmatprep.mubr.bf16.mxu0 %v947
        %1001 = vmatmul.mubr.bf16.gmra.mxu0 %v931
        %v1002 = vpop.f32.mrf.mxu0
        %v1003 = vadd.f32 0.0, %v1002
        %v1004 = vpop.f32.mrf.mxu0
        %v1005 = vpop.f32.mrf.mxu0
        %v1006 = vadd.f32 0.0, %v1005
        %v1007 = vpop.f32.mrf.mxu0
        %1008 = vmatprep.mubr.bf16.mxu0 %v950
        %1009 = vmatmul.mubr.bf16.gmra.mxu0 %v933
        %v1010 = vpop.f32.mrf.mxu0
        %v1011 = vadd.f32 0.0, %v1010
        %v1012 = vpop.f32.mrf.mxu0
        %v1013 = vpop.f32.mrf.mxu0
        %v1014 = vadd.f32 0.0, %v1013
        %v1015 = vpop.f32.mrf.mxu0
        %1016 = vdwg.mxu0
        %vm1017 = vcmp.ge.f32.partialorder %v987, 0.0
        %vm1018 = vcmp.ge.f32.partialorder %v990, 0.0
        %vm1019 = vcmp.ge.f32.partialorder %v995, 0.0
        %vm1020 = vcmp.ge.f32.partialorder %v998, 0.0
        %vm1021 = vcmp.ge.f32.partialorder %v1003, 0.0
        %vm1022 = vcmp.ge.f32.partialorder %v1006, 0.0
        %vm1023 = vcmp.ge.f32.partialorder %v1011, 0.0
        %vm1024 = vcmp.ge.f32.partialorder %v1014, 0.0
        %v1025 = vmul.f32 %v987, 0.01
        %v1026 = vmul.f32 %v990, 0.01
        %v1027 = vmul.f32 %v995, 0.01
        %v1028 = vmul.f32 %v998, 0.01
        %v1029 = vmul.f32 %v1003, 0.01
        %v1030 = vmul.f32 %v1006, 0.01
        %v1031 = vmul.f32 %v1011, 0.01
        %v1032 = vmul.f32 %v1014, 0.01
        %v1033 = vsel %vm1017, %v987, %v1025
        %v1034 = vsel %vm1018, %v990, %v1026
        %v1035 = vsel %vm1019, %v995, %v1027
        %v1036 = vsel %vm1020, %v998, %v1028
        %v1037 = vsel %vm1021, %v1003, %v1029
        %v1038 = vsel %vm1022, %v1006, %v1030
        %v1039 = vsel %vm1023, %v1011, %v1031
        %v1040 = vsel %vm1024, %v1014, %v1032
        %v1041 = vpack.c.bf16 %v1034, %v1033
        %v1042 = vpack.c.bf16 %v1036, %v1035
        %v1043 = vpack.c.bf16 %v1038, %v1037
        %v1044 = vpack.c.bf16 %v1040, %v1039
        %v1045 = vld [vmem:[%s3] sm:$0xf]
        %vm1046 = vcmask 64512
        %v1048 = vsel %vm1046, %v1041, 0
        %v1051 = vsel %vm1046, %v1042, 0
        %v1054 = vsel %vm1046, %v1043, 0
        %v1057 = vsel %vm1046, %v1044, 0
        %vm1059 = vcmask 1043456
        %v1061 = vsel %vm1059, %v1045, 0
        %1063 = vmatprep.subr.bf16.mxu0 0
        %1064 = vmatpush1.bf16.msra.mxu0 0
        %1065 = vmatprep.subr.bf16.mxu0 0
        %1066 = vmatpush1.bf16.msra.mxu0 0
        %1067 = vmatprep.subr.bf16.mxu0 0
        %1068 = vmatpush1.bf16.msra.mxu0 0
        %1069 = vmatprep.subr.bf16.mxu0 0
        %1070 = vmatpush1.bf16.msra.mxu0 0
        %1071 = vmatprep.subr.bf16.mxu0 0
        %1072 = vmatpush1.bf16.msra.mxu0 0
        %1073 = vmatprep.subr.bf16.mxu0 0
        %1074 = vmatpush1.bf16.msra.mxu0 0
        %1075 = vmatprep.subr.bf16.mxu0 0
        %1076 = vmatpush1.bf16.msra.mxu0 0
        %1077 = vmatprep.subr.bf16.mxu0 0
        %1078 = vmatpush1.bf16.msra.mxu0 %v1061
        %1079 = vmatprep.subr.bf16.mxu0 0
        %1080 = vmatpush2.bf16.msra.mxu0 0
        %1081 = vmatprep.subr.bf16.mxu0 0
        %1082 = vmatpush2.bf16.msra.mxu0 0
        %1083 = vmatprep.subr.bf16.mxu0 0
        %1084 = vmatpush2.bf16.msra.mxu0 0
        %1085 = vmatprep.subr.bf16.mxu0 0
        %1086 = vmatpush2.bf16.msra.mxu0 0
        %1087 = vmatprep.subr.bf16.mxu0 0
        %1088 = vmatpush2.bf16.msra.mxu0 0
        %1089 = vmatprep.subr.bf16.mxu0 0
        %1090 = vmatpush2.bf16.msra.mxu0 0
        %1091 = vmatprep.subr.bf16.mxu0 0
        %1092 = vmatpush2.bf16.msra.mxu0 0
        %1093 = vmatprep.subr.bf16.mxu0 0
        %1094 = vmatpush2.bf16.msra.mxu0 0
        %1095 = vmatprep.mubr.bf16.mxu0 0
        %1096 = vmatmul.mubr.bf16.gmra.mxu0 %v1048
        %v1097 = vpop.f32.mrf.mxu0
        %v1098 = vadd.f32 0.0, %v1097
        %v1099 = vpop.f32.mrf.mxu0
        %v1100 = vpop.f32.mrf.mxu0
        %v1101 = vadd.f32 0.0, %v1100
        %v1102 = vpop.f32.mrf.mxu0
        %1103 = vmatprep.mubr.bf16.mxu0 0
        %1104 = vmatmul.mubr.bf16.gmra.mxu0 %v1051
        %v1105 = vpop.f32.mrf.mxu0
        %v1106 = vadd.f32 0.0, %v1105
        %v1107 = vpop.f32.mrf.mxu0
        %v1108 = vpop.f32.mrf.mxu0
        %v1109 = vadd.f32 0.0, %v1108
        %v1110 = vpop.f32.mrf.mxu0
        %1111 = vmatprep.mubr.bf16.mxu0 0
        %1112 = vmatmul.mubr.bf16.gmra.mxu0 %v1054
        %v1113 = vpop.f32.mrf.mxu0
        %v1114 = vadd.f32 0.0, %v1113
        %v1115 = vpop.f32.mrf.mxu0
        %v1116 = vpop.f32.mrf.mxu0
        %v1117 = vadd.f32 0.0, %v1116
        %v1118 = vpop.f32.mrf.mxu0
        %1119 = vmatprep.mubr.bf16.mxu0 0
        %1120 = vmatmul.mubr.bf16.gmra.mxu0 %v1057
        %v1121 = vpop.f32.mrf.mxu0
        %v1122 = vadd.f32 0.0, %v1121
        %v1123 = vpop.f32.mrf.mxu0
        %v1124 = vpop.f32.mrf.mxu0
        %v1125 = vadd.f32 0.0, %v1124
        %v1126 = vpop.f32.mrf.mxu0
        %1127 = vdwg.mxu0
        %v1128 = vpack.c.bf16 %v1101, %v1098
        %v1129 = vpack.c.bf16 %v1109, %v1106
        %v1130 = vpack.c.bf16 %v1117, %v1114
        %v1131 = vpack.c.bf16 %v1125, %v1122
        %s1132 = scalar_lea.vmem %s3, 4
        %v1133 = vld [vmem:[%s1132] sm:$0xf]
        %v1135 = vsel %vm1059, %v1133, 0
        %1137 = vmatprep.subr.bf16.mxu0 0
        %1138 = vmatpush1.bf16.msra.mxu0 0
        %1139 = vmatprep.subr.bf16.mxu0 0
        %1140 = vmatpush1.bf16.msra.mxu0 0
        %1141 = vmatprep.subr.bf16.mxu0 0
        %1142 = vmatpush1.bf16.msra.mxu0 0
        %1143 = vmatprep.subr.bf16.mxu0 0
        %1144 = vmatpush1.bf16.msra.mxu0 0
        %1145 = vmatprep.subr.bf16.mxu0 0
        %1146 = vmatpush1.bf16.msra.mxu0 0
        %1147 = vmatprep.subr.bf16.mxu0 0
        %1148 = vmatpush1.bf16.msra.mxu0 0
        %1149 = vmatprep.subr.bf16.mxu0 0
        %1150 = vmatpush1.bf16.msra.mxu0 0
        %1151 = vmatprep.subr.bf16.mxu0 0
        %1152 = vmatpush1.bf16.msra.mxu0 %v1135
        %1153 = vmatprep.subr.bf16.mxu0 0
        %1154 = vmatpush2.bf16.msra.mxu0 0
        %1155 = vmatprep.subr.bf16.mxu0 0
        %1156 = vmatpush2.bf16.msra.mxu0 0
        %1157 = vmatprep.subr.bf16.mxu0 0
        %1158 = vmatpush2.bf16.msra.mxu0 0
        %1159 = vmatprep.subr.bf16.mxu0 0
        %1160 = vmatpush2.bf16.msra.mxu0 0
        %1161 = vmatprep.subr.bf16.mxu0 0
        %1162 = vmatpush2.bf16.msra.mxu0 0
        %1163 = vmatprep.subr.bf16.mxu0 0
        %1164 = vmatpush2.bf16.msra.mxu0 0
        %1165 = vmatprep.subr.bf16.mxu0 0
        %1166 = vmatpush2.bf16.msra.mxu0 0
        %1167 = vmatprep.subr.bf16.mxu0 0
        %1168 = vmatpush2.bf16.msra.mxu0 0
        %1169 = vmatprep.mubr.bf16.mxu0 0
        %1170 = vmatmul.mubr.bf16.gmra.mxu0 %v1048
        %v1171 = vpop.f32.mrf.mxu0
        %v1172 = vadd.f32 0.0, %v1171
        %v1173 = vpop.f32.mrf.mxu0
        %v1174 = vpop.f32.mrf.mxu0
        %v1175 = vadd.f32 0.0, %v1174
        %v1176 = vpop.f32.mrf.mxu0
        %1177 = vmatprep.mubr.bf16.mxu0 0
        %1178 = vmatmul.mubr.bf16.gmra.mxu0 %v1051
        %v1179 = vpop.f32.mrf.mxu0
        %v1180 = vadd.f32 0.0, %v1179
        %v1181 = vpop.f32.mrf.mxu0
        %v1182 = vpop.f32.mrf.mxu0
        %v1183 = vadd.f32 0.0, %v1182
        %v1184 = vpop.f32.mrf.mxu0
        %1185 = vmatprep.mubr.bf16.mxu0 0
        %1186 = vmatmul.mubr.bf16.gmra.mxu0 %v1054
        %v1187 = vpop.f32.mrf.mxu0
        %v1188 = vadd.f32 0.0, %v1187
        %v1189 = vpop.f32.mrf.mxu0
        %v1190 = vpop.f32.mrf.mxu0
        %v1191 = vadd.f32 0.0, %v1190
        %v1192 = vpop.f32.mrf.mxu0
        %1193 = vmatprep.mubr.bf16.mxu0 0
        %1194 = vmatmul.mubr.bf16.gmra.mxu0 %v1057
        %v1195 = vpop.f32.mrf.mxu0
        %v1196 = vadd.f32 0.0, %v1195
        %v1197 = vpop.f32.mrf.mxu0
        %v1198 = vpop.f32.mrf.mxu0
        %v1199 = vadd.f32 0.0, %v1198
        %v1200 = vpop.f32.mrf.mxu0
        %1201 = vdwg.mxu0
        %v1202 = vpack.c.bf16 %v1175, %v1172
        %v1203 = vpack.c.bf16 %v1183, %v1180
        %v1204 = vpack.c.bf16 %v1191, %v1188
        %v1205 = vpack.c.bf16 %v1199, %v1196
        %s1206 = scalar_lea.vmem %s3, 8
        %v1207 = vld [vmem:[%s1206] sm:$0xf]
        %v1209 = vsel %vm1059, %v1207, 0
        %1211 = vmatprep.subr.bf16.mxu0 0
        %1212 = vmatpush1.bf16.msra.mxu0 0
        %1213 = vmatprep.subr.bf16.mxu0 0
        %1214 = vmatpush1.bf16.msra.mxu0 0
        %1215 = vmatprep.subr.bf16.mxu0 0
        %1216 = vmatpush1.bf16.msra.mxu0 0
        %1217 = vmatprep.subr.bf16.mxu0 0
        %1218 = vmatpush1.bf16.msra.mxu0 0
        %1219 = vmatprep.subr.bf16.mxu0 0
        %1220 = vmatpush1.bf16.msra.mxu0 0
        %1221 = vmatprep.subr.bf16.mxu0 0
        %1222 = vmatpush1.bf16.msra.mxu0 0
        %1223 = vmatprep.subr.bf16.mxu0 0
        %1224 = vmatpush1.bf16.msra.mxu0 0
        %1225 = vmatprep.subr.bf16.mxu0 0
        %1226 = vmatpush1.bf16.msra.mxu0 %v1209
        %1227 = vmatprep.subr.bf16.mxu0 0
        %1228 = vmatpush2.bf16.msra.mxu0 0
        %1229 = vmatprep.subr.bf16.mxu0 0
        %1230 = vmatpush2.bf16.msra.mxu0 0
        %1231 = vmatprep.subr.bf16.mxu0 0
        %1232 = vmatpush2.bf16.msra.mxu0 0
        %1233 = vmatprep.subr.bf16.mxu0 0
        %1234 = vmatpush2.bf16.msra.mxu0 0
        %1235 = vmatprep.subr.bf16.mxu0 0
        %1236 = vmatpush2.bf16.msra.mxu0 0
        %1237 = vmatprep.subr.bf16.mxu0 0
        %1238 = vmatpush2.bf16.msra.mxu0 0
        %1239 = vmatprep.subr.bf16.mxu0 0
        %1240 = vmatpush2.bf16.msra.mxu0 0
        %1241 = vmatprep.subr.bf16.mxu0 0
        %1242 = vmatpush2.bf16.msra.mxu0 0
        %1243 = vmatprep.mubr.bf16.mxu0 0
        %1244 = vmatmul.mubr.bf16.gmra.mxu0 %v1048
        %v1245 = vpop.f32.mrf.mxu0
        %v1246 = vadd.f32 0.0, %v1245
        %v1247 = vpop.f32.mrf.mxu0
        %v1248 = vpop.f32.mrf.mxu0
        %v1249 = vadd.f32 0.0, %v1248
        %v1250 = vpop.f32.mrf.mxu0
        %1251 = vmatprep.mubr.bf16.mxu0 0
        %1252 = vmatmul.mubr.bf16.gmra.mxu0 %v1051
        %v1253 = vpop.f32.mrf.mxu0
        %v1254 = vadd.f32 0.0, %v1253
        %v1255 = vpop.f32.mrf.mxu0
        %v1256 = vpop.f32.mrf.mxu0
        %v1257 = vadd.f32 0.0, %v1256
        %v1258 = vpop.f32.mrf.mxu0
        %1259 = vmatprep.mubr.bf16.mxu0 0
        %1260 = vmatmul.mubr.bf16.gmra.mxu0 %v1054
        %v1261 = vpop.f32.mrf.mxu0
        %v1262 = vadd.f32 0.0, %v1261
        %v1263 = vpop.f32.mrf.mxu0
        %v1264 = vpop.f32.mrf.mxu0
        %v1265 = vadd.f32 0.0, %v1264
        %v1266 = vpop.f32.mrf.mxu0
        %1267 = vmatprep.mubr.bf16.mxu0 0
        %1268 = vmatmul.mubr.bf16.gmra.mxu0 %v1057
        %v1269 = vpop.f32.mrf.mxu0
        %v1270 = vadd.f32 0.0, %v1269
        %v1271 = vpop.f32.mrf.mxu0
        %v1272 = vpop.f32.mrf.mxu0
        %v1273 = vadd.f32 0.0, %v1272
        %v1274 = vpop.f32.mrf.mxu0
        %1275 = vdwg.mxu0
        %v1276 = vpack.c.bf16 %v1249, %v1246
        %v1277 = vpack.c.bf16 %v1257, %v1254
        %v1278 = vpack.c.bf16 %v1265, %v1262
        %v1279 = vpack.c.bf16 %v1273, %v1270
        %v1280 = vld [vmem:[%s4] sm:$0xff]
        %v1281 = vld [vmem:[%s4 + $0x8] sm:$0xff]
        %v1282 = vld [vmem:[%s4 + $0x10] sm:$0xff]
        %v1283 = vld [vmem:[%s4 + $0x18] sm:$0xff]
        %v1284 = vld [vmem:[%s4 + $0x20] sm:$0xff]
        %v1285 = vld [vmem:[%s4 + $0x28] sm:$0xff]
        %v1286 = vld [vmem:[%s4 + $0x30] sm:$0xff]
        %v1287 = vld [vmem:[%s4 + $0x38] sm:$0xff]
        %v1296 = vunpack.c.l.b16 %v1280
        %v1297 = vunpack.c.h.b16 %v1280
        %v1298 = vunpack.c.l.b16 %v1281
        %v1299 = vunpack.c.h.b16 %v1281
        %v1300 = vunpack.c.l.b16 %v1282
        %v1301 = vunpack.c.h.b16 %v1282
        %v1302 = vunpack.c.l.b16 %v1283
        %v1303 = vunpack.c.h.b16 %v1283
        %v1304 = vunpack.c.l.b16 %v1284
        %v1305 = vunpack.c.h.b16 %v1284
        %v1306 = vunpack.c.l.b16 %v1285
        %v1307 = vunpack.c.h.b16 %v1285
        %v1308 = vunpack.c.l.b16 %v1286
        %v1309 = vunpack.c.h.b16 %v1286
        %v1310 = vunpack.c.l.b16 %v1287
        %v1311 = vunpack.c.h.b16 %v1287
        %v1312 = vpack.c.b16 %v1298, %v1296
        %v1313 = vpack.c.b16 %v1299, %v1297
        %v1314 = vpack.c.b16 %v1302, %v1300
        %v1315 = vpack.c.b16 %v1303, %v1301
        %v1316 = vpack.c.b16 %v1306, %v1304
        %v1317 = vpack.c.b16 %v1307, %v1305
        %v1318 = vpack.c.b16 %v1310, %v1308
        %v1319 = vpack.c.b16 %v1311, %v1309
        %v1325 = vsel %vm939, %v1313, 0
        %v1328 = vsel %vm939, %v1315, 0
        %v1331 = vsel %vm939, %v1317, 0
        %v1334 = vsel %vm939, %v1319, 0
        %1336 = vmatprep.subr.bf16.mxu0 0
        %1337 = vmatpush1.bf16.msra.mxu0 %v1205
        %1338 = vmatprep.subr.bf16.mxu0 0
        %1339 = vmatpush1.bf16.msra.mxu0 %v1204
        %1340 = vmatprep.subr.bf16.mxu0 0
        %1341 = vmatpush1.bf16.msra.mxu0 %v1203
        %1342 = vmatprep.subr.bf16.mxu0 0
        %1343 = vmatpush1.bf16.msra.mxu0 %v1202
        %1344 = vmatprep.subr.bf16.mxu0 0
        %1345 = vmatpush1.bf16.msra.mxu0 %v1131
        %1346 = vmatprep.subr.bf16.mxu0 0
        %1347 = vmatpush1.bf16.msra.mxu0 %v1130
        %1348 = vmatprep.subr.bf16.mxu0 0
        %1349 = vmatpush1.bf16.msra.mxu0 %v1129
        %1350 = vmatprep.subr.bf16.mxu0 0
        %1351 = vmatpush1.bf16.msra.mxu0 %v1128
        %1352 = vmatprep.subr.bf16.mxu0 0
        %1353 = vmatpush2.bf16.msra.mxu0 0
        %1354 = vmatprep.subr.bf16.mxu0 0
        %1355 = vmatpush2.bf16.msra.mxu0 0
        %1356 = vmatprep.subr.bf16.mxu0 0
        %1357 = vmatpush2.bf16.msra.mxu0 0
        %1358 = vmatprep.subr.bf16.mxu0 0
        %1359 = vmatpush2.bf16.msra.mxu0 0
        %1360 = vmatprep.subr.bf16.mxu0 0
        %1361 = vmatpush2.bf16.msra.mxu0 %v1279
        %1362 = vmatprep.subr.bf16.mxu0 0
        %1363 = vmatpush2.bf16.msra.mxu0 %v1278
        %1364 = vmatprep.subr.bf16.mxu0 0
        %1365 = vmatpush2.bf16.msra.mxu0 %v1277
        %1366 = vmatprep.subr.bf16.mxu0 0
        %1367 = vmatpush2.bf16.msra.mxu0 %v1276
        %1368 = vmatprep.mubr.bf16.mxu0 %v1325
        %1369 = vmatmul.mubr.bf16.gmra.mxu0 %v1312
        %v1370 = vpop.f32.mrf.mxu0
        %v1371 = vadd.f32 0.0, %v1370
        %v1372 = vpop.f32.mrf.mxu0
        %v1373 = vpop.f32.mrf.mxu0
        %v1374 = vadd.f32 0.0, %v1373
        %v1375 = vpop.f32.mrf.mxu0
        %1376 = vmatprep.mubr.bf16.mxu0 %v1328
        %1377 = vmatmul.mubr.bf16.gmra.mxu0 %v1314
        %v1378 = vpop.f32.mrf.mxu0
        %v1379 = vadd.f32 0.0, %v1378
        %v1380 = vpop.f32.mrf.mxu0
        %v1381 = vpop.f32.mrf.mxu0
        %v1382 = vadd.f32 0.0, %v1381
        %v1383 = vpop.f32.mrf.mxu0
        %1384 = vmatprep.mubr.bf16.mxu0 %v1331
        %1385 = vmatmul.mubr.bf16.gmra.mxu0 %v1316
        %v1386 = vpop.f32.mrf.mxu0
        %v1387 = vadd.f32 0.0, %v1386
        %v1388 = vpop.f32.mrf.mxu0
        %v1389 = vpop.f32.mrf.mxu0
        %v1390 = vadd.f32 0.0, %v1389
        %v1391 = vpop.f32.mrf.mxu0
        %1392 = vmatprep.mubr.bf16.mxu0 %v1334
        %1393 = vmatmul.mubr.bf16.gmra.mxu0 %v1318
        %v1394 = vpop.f32.mrf.mxu0
        %v1395 = vadd.f32 0.0, %v1394
        %v1396 = vpop.f32.mrf.mxu0
        %v1397 = vpop.f32.mrf.mxu0
        %v1398 = vadd.f32 0.0, %v1397
        %v1399 = vpop.f32.mrf.mxu0
        %1400 = vdwg.mxu0
        %vm1401 = vcmp.ge.f32.partialorder %v1371, 0.0
        %vm1402 = vcmp.ge.f32.partialorder %v1374, 0.0
        %vm1403 = vcmp.ge.f32.partialorder %v1379, 0.0
        %vm1404 = vcmp.ge.f32.partialorder %v1382, 0.0
        %vm1405 = vcmp.ge.f32.partialorder %v1387, 0.0
        %vm1406 = vcmp.ge.f32.partialorder %v1390, 0.0
        %vm1407 = vcmp.ge.f32.partialorder %v1395, 0.0
        %vm1408 = vcmp.ge.f32.partialorder %v1398, 0.0
        %v1409 = vmul.f32 %v1371, 0.01
        %v1410 = vmul.f32 %v1374, 0.01
        %v1411 = vmul.f32 %v1379, 0.01
        %v1412 = vmul.f32 %v1382, 0.01
        %v1413 = vmul.f32 %v1387, 0.01
        %v1414 = vmul.f32 %v1390, 0.01
        %v1415 = vmul.f32 %v1395, 0.01
        %v1416 = vmul.f32 %v1398, 0.01
        %v1417 = vsel %vm1401, %v1371, %v1409
        %v1418 = vsel %vm1402, %v1374, %v1410
        %v1419 = vsel %vm1403, %v1379, %v1411
        %v1420 = vsel %vm1404, %v1382, %v1412
        %v1421 = vsel %vm1405, %v1387, %v1413
        %v1422 = vsel %vm1406, %v1390, %v1414
        %v1423 = vsel %vm1407, %v1395, %v1415
        %v1424 = vsel %vm1408, %v1398, %v1416
        %v1425 = vpack.c.bf16 %v1418, %v1417
        %v1426 = vpack.c.bf16 %v1420, %v1419
        %v1427 = vpack.c.bf16 %v1422, %v1421
        %v1428 = vpack.c.bf16 %v1424, %v1423
        %v1429 = vld [vmem:[%s5] sm:$0x3]
        %vm1430 = vcmask 31744
        %v1432 = vsel %vm1430, %v1425, 0
        %v1435 = vsel %vm1430, %v1426, 0
        %v1438 = vsel %vm1430, %v1427, 0
        %v1441 = vsel %vm1430, %v1428, 0
        %vm1443 = vcmask 1041408
        %v1445 = vsel %vm1443, %v1429, 0
        %1447 = vmatprep.subr.bf16.mxu0 0
        %1448 = vmatpush1.bf16.msra.mxu0 0
        %1449 = vmatprep.subr.bf16.mxu0 0
        %1450 = vmatpush1.bf16.msra.mxu0 0
        %1451 = vmatprep.subr.bf16.mxu0 0
        %1452 = vmatpush1.bf16.msra.mxu0 0
        %1453 = vmatprep.subr.bf16.mxu0 0
        %1454 = vmatpush1.bf16.msra.mxu0 0
        %1455 = vmatprep.subr.bf16.mxu0 0
        %1456 = vmatpush1.bf16.msra.mxu0 0
        %1457 = vmatprep.subr.bf16.mxu0 0
        %1458 = vmatpush1.bf16.msra.mxu0 0
        %1459 = vmatprep.subr.bf16.mxu0 0
        %1460 = vmatpush1.bf16.msra.mxu0 0
        %1461 = vmatprep.subr.bf16.mxu0 0
        %1462 = vmatpush1.bf16.msra.mxu0 %v1445
        %1463 = vmatprep.subr.bf16.mxu0 0
        %1464 = vmatpush2.bf16.msra.mxu0 0
        %1465 = vmatprep.subr.bf16.mxu0 0
        %1466 = vmatpush2.bf16.msra.mxu0 0
        %1467 = vmatprep.subr.bf16.mxu0 0
        %1468 = vmatpush2.bf16.msra.mxu0 0
        %1469 = vmatprep.subr.bf16.mxu0 0
        %1470 = vmatpush2.bf16.msra.mxu0 0
        %1471 = vmatprep.subr.bf16.mxu0 0
        %1472 = vmatpush2.bf16.msra.mxu0 0
        %1473 = vmatprep.subr.bf16.mxu0 0
        %1474 = vmatpush2.bf16.msra.mxu0 0
        %1475 = vmatprep.subr.bf16.mxu0 0
        %1476 = vmatpush2.bf16.msra.mxu0 0
        %1477 = vmatprep.subr.bf16.mxu0 0
        %1478 = vmatpush2.bf16.msra.mxu0 0
        %1479 = vmatprep.mubr.bf16.mxu0 0
        %1480 = vmatmul.mubr.bf16.gmra.mxu0 %v1432
        %v1481 = vpop.f32.mrf.mxu0
        %v1482 = vadd.f32 0.0, %v1481
        %v1483 = vpop.f32.mrf.mxu0
        %v1484 = vpop.f32.mrf.mxu0
        %v1485 = vadd.f32 0.0, %v1484
        %v1486 = vpop.f32.mrf.mxu0
        %1487 = vmatprep.mubr.bf16.mxu0 0
        %1488 = vmatmul.mubr.bf16.gmra.mxu0 %v1435
        %v1489 = vpop.f32.mrf.mxu0
        %v1490 = vadd.f32 0.0, %v1489
        %v1491 = vpop.f32.mrf.mxu0
        %v1492 = vpop.f32.mrf.mxu0
        %v1493 = vadd.f32 0.0, %v1492
        %v1494 = vpop.f32.mrf.mxu0
        %1495 = vmatprep.mubr.bf16.mxu0 0
        %1496 = vmatmul.mubr.bf16.gmra.mxu0 %v1438
        %v1497 = vpop.f32.mrf.mxu0
        %v1498 = vadd.f32 0.0, %v1497
        %v1499 = vpop.f32.mrf.mxu0
        %v1500 = vpop.f32.mrf.mxu0
        %v1501 = vadd.f32 0.0, %v1500
        %v1502 = vpop.f32.mrf.mxu0
        %1503 = vmatprep.mubr.bf16.mxu0 0
        %1504 = vmatmul.mubr.bf16.gmra.mxu0 %v1441
        %v1505 = vpop.f32.mrf.mxu0
        %v1506 = vadd.f32 0.0, %v1505
        %v1507 = vpop.f32.mrf.mxu0
        %v1508 = vpop.f32.mrf.mxu0
        %v1509 = vadd.f32 0.0, %v1508
        %v1510 = vpop.f32.mrf.mxu0
        %1511 = vdwg.mxu0
        %v1512 = vpack.c.bf16 %v1485, %v1482
        %v1513 = vpack.c.bf16 %v1493, %v1490
        %v1514 = vpack.c.bf16 %v1501, %v1498
        %v1515 = vpack.c.bf16 %v1509, %v1506
        %s1516 = scalar_lea.vmem %s5, 2
        %v1517 = vld [vmem:[%s1516] sm:$0x3]
        %v1519 = vsel %vm1443, %v1517, 0
        %1521 = vmatprep.subr.bf16.mxu0 0
        %1522 = vmatpush1.bf16.msra.mxu0 0
        %1523 = vmatprep.subr.bf16.mxu0 0
        %1524 = vmatpush1.bf16.msra.mxu0 0
        %1525 = vmatprep.subr.bf16.mxu0 0
        %1526 = vmatpush1.bf16.msra.mxu0 0
        %1527 = vmatprep.subr.bf16.mxu0 0
        %1528 = vmatpush1.bf16.msra.mxu0 0
        %1529 = vmatprep.subr.bf16.mxu0 0
        %1530 = vmatpush1.bf16.msra.mxu0 0
        %1531 = vmatprep.subr.bf16.mxu0 0
        %1532 = vmatpush1.bf16.msra.mxu0 0
        %1533 = vmatprep.subr.bf16.mxu0 0
        %1534 = vmatpush1.bf16.msra.mxu0 0
        %1535 = vmatprep.subr.bf16.mxu0 0
        %1536 = vmatpush1.bf16.msra.mxu0 %v1519
        %1537 = vmatprep.subr.bf16.mxu0 0
        %1538 = vmatpush2.bf16.msra.mxu0 0
        %1539 = vmatprep.subr.bf16.mxu0 0
        %1540 = vmatpush2.bf16.msra.mxu0 0
        %1541 = vmatprep.subr.bf16.mxu0 0
        %1542 = vmatpush2.bf16.msra.mxu0 0
        %1543 = vmatprep.subr.bf16.mxu0 0
        %1544 = vmatpush2.bf16.msra.mxu0 0
        %1545 = vmatprep.subr.bf16.mxu0 0
        %1546 = vmatpush2.bf16.msra.mxu0 0
        %1547 = vmatprep.subr.bf16.mxu0 0
        %1548 = vmatpush2.bf16.msra.mxu0 0
        %1549 = vmatprep.subr.bf16.mxu0 0
        %1550 = vmatpush2.bf16.msra.mxu0 0
        %1551 = vmatprep.subr.bf16.mxu0 0
        %1552 = vmatpush2.bf16.msra.mxu0 0
        %1553 = vmatprep.mubr.bf16.mxu0 0
        %1554 = vmatmul.mubr.bf16.gmra.mxu0 %v1432
        %v1555 = vpop.f32.mrf.mxu0
        %v1556 = vadd.f32 0.0, %v1555
        %v1557 = vpop.f32.mrf.mxu0
        %v1558 = vpop.f32.mrf.mxu0
        %v1559 = vadd.f32 0.0, %v1558
        %v1560 = vpop.f32.mrf.mxu0
        %1561 = vmatprep.mubr.bf16.mxu0 0
        %1562 = vmatmul.mubr.bf16.gmra.mxu0 %v1435
        %v1563 = vpop.f32.mrf.mxu0
        %v1564 = vadd.f32 0.0, %v1563
        %v1565 = vpop.f32.mrf.mxu0
        %v1566 = vpop.f32.mrf.mxu0
        %v1567 = vadd.f32 0.0, %v1566
        %v1568 = vpop.f32.mrf.mxu0
        %1569 = vmatprep.mubr.bf16.mxu0 0
        %1570 = vmatmul.mubr.bf16.gmra.mxu0 %v1438
        %v1571 = vpop.f32.mrf.mxu0
        %v1572 = vadd.f32 0.0, %v1571
        %v1573 = vpop.f32.mrf.mxu0
        %v1574 = vpop.f32.mrf.mxu0
        %v1575 = vadd.f32 0.0, %v1574
        %v1576 = vpop.f32.mrf.mxu0
        %1577 = vmatprep.mubr.bf16.mxu0 0
        %1578 = vmatmul.mubr.bf16.gmra.mxu0 %v1441
        %v1579 = vpop.f32.mrf.mxu0
        %v1580 = vadd.f32 0.0, %v1579
        %v1581 = vpop.f32.mrf.mxu0
        %v1582 = vpop.f32.mrf.mxu0
        %v1583 = vadd.f32 0.0, %v1582
        %v1584 = vpop.f32.mrf.mxu0
        %1585 = vdwg.mxu0
        %v1586 = vpack.c.bf16 %v1559, %v1556
        %v1587 = vpack.c.bf16 %v1567, %v1564
        %v1588 = vpack.c.bf16 %v1575, %v1572
        %v1589 = vpack.c.bf16 %v1583, %v1580
        %s1590 = scalar_lea.vmem %s5, 4
        %v1591 = vld [vmem:[%s1590] sm:$0x3]
        %v1593 = vsel %vm1443, %v1591, 0
        %1595 = vmatprep.subr.bf16.mxu0 0
        %1596 = vmatpush1.bf16.msra.mxu0 0
        %1597 = vmatprep.subr.bf16.mxu0 0
        %1598 = vmatpush1.bf16.msra.mxu0 0
        %1599 = vmatprep.subr.bf16.mxu0 0
        %1600 = vmatpush1.bf16.msra.mxu0 0
        %1601 = vmatprep.subr.bf16.mxu0 0
        %1602 = vmatpush1.bf16.msra.mxu0 0
        %1603 = vmatprep.subr.bf16.mxu0 0
        %1604 = vmatpush1.bf16.msra.mxu0 0
        %1605 = vmatprep.subr.bf16.mxu0 0
        %1606 = vmatpush1.bf16.msra.mxu0 0
        %1607 = vmatprep.subr.bf16.mxu0 0
        %1608 = vmatpush1.bf16.msra.mxu0 0
        %1609 = vmatprep.subr.bf16.mxu0 0
        %1610 = vmatpush1.bf16.msra.mxu0 %v1593
        %1611 = vmatprep.subr.bf16.mxu0 0
        %1612 = vmatpush2.bf16.msra.mxu0 0
        %1613 = vmatprep.subr.bf16.mxu0 0
        %1614 = vmatpush2.bf16.msra.mxu0 0
        %1615 = vmatprep.subr.bf16.mxu0 0
        %1616 = vmatpush2.bf16.msra.mxu0 0
        %1617 = vmatprep.subr.bf16.mxu0 0
        %1618 = vmatpush2.bf16.msra.mxu0 0
        %1619 = vmatprep.subr.bf16.mxu0 0
        %1620 = vmatpush2.bf16.msra.mxu0 0
        %1621 = vmatprep.subr.bf16.mxu0 0
        %1622 = vmatpush2.bf16.msra.mxu0 0
        %1623 = vmatprep.subr.bf16.mxu0 0
        %1624 = vmatpush2.bf16.msra.mxu0 0
        %1625 = vmatprep.subr.bf16.mxu0 0
        %1626 = vmatpush2.bf16.msra.mxu0 0
        %1627 = vmatprep.mubr.bf16.mxu0 0
        %1628 = vmatmul.mubr.bf16.gmra.mxu0 %v1432
        %v1629 = vpop.f32.mrf.mxu0
        %v1630 = vadd.f32 0.0, %v1629
        %v1631 = vpop.f32.mrf.mxu0
        %v1632 = vpop.f32.mrf.mxu0
        %v1633 = vadd.f32 0.0, %v1632
        %v1634 = vpop.f32.mrf.mxu0
        %1635 = vmatprep.mubr.bf16.mxu0 0
        %1636 = vmatmul.mubr.bf16.gmra.mxu0 %v1435
        %v1637 = vpop.f32.mrf.mxu0
        %v1638 = vadd.f32 0.0, %v1637
        %v1639 = vpop.f32.mrf.mxu0
        %v1640 = vpop.f32.mrf.mxu0
        %v1641 = vadd.f32 0.0, %v1640
        %v1642 = vpop.f32.mrf.mxu0
        %1643 = vmatprep.mubr.bf16.mxu0 0
        %1644 = vmatmul.mubr.bf16.gmra.mxu0 %v1438
        %v1645 = vpop.f32.mrf.mxu0
        %v1646 = vadd.f32 0.0, %v1645
        %v1647 = vpop.f32.mrf.mxu0
        %v1648 = vpop.f32.mrf.mxu0
        %v1649 = vadd.f32 0.0, %v1648
        %v1650 = vpop.f32.mrf.mxu0
        %1651 = vmatprep.mubr.bf16.mxu0 0
        %1652 = vmatmul.mubr.bf16.gmra.mxu0 %v1441
        %v1653 = vpop.f32.mrf.mxu0
        %v1654 = vadd.f32 0.0, %v1653
        %v1655 = vpop.f32.mrf.mxu0
        %v1656 = vpop.f32.mrf.mxu0
        %v1657 = vadd.f32 0.0, %v1656
        %v1658 = vpop.f32.mrf.mxu0
        %1659 = vdwg.mxu0
        %v1660 = vpack.c.bf16 %v1633, %v1630
        %v1661 = vpack.c.bf16 %v1641, %v1638
        %v1662 = vpack.c.bf16 %v1649, %v1646
        %v1663 = vpack.c.bf16 %v1657, %v1654
        %v1664 = vld [vmem:[%s6] sm:$0xff]
        %v1665 = vld [vmem:[%s6 + $0x8] sm:$0xff]
        %v1666 = vld [vmem:[%s6 + $0x10] sm:$0xff]
        %v1667 = vld [vmem:[%s6 + $0x18] sm:$0xff]
        %v1668 = vld [vmem:[%s6 + $0x20] sm:$0xff]
        %v1669 = vld [vmem:[%s6 + $0x28] sm:$0xff]
        %v1670 = vld [vmem:[%s6 + $0x30] sm:$0xff]
        %v1671 = vld [vmem:[%s6 + $0x38] sm:$0xff]
        %v1680 = vunpack.c.l.b16 %v1664
        %v1681 = vunpack.c.h.b16 %v1664
        %v1682 = vunpack.c.l.b16 %v1665
        %v1683 = vunpack.c.h.b16 %v1665
        %v1684 = vunpack.c.l.b16 %v1666
        %v1685 = vunpack.c.h.b16 %v1666
        %v1686 = vunpack.c.l.b16 %v1667
        %v1687 = vunpack.c.h.b16 %v1667
        %v1688 = vunpack.c.l.b16 %v1668
        %v1689 = vunpack.c.h.b16 %v1668
        %v1690 = vunpack.c.l.b16 %v1669
        %v1691 = vunpack.c.h.b16 %v1669
        %v1692 = vunpack.c.l.b16 %v1670
        %v1693 = vunpack.c.h.b16 %v1670
        %v1694 = vunpack.c.l.b16 %v1671
        %v1695 = vunpack.c.h.b16 %v1671
        %v1696 = vpack.c.b16 %v1682, %v1680
        %v1697 = vpack.c.b16 %v1683, %v1681
        %v1698 = vpack.c.b16 %v1686, %v1684
        %v1699 = vpack.c.b16 %v1687, %v1685
        %v1700 = vpack.c.b16 %v1690, %v1688
        %v1701 = vpack.c.b16 %v1691, %v1689
        %v1702 = vpack.c.b16 %v1694, %v1692
        %v1703 = vpack.c.b16 %v1695, %v1693
        %v1709 = vsel %vm939, %v1697, 0
        %v1712 = vsel %vm939, %v1699, 0
        %v1715 = vsel %vm939, %v1701, 0
        %v1718 = vsel %vm939, %v1703, 0
        %1720 = vmatprep.subr.bf16.mxu0 0
        %1721 = vmatpush1.bf16.msra.mxu0 %v1589
        %1722 = vmatprep.subr.bf16.mxu0 0
        %1723 = vmatpush1.bf16.msra.mxu0 %v1588
        %1724 = vmatprep.subr.bf16.mxu0 0
        %1725 = vmatpush1.bf16.msra.mxu0 %v1587
        %1726 = vmatprep.subr.bf16.mxu0 0
        %1727 = vmatpush1.bf16.msra.mxu0 %v1586
        %1728 = vmatprep.subr.bf16.mxu0 0
        %1729 = vmatpush1.bf16.msra.mxu0 %v1515
        %1730 = vmatprep.subr.bf16.mxu0 0
        %1731 = vmatpush1.bf16.msra.mxu0 %v1514
        %1732 = vmatprep.subr.bf16.mxu0 0
        %1733 = vmatpush1.bf16.msra.mxu0 %v1513
        %1734 = vmatprep.subr.bf16.mxu0 0
        %1735 = vmatpush1.bf16.msra.mxu0 %v1512
        %1736 = vmatprep.subr.bf16.mxu0 0
        %1737 = vmatpush2.bf16.msra.mxu0 0
        %1738 = vmatprep.subr.bf16.mxu0 0
        %1739 = vmatpush2.bf16.msra.mxu0 0
        %1740 = vmatprep.subr.bf16.mxu0 0
        %1741 = vmatpush2.bf16.msra.mxu0 0
        %1742 = vmatprep.subr.bf16.mxu0 0
        %1743 = vmatpush2.bf16.msra.mxu0 0
        %1744 = vmatprep.subr.bf16.mxu0 0
        %1745 = vmatpush2.bf16.msra.mxu0 %v1663
        %1746 = vmatprep.subr.bf16.mxu0 0
        %1747 = vmatpush2.bf16.msra.mxu0 %v1662
        %1748 = vmatprep.subr.bf16.mxu0 0
        %1749 = vmatpush2.bf16.msra.mxu0 %v1661
        %1750 = vmatprep.subr.bf16.mxu0 0
        %1751 = vmatpush2.bf16.msra.mxu0 %v1660
        %1752 = vmatprep.mubr.bf16.mxu0 %v1709
        %1753 = vmatmul.mubr.bf16.gmra.mxu0 %v1696
        %v1754 = vpop.f32.mrf.mxu0
        %v1755 = vadd.f32 0.0, %v1754
        %v1756 = vpop.f32.mrf.mxu0
        %v1757 = vpop.f32.mrf.mxu0
        %v1758 = vadd.f32 0.0, %v1757
        %v1759 = vpop.f32.mrf.mxu0
        %1760 = vmatprep.mubr.bf16.mxu0 %v1712
        %1761 = vmatmul.mubr.bf16.gmra.mxu0 %v1698
        %v1762 = vpop.f32.mrf.mxu0
        %v1763 = vadd.f32 0.0, %v1762
        %v1764 = vpop.f32.mrf.mxu0
        %v1765 = vpop.f32.mrf.mxu0
        %v1766 = vadd.f32 0.0, %v1765
        %v1767 = vpop.f32.mrf.mxu0
        %1768 = vmatprep.mubr.bf16.mxu0 %v1715
        %1769 = vmatmul.mubr.bf16.gmra.mxu0 %v1700
        %v1770 = vpop.f32.mrf.mxu0
        %v1771 = vadd.f32 0.0, %v1770
        %v1772 = vpop.f32.mrf.mxu0
        %v1773 = vpop.f32.mrf.mxu0
        %v1774 = vadd.f32 0.0, %v1773
        %v1775 = vpop.f32.mrf.mxu0
        %1776 = vmatprep.mubr.bf16.mxu0 %v1718
        %1777 = vmatmul.mubr.bf16.gmra.mxu0 %v1702
        %v1778 = vpop.f32.mrf.mxu0
        %v1779 = vadd.f32 0.0, %v1778
        %v1780 = vpop.f32.mrf.mxu0
        %v1781 = vpop.f32.mrf.mxu0
        %v1782 = vadd.f32 0.0, %v1781
        %v1783 = vpop.f32.mrf.mxu0
        %1784 = vdwg.mxu0
        %vm1785 = vcmp.ge.f32.partialorder %v1755, 0.0
        %vm1786 = vcmp.ge.f32.partialorder %v1758, 0.0
        %vm1787 = vcmp.ge.f32.partialorder %v1763, 0.0
        %vm1788 = vcmp.ge.f32.partialorder %v1766, 0.0
        %vm1789 = vcmp.ge.f32.partialorder %v1771, 0.0
        %vm1790 = vcmp.ge.f32.partialorder %v1774, 0.0
        %vm1791 = vcmp.ge.f32.partialorder %v1779, 0.0
        %vm1792 = vcmp.ge.f32.partialorder %v1782, 0.0
        %v1793 = vmul.f32 %v1755, 0.01
        %v1794 = vmul.f32 %v1758, 0.01
        %v1795 = vmul.f32 %v1763, 0.01
        %v1796 = vmul.f32 %v1766, 0.01
        %v1797 = vmul.f32 %v1771, 0.01
        %v1798 = vmul.f32 %v1774, 0.01
        %v1799 = vmul.f32 %v1779, 0.01
        %v1800 = vmul.f32 %v1782, 0.01
        %v1801 = vsel %vm1785, %v1755, %v1793
        %v1802 = vsel %vm1786, %v1758, %v1794
        %v1803 = vsel %vm1787, %v1763, %v1795
        %v1804 = vsel %vm1788, %v1766, %v1796
        %v1805 = vsel %vm1789, %v1771, %v1797
        %v1806 = vsel %vm1790, %v1774, %v1798
        %v1807 = vsel %vm1791, %v1779, %v1799
        %v1808 = vsel %vm1792, %v1782, %v1800
        %v1809 = vpack.c.bf16 %v1802, %v1801
        %v1810 = vpack.c.bf16 %v1804, %v1803
        %v1811 = vpack.c.bf16 %v1806, %v1805
        %v1812 = vpack.c.bf16 %v1808, %v1807
        %v1813 = vld [vmem:[%s7] sm:$0x1]
        %vm1814 = vcmask 15360
        %v1816 = vsel %vm1814, %v1809, 0
        %v1819 = vsel %vm1814, %v1810, 0
        %v1822 = vsel %vm1814, %v1811, 0
        %v1825 = vsel %vm1814, %v1812, 0
        %vm1827 = vcmask 1040384
        %v1829 = vsel %vm1827, %v1813, 0
        %1831 = vmatprep.subr.bf16.mxu0 0
        %1832 = vmatpush1.bf16.msra.mxu0 0
        %1833 = vmatprep.subr.bf16.mxu0 0
        %1834 = vmatpush1.bf16.msra.mxu0 0
        %1835 = vmatprep.subr.bf16.mxu0 0
        %1836 = vmatpush1.bf16.msra.mxu0 0
        %1837 = vmatprep.subr.bf16.mxu0 0
        %1838 = vmatpush1.bf16.msra.mxu0 0
        %1839 = vmatprep.subr.bf16.mxu0 0
        %1840 = vmatpush1.bf16.msra.mxu0 0
        %1841 = vmatprep.subr.bf16.mxu0 0
        %1842 = vmatpush1.bf16.msra.mxu0 0
        %1843 = vmatprep.subr.bf16.mxu0 0
        %1844 = vmatpush1.bf16.msra.mxu0 0
        %1845 = vmatprep.subr.bf16.mxu0 0
        %1846 = vmatpush1.bf16.msra.mxu0 %v1829
        %1847 = vmatprep.subr.bf16.mxu0 0
        %1848 = vmatpush2.bf16.msra.mxu0 0
        %1849 = vmatprep.subr.bf16.mxu0 0
        %1850 = vmatpush2.bf16.msra.mxu0 0
        %1851 = vmatprep.subr.bf16.mxu0 0
        %1852 = vmatpush2.bf16.msra.mxu0 0
        %1853 = vmatprep.subr.bf16.mxu0 0
        %1854 = vmatpush2.bf16.msra.mxu0 0
        %1855 = vmatprep.subr.bf16.mxu0 0
        %1856 = vmatpush2.bf16.msra.mxu0 0
        %1857 = vmatprep.subr.bf16.mxu0 0
        %1858 = vmatpush2.bf16.msra.mxu0 0
        %1859 = vmatprep.subr.bf16.mxu0 0
        %1860 = vmatpush2.bf16.msra.mxu0 0
        %1861 = vmatprep.subr.bf16.mxu0 0
        %1862 = vmatpush2.bf16.msra.mxu0 0
        %1863 = vmatprep.mubr.bf16.mxu0 0
        %1864 = vmatmul.mubr.bf16.gmra.mxu0 %v1816
        %v1865 = vpop.f32.mrf.mxu0
        %v1866 = vadd.f32 0.0, %v1865
        %v1867 = vpop.f32.mrf.mxu0
        %v1868 = vpop.f32.mrf.mxu0
        %v1869 = vadd.f32 0.0, %v1868
        %v1870 = vpop.f32.mrf.mxu0
        %1871 = vmatprep.mubr.bf16.mxu0 0
        %1872 = vmatmul.mubr.bf16.gmra.mxu0 %v1819
        %v1873 = vpop.f32.mrf.mxu0
        %v1874 = vadd.f32 0.0, %v1873
        %v1875 = vpop.f32.mrf.mxu0
        %v1876 = vpop.f32.mrf.mxu0
        %v1877 = vadd.f32 0.0, %v1876
        %v1878 = vpop.f32.mrf.mxu0
        %1879 = vmatprep.mubr.bf16.mxu0 0
        %1880 = vmatmul.mubr.bf16.gmra.mxu0 %v1822
        %v1881 = vpop.f32.mrf.mxu0
        %v1882 = vadd.f32 0.0, %v1881
        %v1883 = vpop.f32.mrf.mxu0
        %v1884 = vpop.f32.mrf.mxu0
        %v1885 = vadd.f32 0.0, %v1884
        %v1886 = vpop.f32.mrf.mxu0
        %1887 = vmatprep.mubr.bf16.mxu0 0
        %1888 = vmatmul.mubr.bf16.gmra.mxu0 %v1825
        %v1889 = vpop.f32.mrf.mxu0
        %v1890 = vadd.f32 0.0, %v1889
        %v1891 = vpop.f32.mrf.mxu0
        %v1892 = vpop.f32.mrf.mxu0
        %v1893 = vadd.f32 0.0, %v1892
        %v1894 = vpop.f32.mrf.mxu0
        %1895 = vdwg.mxu0
        %v1896 = vpack.c.bf16 %v1869, %v1866
        %v1897 = vpack.c.bf16 %v1877, %v1874
        %v1898 = vpack.c.bf16 %v1885, %v1882
        %v1899 = vpack.c.bf16 %v1893, %v1890
        %s1900 = scalar_lea.vmem %s7, 1
        %v1901 = vld [vmem:[%s1900] sm:$0x1]
        %v1903 = vsel %vm1827, %v1901, 0
        %1905 = vmatprep.subr.bf16.mxu0 0
        %1906 = vmatpush1.bf16.msra.mxu0 0
        %1907 = vmatprep.subr.bf16.mxu0 0
        %1908 = vmatpush1.bf16.msra.mxu0 0
        %1909 = vmatprep.subr.bf16.mxu0 0
        %1910 = vmatpush1.bf16.msra.mxu0 0
        %1911 = vmatprep.subr.bf16.mxu0 0
        %1912 = vmatpush1.bf16.msra.mxu0 0
        %1913 = vmatprep.subr.bf16.mxu0 0
        %1914 = vmatpush1.bf16.msra.mxu0 0
        %1915 = vmatprep.subr.bf16.mxu0 0
        %1916 = vmatpush1.bf16.msra.mxu0 0
        %1917 = vmatprep.subr.bf16.mxu0 0
        %1918 = vmatpush1.bf16.msra.mxu0 0
        %1919 = vmatprep.subr.bf16.mxu0 0
        %1920 = vmatpush1.bf16.msra.mxu0 %v1903
        %1921 = vmatprep.subr.bf16.mxu0 0
        %1922 = vmatpush2.bf16.msra.mxu0 0
        %1923 = vmatprep.subr.bf16.mxu0 0
        %1924 = vmatpush2.bf16.msra.mxu0 0
        %1925 = vmatprep.subr.bf16.mxu0 0
        %1926 = vmatpush2.bf16.msra.mxu0 0
        %1927 = vmatprep.subr.bf16.mxu0 0
        %1928 = vmatpush2.bf16.msra.mxu0 0
        %1929 = vmatprep.subr.bf16.mxu0 0
        %1930 = vmatpush2.bf16.msra.mxu0 0
        %1931 = vmatprep.subr.bf16.mxu0 0
        %1932 = vmatpush2.bf16.msra.mxu0 0
        %1933 = vmatprep.subr.bf16.mxu0 0
        %1934 = vmatpush2.bf16.msra.mxu0 0
        %1935 = vmatprep.subr.bf16.mxu0 0
        %1936 = vmatpush2.bf16.msra.mxu0 0
        %1937 = vmatprep.mubr.bf16.mxu0 0
        %1938 = vmatmul.mubr.bf16.gmra.mxu0 %v1816
        %v1939 = vpop.f32.mrf.mxu0
        %v1940 = vadd.f32 0.0, %v1939
        %v1941 = vpop.f32.mrf.mxu0
        %v1942 = vpop.f32.mrf.mxu0
        %v1943 = vadd.f32 0.0, %v1942
        %v1944 = vpop.f32.mrf.mxu0
        %1945 = vmatprep.mubr.bf16.mxu0 0
        %1946 = vmatmul.mubr.bf16.gmra.mxu0 %v1819
        %v1947 = vpop.f32.mrf.mxu0
        %v1948 = vadd.f32 0.0, %v1947
        %v1949 = vpop.f32.mrf.mxu0
        %v1950 = vpop.f32.mrf.mxu0
        %v1951 = vadd.f32 0.0, %v1950
        %v1952 = vpop.f32.mrf.mxu0
        %1953 = vmatprep.mubr.bf16.mxu0 0
        %1954 = vmatmul.mubr.bf16.gmra.mxu0 %v1822
        %v1955 = vpop.f32.mrf.mxu0
        %v1956 = vadd.f32 0.0, %v1955
        %v1957 = vpop.f32.mrf.mxu0
        %v1958 = vpop.f32.mrf.mxu0
        %v1959 = vadd.f32 0.0, %v1958
        %v1960 = vpop.f32.mrf.mxu0
        %1961 = vmatprep.mubr.bf16.mxu0 0
        %1962 = vmatmul.mubr.bf16.gmra.mxu0 %v1825
        %v1963 = vpop.f32.mrf.mxu0
        %v1964 = vadd.f32 0.0, %v1963
        %v1965 = vpop.f32.mrf.mxu0
        %v1966 = vpop.f32.mrf.mxu0
        %v1967 = vadd.f32 0.0, %v1966
        %v1968 = vpop.f32.mrf.mxu0
        %1969 = vdwg.mxu0
        %v1970 = vpack.c.bf16 %v1943, %v1940
        %v1971 = vpack.c.bf16 %v1951, %v1948
        %v1972 = vpack.c.bf16 %v1959, %v1956
        %v1973 = vpack.c.bf16 %v1967, %v1964
        %v1974 = vld [vmem:[%s8] sm:$0xf]
        %v1975 = vld [vmem:[%s8 + $0x4] sm:$0xf]
        %v1976 = vld [vmem:[%s8 + $0x8] sm:$0xf]
        %v1977 = vld [vmem:[%s8 + $0xc] sm:$0xf]
        %v1982 = vunpack.c.l.b16 %v1974
        %v1983 = vunpack.c.l.b16 %v1975
        %v1984 = vunpack.c.l.b16 %v1976
        %v1985 = vunpack.c.l.b16 %v1977
        %v1986 = vpack.c.b16 %v1983, %v1982
        %v1987 = vpack.c.b16 %v1985, %v1984
        %1990 = vmatprep.subr.bf16.mxu0 0
        %1991 = vmatpush1.bf16.msra.mxu0 %v1973
        %1992 = vmatprep.subr.bf16.mxu0 0
        %1993 = vmatpush1.bf16.msra.mxu0 %v1972
        %1994 = vmatprep.subr.bf16.mxu0 0
        %1995 = vmatpush1.bf16.msra.mxu0 %v1971
        %1996 = vmatprep.subr.bf16.mxu0 0
        %1997 = vmatpush1.bf16.msra.mxu0 %v1970
        %1998 = vmatprep.subr.bf16.mxu0 0
        %1999 = vmatpush1.bf16.msra.mxu0 %v1899
        %2000 = vmatprep.subr.bf16.mxu0 0
        %2001 = vmatpush1.bf16.msra.mxu0 %v1898
        %2002 = vmatprep.subr.bf16.mxu0 0
        %2003 = vmatpush1.bf16.msra.mxu0 %v1897
        %2004 = vmatprep.subr.bf16.mxu0 0
        %2005 = vmatpush1.bf16.msra.mxu0 %v1896
        %2006 = vmatprep.subr.bf16.mxu0 0
        %2007 = vmatpush2.bf16.msra.mxu0 0
        %2008 = vmatprep.subr.bf16.mxu0 0
        %2009 = vmatpush2.bf16.msra.mxu0 0
        %2010 = vmatprep.subr.bf16.mxu0 0
        %2011 = vmatpush2.bf16.msra.mxu0 0
        %2012 = vmatprep.subr.bf16.mxu0 0
        %2013 = vmatpush2.bf16.msra.mxu0 0
        %2014 = vmatprep.subr.bf16.mxu0 0
        %2015 = vmatpush2.bf16.msra.mxu0 0
        %2016 = vmatprep.subr.bf16.mxu0 0
        %2017 = vmatpush2.bf16.msra.mxu0 0
        %2018 = vmatprep.subr.bf16.mxu0 0
        %2019 = vmatpush2.bf16.msra.mxu0 0
        %2020 = vmatprep.subr.bf16.mxu0 0
        %2021 = vmatpush2.bf16.msra.mxu0 0
        %2022 = vmatprep.mubr.bf16.mxu0 0
        %2023 = vmatmul.mubr.bf16.gmra.mxu0 %v1986
        %v2024 = vpop.f32.mrf.mxu0
        %v2025 = vadd.f32 0.0, %v2024
        %v2026 = vpop.f32.mrf.mxu0
        %v2027 = vpop.f32.mrf.mxu0
        %v2028 = vadd.f32 0.0, %v2027
        %v2029 = vpop.f32.mrf.mxu0
        %2030 = vmatprep.mubr.bf16.mxu0 0
        %2031 = vmatmul.mubr.bf16.gmra.mxu0 %v1987
        %v2032 = vpop.f32.mrf.mxu0
        %v2033 = vadd.f32 0.0, %v2032
        %v2034 = vpop.f32.mrf.mxu0
        %v2035 = vpop.f32.mrf.mxu0
        %v2036 = vadd.f32 0.0, %v2035
        %v2037 = vpop.f32.mrf.mxu0
        %2038 = vdwg.mxu0
        %v2039 = vpack.c.bf16 %v2028, %v2025
        %v2040 = vpack.c.bf16 %v2036, %v2033
        %v2041 = vld [vmem:[%s9] sm:$0x1]
        %2043 = vset.pattern.permute.xlu0 0
        %2044 = vperm.xlu0 %2043, %v2039
        %v2045 = vpop.permute.xlu0 %2044
        %2048 = vset.pattern.permute.xlu0 0
        %2049 = vperm.xlu0 %2048, %v2040
        %v2050 = vpop.permute.xlu0 %2049
        %v2053 = vpack.i.b16 %v2041, %v2041
        %v2055 = vlaneseq
        %v2056 = vshrl.u32 %v2055, 7
        %v2057 = vsub.s32 0, %v2056
        %v2058 = vrot.slane %v2053, %v2057
        %v2059 = vmul.bf16 %v2045, %v2058
        %v2060 = vmul.bf16 %v2050, %v2058
        %s2061 = scalar_lea.vmem %s9, 1
        %v2062 = vld [vmem:[%s2061] sm:$0x1]
        %v2064 = vpack.i.b16 %v2062, %v2062
        %v2066 = vlaneseq
        %v2067 = vshrl.u32 %v2066, 7
        %v2068 = vsub.s32 0, %v2067
        %v2069 = vrot.slane %v2064, %v2068
        %v2070 = vmul.bf16 %v2045, %v2069
        %v2071 = vmul.bf16 %v2050, %v2069
        %v2072 = vld [vmem:[#allocation2] sm:$0xf]
        %v2073 = vld [vmem:[#allocation2 + $0x4] sm:$0xf]
        %v2074 = vld [vmem:[#allocation2 + $0x8] sm:$0xf]
        %v2075 = vld [vmem:[#allocation2 + $0xc] sm:$0xf]
        %v2076 = vld [vmem:[#allocation2 + $0x10] sm:$0xf]
        %v2077 = vld [vmem:[#allocation2 + $0x14] sm:$0xf]
        %v2078 = vld [vmem:[#allocation2 + $0x18] sm:$0xf]
        %v2079 = vld [vmem:[#allocation2 + $0x1c] sm:$0xf]
        %v2088 = vunpack.c.l.b16 %v2072
        %v2089 = vunpack.c.l.b16 %v2073
        %v2090 = vunpack.c.l.b16 %v2074
        %v2091 = vunpack.c.l.b16 %v2075
        %v2092 = vunpack.c.l.b16 %v2076
        %v2093 = vunpack.c.l.b16 %v2077
        %v2094 = vunpack.c.l.b16 %v2078
        %v2095 = vunpack.c.l.b16 %v2079
        %v2096 = vpack.c.b16 %v2089, %v2088
        %v2097 = vpack.c.b16 %v2091, %v2090
        %v2098 = vpack.c.b16 %v2093, %v2092
        %v2099 = vpack.c.b16 %v2095, %v2094
        %v2101 = vsel %vm939, %v2096, 0
        %v2104 = vsel %vm939, %v2097, 0
        %v2107 = vsel %vm939, %v2098, 0
        %v2110 = vsel %vm939, %v2099, 0
        %2112 = vmatprep.subr.bf16.mxu0 0
        %2113 = vmatpush1.bf16.msra.mxu0 0
        %2114 = vmatprep.subr.bf16.mxu0 0
        %2115 = vmatpush1.bf16.msra.mxu0 0
        %2116 = vmatprep.subr.bf16.mxu0 0
        %2117 = vmatpush1.bf16.msra.mxu0 0
        %2118 = vmatprep.subr.bf16.mxu0 0
        %2119 = vmatpush1.bf16.msra.mxu0 0
        %2120 = vmatprep.subr.bf16.mxu0 0
        %2121 = vmatpush1.bf16.msra.mxu0 %v2071
        %2122 = vmatprep.subr.bf16.mxu0 0
        %2123 = vmatpush1.bf16.msra.mxu0 %v2070
        %2124 = vmatprep.subr.bf16.mxu0 0
        %2125 = vmatpush1.bf16.msra.mxu0 %v2060
        %2126 = vmatprep.subr.bf16.mxu0 0
        %2127 = vmatpush1.bf16.msra.mxu0 %v2059
        %2128 = vmatprep.subr.bf16.mxu0 0
        %2129 = vmatpush2.bf16.msra.mxu0 0
        %2130 = vmatprep.subr.bf16.mxu0 0
        %2131 = vmatpush2.bf16.msra.mxu0 0
        %2132 = vmatprep.subr.bf16.mxu0 0
        %2133 = vmatpush2.bf16.msra.mxu0 0
        %2134 = vmatprep.subr.bf16.mxu0 0
        %2135 = vmatpush2.bf16.msra.mxu0 0
        %2136 = vmatprep.subr.bf16.mxu0 0
        %2137 = vmatpush2.bf16.msra.mxu0 0
        %2138 = vmatprep.subr.bf16.mxu0 0
        %2139 = vmatpush2.bf16.msra.mxu0 0
        %2140 = vmatprep.subr.bf16.mxu0 0
        %2141 = vmatpush2.bf16.msra.mxu0 0
        %2142 = vmatprep.subr.bf16.mxu0 0
        %2143 = vmatpush2.bf16.msra.mxu0 0
        %2144 = vmatprep.mubr.bf16.mxu0 0
        %2145 = vmatmul.mubr.bf16.gmra.mxu0 %v2101
        %v2146 = vpop.f32.mrf.mxu0
        %v2147 = vadd.f32 0.0, %v2146
        %v2148 = vpop.f32.mrf.mxu0
        %v2149 = vpop.f32.mrf.mxu0
        %v2150 = vadd.f32 0.0, %v2149
        %v2151 = vpop.f32.mrf.mxu0
        %2152 = vmatprep.mubr.bf16.mxu0 0
        %2153 = vmatmul.mubr.bf16.gmra.mxu0 %v2104
        %v2154 = vpop.f32.mrf.mxu0
        %v2155 = vadd.f32 0.0, %v2154
        %v2156 = vpop.f32.mrf.mxu0
        %v2157 = vpop.f32.mrf.mxu0
        %v2158 = vadd.f32 0.0, %v2157
        %v2159 = vpop.f32.mrf.mxu0
        %2160 = vmatprep.mubr.bf16.mxu0 0
        %2161 = vmatmul.mubr.bf16.gmra.mxu0 %v2107
        %v2162 = vpop.f32.mrf.mxu0
        %v2163 = vadd.f32 0.0, %v2162
        %v2164 = vpop.f32.mrf.mxu0
        %v2165 = vpop.f32.mrf.mxu0
        %v2166 = vadd.f32 0.0, %v2165
        %v2167 = vpop.f32.mrf.mxu0
        %2168 = vmatprep.mubr.bf16.mxu0 0
        %2169 = vmatmul.mubr.bf16.gmra.mxu0 %v2110
        %v2170 = vpop.f32.mrf.mxu0
        %v2171 = vadd.f32 0.0, %v2170
        %v2172 = vpop.f32.mrf.mxu0
        %v2173 = vpop.f32.mrf.mxu0
        %v2174 = vadd.f32 0.0, %v2173
        %v2175 = vpop.f32.mrf.mxu0
        %2176 = vdwg.mxu0
        %vm2177 = vcmp.ge.f32.partialorder %v2147, 0.0
        %vm2178 = vcmp.ge.f32.partialorder %v2150, 0.0
        %vm2179 = vcmp.ge.f32.partialorder %v2155, 0.0
        %vm2180 = vcmp.ge.f32.partialorder %v2158, 0.0
        %vm2181 = vcmp.ge.f32.partialorder %v2163, 0.0
        %vm2182 = vcmp.ge.f32.partialorder %v2166, 0.0
        %vm2183 = vcmp.ge.f32.partialorder %v2171, 0.0
        %vm2184 = vcmp.ge.f32.partialorder %v2174, 0.0
        %v2185 = vmul.f32 %v2147, 0.01
        %v2186 = vmul.f32 %v2150, 0.01
        %v2187 = vmul.f32 %v2155, 0.01
        %v2188 = vmul.f32 %v2158, 0.01
        %v2189 = vmul.f32 %v2163, 0.01
        %v2190 = vmul.f32 %v2166, 0.01
        %v2191 = vmul.f32 %v2171, 0.01
        %v2192 = vmul.f32 %v2174, 0.01
        %v2193 = vsel %vm2177, %v2147, %v2185
        %v2194 = vsel %vm2178, %v2150, %v2186
        %v2195 = vsel %vm2179, %v2155, %v2187
        %v2196 = vsel %vm2180, %v2158, %v2188
        %v2197 = vsel %vm2181, %v2163, %v2189
        %v2198 = vsel %vm2182, %v2166, %v2190
        %v2199 = vsel %vm2183, %v2171, %v2191
        %v2200 = vsel %vm2184, %v2174, %v2192
        %v2201 = vpack.c.bf16 %v2194, %v2193
        %v2202 = vpack.c.bf16 %v2196, %v2195
        %v2203 = vpack.c.bf16 %v2198, %v2197
        %v2204 = vpack.c.bf16 %v2200, %v2199
        %v2205 = vld [vmem:[#allocation5] sm:$0x1]
        %v2207 = vsel %vm1814, %v2201, 0
        %v2210 = vsel %vm1814, %v2202, 0
        %v2213 = vsel %vm1814, %v2203, 0
        %v2216 = vsel %vm1814, %v2204, 0
        %v2219 = vsel %vm1827, %v2205, 0
        %2221 = vmatprep.subr.bf16.mxu0 0
        %2222 = vmatpush1.bf16.msra.mxu0 0
        %2223 = vmatprep.subr.bf16.mxu0 0
        %2224 = vmatpush1.bf16.msra.mxu0 0
        %2225 = vmatprep.subr.bf16.mxu0 0
        %2226 = vmatpush1.bf16.msra.mxu0 0
        %2227 = vmatprep.subr.bf16.mxu0 0
        %2228 = vmatpush1.bf16.msra.mxu0 0
        %2229 = vmatprep.subr.bf16.mxu0 0
        %2230 = vmatpush1.bf16.msra.mxu0 0
        %2231 = vmatprep.subr.bf16.mxu0 0
        %2232 = vmatpush1.bf16.msra.mxu0 0
        %2233 = vmatprep.subr.bf16.mxu0 0
        %2234 = vmatpush1.bf16.msra.mxu0 0
        %2235 = vmatprep.subr.bf16.mxu0 0
        %2236 = vmatpush1.bf16.msra.mxu0 %v2219
        %2237 = vmatprep.subr.bf16.mxu0 0
        %2238 = vmatpush2.bf16.msra.mxu0 0
        %2239 = vmatprep.subr.bf16.mxu0 0
        %2240 = vmatpush2.bf16.msra.mxu0 0
        %2241 = vmatprep.subr.bf16.mxu0 0
        %2242 = vmatpush2.bf16.msra.mxu0 0
        %2243 = vmatprep.subr.bf16.mxu0 0
        %2244 = vmatpush2.bf16.msra.mxu0 0
        %2245 = vmatprep.subr.bf16.mxu0 0
        %2246 = vmatpush2.bf16.msra.mxu0 0
        %2247 = vmatprep.subr.bf16.mxu0 0
        %2248 = vmatpush2.bf16.msra.mxu0 0
        %2249 = vmatprep.subr.bf16.mxu0 0
        %2250 = vmatpush2.bf16.msra.mxu0 0
        %2251 = vmatprep.subr.bf16.mxu0 0
        %2252 = vmatpush2.bf16.msra.mxu0 0
        %2253 = vmatprep.mubr.bf16.mxu0 0
        %2254 = vmatmul.mubr.bf16.gmra.mxu0 %v2207
        %v2255 = vpop.f32.mrf.mxu0
        %v2256 = vadd.f32 0.0, %v2255
        %v2257 = vpop.f32.mrf.mxu0
        %v2258 = vpop.f32.mrf.mxu0
        %v2259 = vadd.f32 0.0, %v2258
        %v2260 = vpop.f32.mrf.mxu0
        %2261 = vmatprep.mubr.bf16.mxu0 0
        %2262 = vmatmul.mubr.bf16.gmra.mxu0 %v2210
        %v2263 = vpop.f32.mrf.mxu0
        %v2264 = vadd.f32 0.0, %v2263
        %v2265 = vpop.f32.mrf.mxu0
        %v2266 = vpop.f32.mrf.mxu0
        %v2267 = vadd.f32 0.0, %v2266
        %v2268 = vpop.f32.mrf.mxu0
        %2269 = vmatprep.mubr.bf16.mxu0 0
        %2270 = vmatmul.mubr.bf16.gmra.mxu0 %v2213
        %v2271 = vpop.f32.mrf.mxu0
        %v2272 = vadd.f32 0.0, %v2271
        %v2273 = vpop.f32.mrf.mxu0
        %v2274 = vpop.f32.mrf.mxu0
        %v2275 = vadd.f32 0.0, %v2274
        %v2276 = vpop.f32.mrf.mxu0
        %2277 = vmatprep.mubr.bf16.mxu0 0
        %2278 = vmatmul.mubr.bf16.gmra.mxu0 %v2216
        %v2279 = vpop.f32.mrf.mxu0
        %v2280 = vadd.f32 0.0, %v2279
        %v2281 = vpop.f32.mrf.mxu0
        %v2282 = vpop.f32.mrf.mxu0
        %v2283 = vadd.f32 0.0, %v2282
        %v2284 = vpop.f32.mrf.mxu0
        %2285 = vdwg.mxu0
        %v2286 = vpack.c.bf16 %v2259, %v2256
        %v2287 = vpack.c.bf16 %v2267, %v2264
        %v2288 = vpack.c.bf16 %v2275, %v2272
        %v2289 = vpack.c.bf16 %v2283, %v2280
        %s2290 = scalar_lea.vmem [#allocation5], 1
        %v2291 = vld [vmem:[%s2290] sm:$0x1]
        %v2293 = vsel %vm1827, %v2291, 0
        %2295 = vmatprep.subr.bf16.mxu0 0
        %2296 = vmatpush1.bf16.msra.mxu0 0
        %2297 = vmatprep.subr.bf16.mxu0 0
        %2298 = vmatpush1.bf16.msra.mxu0 0
        %2299 = vmatprep.subr.bf16.mxu0 0
        %2300 = vmatpush1.bf16.msra.mxu0 0
        %2301 = vmatprep.subr.bf16.mxu0 0
        %2302 = vmatpush1.bf16.msra.mxu0 0
        %2303 = vmatprep.subr.bf16.mxu0 0
        %2304 = vmatpush1.bf16.msra.mxu0 0
        %2305 = vmatprep.subr.bf16.mxu0 0
        %2306 = vmatpush1.bf16.msra.mxu0 0
        %2307 = vmatprep.subr.bf16.mxu0 0
        %2308 = vmatpush1.bf16.msra.mxu0 0
        %2309 = vmatprep.subr.bf16.mxu0 0
        %2310 = vmatpush1.bf16.msra.mxu0 %v2293
        %2311 = vmatprep.subr.bf16.mxu0 0
        %2312 = vmatpush2.bf16.msra.mxu0 0
        %2313 = vmatprep.subr.bf16.mxu0 0
        %2314 = vmatpush2.bf16.msra.mxu0 0
        %2315 = vmatprep.subr.bf16.mxu0 0
        %2316 = vmatpush2.bf16.msra.mxu0 0
        %2317 = vmatprep.subr.bf16.mxu0 0
        %2318 = vmatpush2.bf16.msra.mxu0 0
        %2319 = vmatprep.subr.bf16.mxu0 0
        %2320 = vmatpush2.bf16.msra.mxu0 0
        %2321 = vmatprep.subr.bf16.mxu0 0
        %2322 = vmatpush2.bf16.msra.mxu0 0
        %2323 = vmatprep.subr.bf16.mxu0 0
        %2324 = vmatpush2.bf16.msra.mxu0 0
        %2325 = vmatprep.subr.bf16.mxu0 0
        %2326 = vmatpush2.bf16.msra.mxu0 0
        %2327 = vmatprep.mubr.bf16.mxu0 0
        %2328 = vmatmul.mubr.bf16.gmra.mxu0 %v2207
        %v2329 = vpop.f32.mrf.mxu0
        %v2330 = vadd.f32 0.0, %v2329
        %v2331 = vpop.f32.mrf.mxu0
        %v2332 = vpop.f32.mrf.mxu0
        %v2333 = vadd.f32 0.0, %v2332
        %v2334 = vpop.f32.mrf.mxu0
        %2335 = vmatprep.mubr.bf16.mxu0 0
        %2336 = vmatmul.mubr.bf16.gmra.mxu0 %v2210
        %v2337 = vpop.f32.mrf.mxu0
        %v2338 = vadd.f32 0.0, %v2337
        %v2339 = vpop.f32.mrf.mxu0
        %v2340 = vpop.f32.mrf.mxu0
        %v2341 = vadd.f32 0.0, %v2340
        %v2342 = vpop.f32.mrf.mxu0
        %2343 = vmatprep.mubr.bf16.mxu0 0
        %2344 = vmatmul.mubr.bf16.gmra.mxu0 %v2213
        %v2345 = vpop.f32.mrf.mxu0
        %v2346 = vadd.f32 0.0, %v2345
        %v2347 = vpop.f32.mrf.mxu0
        %v2348 = vpop.f32.mrf.mxu0
        %v2349 = vadd.f32 0.0, %v2348
        %v2350 = vpop.f32.mrf.mxu0
        %2351 = vmatprep.mubr.bf16.mxu0 0
        %2352 = vmatmul.mubr.bf16.gmra.mxu0 %v2216
        %v2353 = vpop.f32.mrf.mxu0
        %v2354 = vadd.f32 0.0, %v2353
        %v2355 = vpop.f32.mrf.mxu0
        %v2356 = vpop.f32.mrf.mxu0
        %v2357 = vadd.f32 0.0, %v2356
        %v2358 = vpop.f32.mrf.mxu0
        %2359 = vdwg.mxu0
        %v2360 = vpack.c.bf16 %v2333, %v2330
        %v2361 = vpack.c.bf16 %v2341, %v2338
        %v2362 = vpack.c.bf16 %v2349, %v2346
        %v2363 = vpack.c.bf16 %v2357, %v2354
        %s2364 = scalar_lea.vmem [#allocation5], 2
        %v2365 = vld [vmem:[%s2364] sm:$0x1]
        %v2367 = vsel %vm1827, %v2365, 0
        %2369 = vmatprep.subr.bf16.mxu0 0
        %2370 = vmatpush1.bf16.msra.mxu0 0
        %2371 = vmatprep.subr.bf16.mxu0 0
        %2372 = vmatpush1.bf16.msra.mxu0 0
        %2373 = vmatprep.subr.bf16.mxu0 0
        %2374 = vmatpush1.bf16.msra.mxu0 0
        %2375 = vmatprep.subr.bf16.mxu0 0
        %2376 = vmatpush1.bf16.msra.mxu0 0
        %2377 = vmatprep.subr.bf16.mxu0 0
        %2378 = vmatpush1.bf16.msra.mxu0 0
        %2379 = vmatprep.subr.bf16.mxu0 0
        %2380 = vmatpush1.bf16.msra.mxu0 0
        %2381 = vmatprep.subr.bf16.mxu0 0
        %2382 = vmatpush1.bf16.msra.mxu0 0
        %2383 = vmatprep.subr.bf16.mxu0 0
        %2384 = vmatpush1.bf16.msra.mxu0 %v2367
        %2385 = vmatprep.subr.bf16.mxu0 0
        %2386 = vmatpush2.bf16.msra.mxu0 0
        %2387 = vmatprep.subr.bf16.mxu0 0
        %2388 = vmatpush2.bf16.msra.mxu0 0
        %2389 = vmatprep.subr.bf16.mxu0 0
        %2390 = vmatpush2.bf16.msra.mxu0 0
        %2391 = vmatprep.subr.bf16.mxu0 0
        %2392 = vmatpush2.bf16.msra.mxu0 0
        %2393 = vmatprep.subr.bf16.mxu0 0
        %2394 = vmatpush2.bf16.msra.mxu0 0
        %2395 = vmatprep.subr.bf16.mxu0 0
        %2396 = vmatpush2.bf16.msra.mxu0 0
        %2397 = vmatprep.subr.bf16.mxu0 0
        %2398 = vmatpush2.bf16.msra.mxu0 0
        %2399 = vmatprep.subr.bf16.mxu0 0
        %2400 = vmatpush2.bf16.msra.mxu0 0
        %2401 = vmatprep.mubr.bf16.mxu0 0
        %2402 = vmatmul.mubr.bf16.gmra.mxu0 %v2207
        %v2403 = vpop.f32.mrf.mxu0
        %v2404 = vadd.f32 0.0, %v2403
        %v2405 = vpop.f32.mrf.mxu0
        %v2406 = vpop.f32.mrf.mxu0
        %v2407 = vadd.f32 0.0, %v2406
        %v2408 = vpop.f32.mrf.mxu0
        %2409 = vmatprep.mubr.bf16.mxu0 0
        %2410 = vmatmul.mubr.bf16.gmra.mxu0 %v2210
        %v2411 = vpop.f32.mrf.mxu0
        %v2412 = vadd.f32 0.0, %v2411
        %v2413 = vpop.f32.mrf.mxu0
        %v2414 = vpop.f32.mrf.mxu0
        %v2415 = vadd.f32 0.0, %v2414
        %v2416 = vpop.f32.mrf.mxu0
        %2417 = vmatprep.mubr.bf16.mxu0 0
        %2418 = vmatmul.mubr.bf16.gmra.mxu0 %v2213
        %v2419 = vpop.f32.mrf.mxu0
        %v2420 = vadd.f32 0.0, %v2419
        %v2421 = vpop.f32.mrf.mxu0
        %v2422 = vpop.f32.mrf.mxu0
        %v2423 = vadd.f32 0.0, %v2422
        %v2424 = vpop.f32.mrf.mxu0
        %2425 = vmatprep.mubr.bf16.mxu0 0
        %2426 = vmatmul.mubr.bf16.gmra.mxu0 %v2216
        %v2427 = vpop.f32.mrf.mxu0
        %v2428 = vadd.f32 0.0, %v2427
        %v2429 = vpop.f32.mrf.mxu0
        %v2430 = vpop.f32.mrf.mxu0
        %v2431 = vadd.f32 0.0, %v2430
        %v2432 = vpop.f32.mrf.mxu0
        %2433 = vdwg.mxu0
        %v2434 = vpack.c.bf16 %v2407, %v2404
        %v2435 = vpack.c.bf16 %v2415, %v2412
        %v2436 = vpack.c.bf16 %v2423, %v2420
        %v2437 = vpack.c.bf16 %v2431, %v2428
        %s2438 = scalar_lea.vmem [#allocation5], 3
        %v2439 = vld [vmem:[%s2438] sm:$0x1]
        %v2441 = vsel %vm1827, %v2439, 0
        %2443 = vmatprep.subr.bf16.mxu0 0
        %2444 = vmatpush1.bf16.msra.mxu0 0
        %2445 = vmatprep.subr.bf16.mxu0 0
        %2446 = vmatpush1.bf16.msra.mxu0 0
        %2447 = vmatprep.subr.bf16.mxu0 0
        %2448 = vmatpush1.bf16.msra.mxu0 0
        %2449 = vmatprep.subr.bf16.mxu0 0
        %2450 = vmatpush1.bf16.msra.mxu0 0
        %2451 = vmatprep.subr.bf16.mxu0 0
        %2452 = vmatpush1.bf16.msra.mxu0 0
        %2453 = vmatprep.subr.bf16.mxu0 0
        %2454 = vmatpush1.bf16.msra.mxu0 0
        %2455 = vmatprep.subr.bf16.mxu0 0
        %2456 = vmatpush1.bf16.msra.mxu0 0
        %2457 = vmatprep.subr.bf16.mxu0 0
        %2458 = vmatpush1.bf16.msra.mxu0 %v2441
        %2459 = vmatprep.subr.bf16.mxu0 0
        %2460 = vmatpush2.bf16.msra.mxu0 0
        %2461 = vmatprep.subr.bf16.mxu0 0
        %2462 = vmatpush2.bf16.msra.mxu0 0
        %2463 = vmatprep.subr.bf16.mxu0 0
        %2464 = vmatpush2.bf16.msra.mxu0 0
        %2465 = vmatprep.subr.bf16.mxu0 0
        %2466 = vmatpush2.bf16.msra.mxu0 0
        %2467 = vmatprep.subr.bf16.mxu0 0
        %2468 = vmatpush2.bf16.msra.mxu0 0
        %2469 = vmatprep.subr.bf16.mxu0 0
        %2470 = vmatpush2.bf16.msra.mxu0 0
        %2471 = vmatprep.subr.bf16.mxu0 0
        %2472 = vmatpush2.bf16.msra.mxu0 0
        %2473 = vmatprep.subr.bf16.mxu0 0
        %2474 = vmatpush2.bf16.msra.mxu0 0
        %2475 = vmatprep.mubr.bf16.mxu0 0
        %2476 = vmatmul.mubr.bf16.gmra.mxu0 %v2207
        %v2477 = vpop.f32.mrf.mxu0
        %v2478 = vadd.f32 0.0, %v2477
        %v2479 = vpop.f32.mrf.mxu0
        %v2480 = vpop.f32.mrf.mxu0
        %v2481 = vadd.f32 0.0, %v2480
        %v2482 = vpop.f32.mrf.mxu0
        %2483 = vmatprep.mubr.bf16.mxu0 0
        %2484 = vmatmul.mubr.bf16.gmra.mxu0 %v2210
        %v2485 = vpop.f32.mrf.mxu0
        %v2486 = vadd.f32 0.0, %v2485
        %v2487 = vpop.f32.mrf.mxu0
        %v2488 = vpop.f32.mrf.mxu0
        %v2489 = vadd.f32 0.0, %v2488
        %v2490 = vpop.f32.mrf.mxu0
        %2491 = vmatprep.mubr.bf16.mxu0 0
        %2492 = vmatmul.mubr.bf16.gmra.mxu0 %v2213
        %v2493 = vpop.f32.mrf.mxu0
        %v2494 = vadd.f32 0.0, %v2493
        %v2495 = vpop.f32.mrf.mxu0
        %v2496 = vpop.f32.mrf.mxu0
        %v2497 = vadd.f32 0.0, %v2496
        %v2498 = vpop.f32.mrf.mxu0
        %2499 = vmatprep.mubr.bf16.mxu0 0
        %2500 = vmatmul.mubr.bf16.gmra.mxu0 %v2216
        %v2501 = vpop.f32.mrf.mxu0
        %v2502 = vadd.f32 0.0, %v2501
        %v2503 = vpop.f32.mrf.mxu0
        %v2504 = vpop.f32.mrf.mxu0
        %v2505 = vadd.f32 0.0, %v2504
        %v2506 = vpop.f32.mrf.mxu0
        %2507 = vdwg.mxu0
        %v2508 = vpack.c.bf16 %v2481, %v2478
        %v2509 = vpack.c.bf16 %v2489, %v2486
        %v2510 = vpack.c.bf16 %v2497, %v2494
        %v2511 = vpack.c.bf16 %v2505, %v2502
        %v2512 = vld [vmem:[%s12] sm:$0xff]
        %v2513 = vld [vmem:[%s12 + $0x8] sm:$0xff]
        %v2514 = vld [vmem:[%s12 + $0x10] sm:$0xff]
        %v2515 = vld [vmem:[%s12 + $0x18] sm:$0xff]
        %v2516 = vld [vmem:[%s12 + $0x20] sm:$0xff]
        %v2517 = vld [vmem:[%s12 + $0x28] sm:$0xff]
        %v2518 = vld [vmem:[%s12 + $0x30] sm:$0xff]
        %v2519 = vld [vmem:[%s12 + $0x38] sm:$0xff]
        %v2528 = vunpack.c.l.b16 %v2512
        %v2529 = vunpack.c.h.b16 %v2512
        %v2530 = vunpack.c.l.b16 %v2513
        %v2531 = vunpack.c.h.b16 %v2513
        %v2532 = vunpack.c.l.b16 %v2514
        %v2533 = vunpack.c.h.b16 %v2514
        %v2534 = vunpack.c.l.b16 %v2515
        %v2535 = vunpack.c.h.b16 %v2515
        %v2536 = vunpack.c.l.b16 %v2516
        %v2537 = vunpack.c.h.b16 %v2516
        %v2538 = vunpack.c.l.b16 %v2517
        %v2539 = vunpack.c.h.b16 %v2517
        %v2540 = vunpack.c.l.b16 %v2518
        %v2541 = vunpack.c.h.b16 %v2518
        %v2542 = vunpack.c.l.b16 %v2519
        %v2543 = vunpack.c.h.b16 %v2519
        %v2544 = vpack.c.b16 %v2530, %v2528
        %v2545 = vpack.c.b16 %v2531, %v2529
        %v2546 = vpack.c.b16 %v2534, %v2532
        %v2547 = vpack.c.b16 %v2535, %v2533
        %v2548 = vpack.c.b16 %v2538, %v2536
        %v2549 = vpack.c.b16 %v2539, %v2537
        %v2550 = vpack.c.b16 %v2542, %v2540
        %v2551 = vpack.c.b16 %v2543, %v2541
        %2560 = vmatprep.subr.bf16.mxu0 0
        %2561 = vmatpush1.bf16.msra.mxu0 %v2363
        %2562 = vmatprep.subr.bf16.mxu0 0
        %2563 = vmatpush1.bf16.msra.mxu0 %v2362
        %2564 = vmatprep.subr.bf16.mxu0 0
        %2565 = vmatpush1.bf16.msra.mxu0 %v2361
        %2566 = vmatprep.subr.bf16.mxu0 0
        %2567 = vmatpush1.bf16.msra.mxu0 %v2360
        %2568 = vmatprep.subr.bf16.mxu0 0
        %2569 = vmatpush1.bf16.msra.mxu0 %v2289
        %2570 = vmatprep.subr.bf16.mxu0 0
        %2571 = vmatpush1.bf16.msra.mxu0 %v2288
        %2572 = vmatprep.subr.bf16.mxu0 0
        %2573 = vmatpush1.bf16.msra.mxu0 %v2287
        %2574 = vmatprep.subr.bf16.mxu0 0
        %2575 = vmatpush1.bf16.msra.mxu0 %v2286
        %2576 = vmatprep.subr.bf16.mxu0 0
        %2577 = vmatpush2.bf16.msra.mxu0 %v2511
        %2578 = vmatprep.subr.bf16.mxu0 0
        %2579 = vmatpush2.bf16.msra.mxu0 %v2510
        %2580 = vmatprep.subr.bf16.mxu0 0
        %2581 = vmatpush2.bf16.msra.mxu0 %v2509
        %2582 = vmatprep.subr.bf16.mxu0 0
        %2583 = vmatpush2.bf16.msra.mxu0 %v2508
        %2584 = vmatprep.subr.bf16.mxu0 0
        %2585 = vmatpush2.bf16.msra.mxu0 %v2437
        %2586 = vmatprep.subr.bf16.mxu0 0
        %2587 = vmatpush2.bf16.msra.mxu0 %v2436
        %2588 = vmatprep.subr.bf16.mxu0 0
        %2589 = vmatpush2.bf16.msra.mxu0 %v2435
        %2590 = vmatprep.subr.bf16.mxu0 0
        %2591 = vmatpush2.bf16.msra.mxu0 %v2434
        %2592 = vmatprep.mubr.bf16.mxu0 %v2545
        %2593 = vmatmul.mubr.bf16.gmra.mxu0 %v2544
        %v2594 = vpop.f32.mrf.mxu0
        %v2595 = vadd.f32 0.0, %v2594
        %v2596 = vpop.f32.mrf.mxu0
        %v2597 = vpop.f32.mrf.mxu0
        %v2598 = vadd.f32 0.0, %v2597
        %v2599 = vpop.f32.mrf.mxu0
        %2600 = vmatprep.mubr.bf16.mxu0 %v2547
        %2601 = vmatmul.mubr.bf16.gmra.mxu0 %v2546
        %v2602 = vpop.f32.mrf.mxu0
        %v2603 = vadd.f32 0.0, %v2602
        %v2604 = vpop.f32.mrf.mxu0
        %v2605 = vpop.f32.mrf.mxu0
        %v2606 = vadd.f32 0.0, %v2605
        %v2607 = vpop.f32.mrf.mxu0
        %2608 = vmatprep.mubr.bf16.mxu0 %v2549
        %2609 = vmatmul.mubr.bf16.gmra.mxu0 %v2548
        %v2610 = vpop.f32.mrf.mxu0
        %v2611 = vadd.f32 0.0, %v2610
        %v2612 = vpop.f32.mrf.mxu0
        %v2613 = vpop.f32.mrf.mxu0
        %v2614 = vadd.f32 0.0, %v2613
        %v2615 = vpop.f32.mrf.mxu0
        %2616 = vmatprep.mubr.bf16.mxu0 %v2551
        %2617 = vmatmul.mubr.bf16.gmra.mxu0 %v2550
        %v2618 = vpop.f32.mrf.mxu0
        %v2619 = vadd.f32 0.0, %v2618
        %v2620 = vpop.f32.mrf.mxu0
        %v2621 = vpop.f32.mrf.mxu0
        %v2622 = vadd.f32 0.0, %v2621
        %v2623 = vpop.f32.mrf.mxu0
        %2624 = vdwg.mxu0
        %vm2625 = vcmp.ge.f32.partialorder %v2595, 0.0
        %vm2626 = vcmp.ge.f32.partialorder %v2598, 0.0
        %vm2627 = vcmp.ge.f32.partialorder %v2603, 0.0
        %vm2628 = vcmp.ge.f32.partialorder %v2606, 0.0
        %vm2629 = vcmp.ge.f32.partialorder %v2611, 0.0
        %vm2630 = vcmp.ge.f32.partialorder %v2614, 0.0
        %vm2631 = vcmp.ge.f32.partialorder %v2619, 0.0
        %vm2632 = vcmp.ge.f32.partialorder %v2622, 0.0
        %v2633 = vmul.f32 %v2595, 0.01
        %v2634 = vmul.f32 %v2598, 0.01
        %v2635 = vmul.f32 %v2603, 0.01
        %v2636 = vmul.f32 %v2606, 0.01
        %v2637 = vmul.f32 %v2611, 0.01
        %v2638 = vmul.f32 %v2614, 0.01
        %v2639 = vmul.f32 %v2619, 0.01
        %v2640 = vmul.f32 %v2622, 0.01
        %v2641 = vsel %vm2625, %v2595, %v2633
        %v2642 = vsel %vm2626, %v2598, %v2634
        %v2643 = vsel %vm2627, %v2603, %v2635
        %v2644 = vsel %vm2628, %v2606, %v2636
        %v2645 = vsel %vm2629, %v2611, %v2637
        %v2646 = vsel %vm2630, %v2614, %v2638
        %v2647 = vsel %vm2631, %v2619, %v2639
        %v2648 = vsel %vm2632, %v2622, %v2640
        %v2649 = vpack.c.bf16 %v2642, %v2641
        %v2650 = vpack.c.bf16 %v2644, %v2643
        %v2651 = vpack.c.bf16 %v2646, %v2645
        %v2652 = vpack.c.bf16 %v2648, %v2647
        %v2653 = vld [vmem:[#allocation7] sm:$0x3]
        %v2655 = vsel %vm1430, %v2649, 0
        %v2658 = vsel %vm1430, %v2650, 0
        %v2661 = vsel %vm1430, %v2651, 0
        %v2664 = vsel %vm1430, %v2652, 0
        %v2667 = vsel %vm1443, %v2653, 0
        %2669 = vmatprep.subr.bf16.mxu0 0
        %2670 = vmatpush1.bf16.msra.mxu0 0
        %2671 = vmatprep.subr.bf16.mxu0 0
        %2672 = vmatpush1.bf16.msra.mxu0 0
        %2673 = vmatprep.subr.bf16.mxu0 0
        %2674 = vmatpush1.bf16.msra.mxu0 0
        %2675 = vmatprep.subr.bf16.mxu0 0
        %2676 = vmatpush1.bf16.msra.mxu0 0
        %2677 = vmatprep.subr.bf16.mxu0 0
        %2678 = vmatpush1.bf16.msra.mxu0 0
        %2679 = vmatprep.subr.bf16.mxu0 0
        %2680 = vmatpush1.bf16.msra.mxu0 0
        %2681 = vmatprep.subr.bf16.mxu0 0
        %2682 = vmatpush1.bf16.msra.mxu0 0
        %2683 = vmatprep.subr.bf16.mxu0 0
        %2684 = vmatpush1.bf16.msra.mxu0 %v2667
        %2685 = vmatprep.subr.bf16.mxu0 0
        %2686 = vmatpush2.bf16.msra.mxu0 0
        %2687 = vmatprep.subr.bf16.mxu0 0
        %2688 = vmatpush2.bf16.msra.mxu0 0
        %2689 = vmatprep.subr.bf16.mxu0 0
        %2690 = vmatpush2.bf16.msra.mxu0 0
        %2691 = vmatprep.subr.bf16.mxu0 0
        %2692 = vmatpush2.bf16.msra.mxu0 0
        %2693 = vmatprep.subr.bf16.mxu0 0
        %2694 = vmatpush2.bf16.msra.mxu0 0
        %2695 = vmatprep.subr.bf16.mxu0 0
        %2696 = vmatpush2.bf16.msra.mxu0 0
        %2697 = vmatprep.subr.bf16.mxu0 0
        %2698 = vmatpush2.bf16.msra.mxu0 0
        %2699 = vmatprep.subr.bf16.mxu0 0
        %2700 = vmatpush2.bf16.msra.mxu0 0
        %2701 = vmatprep.mubr.bf16.mxu0 0
        %2702 = vmatmul.mubr.bf16.gmra.mxu0 %v2655
        %v2703 = vpop.f32.mrf.mxu0
        %v2704 = vadd.f32 0.0, %v2703
        %v2705 = vpop.f32.mrf.mxu0
        %v2706 = vpop.f32.mrf.mxu0
        %v2707 = vadd.f32 0.0, %v2706
        %v2708 = vpop.f32.mrf.mxu0
        %2709 = vmatprep.mubr.bf16.mxu0 0
        %2710 = vmatmul.mubr.bf16.gmra.mxu0 %v2658
        %v2711 = vpop.f32.mrf.mxu0
        %v2712 = vadd.f32 0.0, %v2711
        %v2713 = vpop.f32.mrf.mxu0
        %v2714 = vpop.f32.mrf.mxu0
        %v2715 = vadd.f32 0.0, %v2714
        %v2716 = vpop.f32.mrf.mxu0
        %2717 = vmatprep.mubr.bf16.mxu0 0
        %2718 = vmatmul.mubr.bf16.gmra.mxu0 %v2661
        %v2719 = vpop.f32.mrf.mxu0
        %v2720 = vadd.f32 0.0, %v2719
        %v2721 = vpop.f32.mrf.mxu0
        %v2722 = vpop.f32.mrf.mxu0
        %v2723 = vadd.f32 0.0, %v2722
        %v2724 = vpop.f32.mrf.mxu0
        %2725 = vmatprep.mubr.bf16.mxu0 0
        %2726 = vmatmul.mubr.bf16.gmra.mxu0 %v2664
        %v2727 = vpop.f32.mrf.mxu0
        %v2728 = vadd.f32 0.0, %v2727
        %v2729 = vpop.f32.mrf.mxu0
        %v2730 = vpop.f32.mrf.mxu0
        %v2731 = vadd.f32 0.0, %v2730
        %v2732 = vpop.f32.mrf.mxu0
        %2733 = vdwg.mxu0
        %v2734 = vpack.c.bf16 %v2707, %v2704
        %v2735 = vpack.c.bf16 %v2715, %v2712
        %v2736 = vpack.c.bf16 %v2723, %v2720
        %v2737 = vpack.c.bf16 %v2731, %v2728
        %s2738 = scalar_lea.vmem [#allocation7], 2
        %v2739 = vld [vmem:[%s2738] sm:$0x3]
        %v2741 = vsel %vm1443, %v2739, 0
        %2743 = vmatprep.subr.bf16.mxu0 0
        %2744 = vmatpush1.bf16.msra.mxu0 0
        %2745 = vmatprep.subr.bf16.mxu0 0
        %2746 = vmatpush1.bf16.msra.mxu0 0
        %2747 = vmatprep.subr.bf16.mxu0 0
        %2748 = vmatpush1.bf16.msra.mxu0 0
        %2749 = vmatprep.subr.bf16.mxu0 0
        %2750 = vmatpush1.bf16.msra.mxu0 0
        %2751 = vmatprep.subr.bf16.mxu0 0
        %2752 = vmatpush1.bf16.msra.mxu0 0
        %2753 = vmatprep.subr.bf16.mxu0 0
        %2754 = vmatpush1.bf16.msra.mxu0 0
        %2755 = vmatprep.subr.bf16.mxu0 0
        %2756 = vmatpush1.bf16.msra.mxu0 0
        %2757 = vmatprep.subr.bf16.mxu0 0
        %2758 = vmatpush1.bf16.msra.mxu0 %v2741
        %2759 = vmatprep.subr.bf16.mxu0 0
        %2760 = vmatpush2.bf16.msra.mxu0 0
        %2761 = vmatprep.subr.bf16.mxu0 0
        %2762 = vmatpush2.bf16.msra.mxu0 0
        %2763 = vmatprep.subr.bf16.mxu0 0
        %2764 = vmatpush2.bf16.msra.mxu0 0
        %2765 = vmatprep.subr.bf16.mxu0 0
        %2766 = vmatpush2.bf16.msra.mxu0 0
        %2767 = vmatprep.subr.bf16.mxu0 0
        %2768 = vmatpush2.bf16.msra.mxu0 0
        %2769 = vmatprep.subr.bf16.mxu0 0
        %2770 = vmatpush2.bf16.msra.mxu0 0
        %2771 = vmatprep.subr.bf16.mxu0 0
        %2772 = vmatpush2.bf16.msra.mxu0 0
        %2773 = vmatprep.subr.bf16.mxu0 0
        %2774 = vmatpush2.bf16.msra.mxu0 0
        %2775 = vmatprep.mubr.bf16.mxu0 0
        %2776 = vmatmul.mubr.bf16.gmra.mxu0 %v2655
        %v2777 = vpop.f32.mrf.mxu0
        %v2778 = vadd.f32 0.0, %v2777
        %v2779 = vpop.f32.mrf.mxu0
        %v2780 = vpop.f32.mrf.mxu0
        %v2781 = vadd.f32 0.0, %v2780
        %v2782 = vpop.f32.mrf.mxu0
        %2783 = vmatprep.mubr.bf16.mxu0 0
        %2784 = vmatmul.mubr.bf16.gmra.mxu0 %v2658
        %v2785 = vpop.f32.mrf.mxu0
        %v2786 = vadd.f32 0.0, %v2785
        %v2787 = vpop.f32.mrf.mxu0
        %v2788 = vpop.f32.mrf.mxu0
        %v2789 = vadd.f32 0.0, %v2788
        %v2790 = vpop.f32.mrf.mxu0
        %2791 = vmatprep.mubr.bf16.mxu0 0
        %2792 = vmatmul.mubr.bf16.gmra.mxu0 %v2661
        %v2793 = vpop.f32.mrf.mxu0
        %v2794 = vadd.f32 0.0, %v2793
        %v2795 = vpop.f32.mrf.mxu0
        %v2796 = vpop.f32.mrf.mxu0
        %v2797 = vadd.f32 0.0, %v2796
        %v2798 = vpop.f32.mrf.mxu0
        %2799 = vmatprep.mubr.bf16.mxu0 0
        %2800 = vmatmul.mubr.bf16.gmra.mxu0 %v2664
        %v2801 = vpop.f32.mrf.mxu0
        %v2802 = vadd.f32 0.0, %v2801
        %v2803 = vpop.f32.mrf.mxu0
        %v2804 = vpop.f32.mrf.mxu0
        %v2805 = vadd.f32 0.0, %v2804
        %v2806 = vpop.f32.mrf.mxu0
        %2807 = vdwg.mxu0
        %v2808 = vpack.c.bf16 %v2781, %v2778
        %v2809 = vpack.c.bf16 %v2789, %v2786
        %v2810 = vpack.c.bf16 %v2797, %v2794
        %v2811 = vpack.c.bf16 %v2805, %v2802
        %s2812 = scalar_lea.vmem [#allocation7], 4
        %v2813 = vld [vmem:[%s2812] sm:$0x3]
        %v2815 = vsel %vm1443, %v2813, 0
        %2817 = vmatprep.subr.bf16.mxu0 0
        %2818 = vmatpush1.bf16.msra.mxu0 0
        %2819 = vmatprep.subr.bf16.mxu0 0
        %2820 = vmatpush1.bf16.msra.mxu0 0
        %2821 = vmatprep.subr.bf16.mxu0 0
        %2822 = vmatpush1.bf16.msra.mxu0 0
        %2823 = vmatprep.subr.bf16.mxu0 0
        %2824 = vmatpush1.bf16.msra.mxu0 0
        %2825 = vmatprep.subr.bf16.mxu0 0
        %2826 = vmatpush1.bf16.msra.mxu0 0
        %2827 = vmatprep.subr.bf16.mxu0 0
        %2828 = vmatpush1.bf16.msra.mxu0 0
        %2829 = vmatprep.subr.bf16.mxu0 0
        %2830 = vmatpush1.bf16.msra.mxu0 0
        %2831 = vmatprep.subr.bf16.mxu0 0
        %2832 = vmatpush1.bf16.msra.mxu0 %v2815
        %2833 = vmatprep.subr.bf16.mxu0 0
        %2834 = vmatpush2.bf16.msra.mxu0 0
        %2835 = vmatprep.subr.bf16.mxu0 0
        %2836 = vmatpush2.bf16.msra.mxu0 0
        %2837 = vmatprep.subr.bf16.mxu0 0
        %2838 = vmatpush2.bf16.msra.mxu0 0
        %2839 = vmatprep.subr.bf16.mxu0 0
        %2840 = vmatpush2.bf16.msra.mxu0 0
        %2841 = vmatprep.subr.bf16.mxu0 0
        %2842 = vmatpush2.bf16.msra.mxu0 0
        %2843 = vmatprep.subr.bf16.mxu0 0
        %2844 = vmatpush2.bf16.msra.mxu0 0
        %2845 = vmatprep.subr.bf16.mxu0 0
        %2846 = vmatpush2.bf16.msra.mxu0 0
        %2847 = vmatprep.subr.bf16.mxu0 0
        %2848 = vmatpush2.bf16.msra.mxu0 0
        %2849 = vmatprep.mubr.bf16.mxu0 0
        %2850 = vmatmul.mubr.bf16.gmra.mxu0 %v2655
        %v2851 = vpop.f32.mrf.mxu0
        %v2852 = vadd.f32 0.0, %v2851
        %v2853 = vpop.f32.mrf.mxu0
        %v2854 = vpop.f32.mrf.mxu0
        %v2855 = vadd.f32 0.0, %v2854
        %v2856 = vpop.f32.mrf.mxu0
        %2857 = vmatprep.mubr.bf16.mxu0 0
        %2858 = vmatmul.mubr.bf16.gmra.mxu0 %v2658
        %v2859 = vpop.f32.mrf.mxu0
        %v2860 = vadd.f32 0.0, %v2859
        %v2861 = vpop.f32.mrf.mxu0
        %v2862 = vpop.f32.mrf.mxu0
        %v2863 = vadd.f32 0.0, %v2862
        %v2864 = vpop.f32.mrf.mxu0
        %2865 = vmatprep.mubr.bf16.mxu0 0
        %2866 = vmatmul.mubr.bf16.gmra.mxu0 %v2661
        %v2867 = vpop.f32.mrf.mxu0
        %v2868 = vadd.f32 0.0, %v2867
        %v2869 = vpop.f32.mrf.mxu0
        %v2870 = vpop.f32.mrf.mxu0
        %v2871 = vadd.f32 0.0, %v2870
        %v2872 = vpop.f32.mrf.mxu0
        %2873 = vmatprep.mubr.bf16.mxu0 0
        %2874 = vmatmul.mubr.bf16.gmra.mxu0 %v2664
        %v2875 = vpop.f32.mrf.mxu0
        %v2876 = vadd.f32 0.0, %v2875
        %v2877 = vpop.f32.mrf.mxu0
        %v2878 = vpop.f32.mrf.mxu0
        %v2879 = vadd.f32 0.0, %v2878
        %v2880 = vpop.f32.mrf.mxu0
        %2881 = vdwg.mxu0
        %v2882 = vpack.c.bf16 %v2855, %v2852
        %v2883 = vpack.c.bf16 %v2863, %v2860
        %v2884 = vpack.c.bf16 %v2871, %v2868
        %v2885 = vpack.c.bf16 %v2879, %v2876
        %s2886 = scalar_lea.vmem [#allocation7], 6
        %v2887 = vld [vmem:[%s2886] sm:$0x3]
        %v2889 = vsel %vm1443, %v2887, 0
        %2891 = vmatprep.subr.bf16.mxu0 0
        %2892 = vmatpush1.bf16.msra.mxu0 0
        %2893 = vmatprep.subr.bf16.mxu0 0
        %2894 = vmatpush1.bf16.msra.mxu0 0
        %2895 = vmatprep.subr.bf16.mxu0 0
        %2896 = vmatpush1.bf16.msra.mxu0 0
        %2897 = vmatprep.subr.bf16.mxu0 0
        %2898 = vmatpush1.bf16.msra.mxu0 0
        %2899 = vmatprep.subr.bf16.mxu0 0
        %2900 = vmatpush1.bf16.msra.mxu0 0
        %2901 = vmatprep.subr.bf16.mxu0 0
        %2902 = vmatpush1.bf16.msra.mxu0 0
        %2903 = vmatprep.subr.bf16.mxu0 0
        %2904 = vmatpush1.bf16.msra.mxu0 0
        %2905 = vmatprep.subr.bf16.mxu0 0
        %2906 = vmatpush1.bf16.msra.mxu0 %v2889
        %2907 = vmatprep.subr.bf16.mxu0 0
        %2908 = vmatpush2.bf16.msra.mxu0 0
        %2909 = vmatprep.subr.bf16.mxu0 0
        %2910 = vmatpush2.bf16.msra.mxu0 0
        %2911 = vmatprep.subr.bf16.mxu0 0
        %2912 = vmatpush2.bf16.msra.mxu0 0
        %2913 = vmatprep.subr.bf16.mxu0 0
        %2914 = vmatpush2.bf16.msra.mxu0 0
        %2915 = vmatprep.subr.bf16.mxu0 0
        %2916 = vmatpush2.bf16.msra.mxu0 0
        %2917 = vmatprep.subr.bf16.mxu0 0
        %2918 = vmatpush2.bf16.msra.mxu0 0
        %2919 = vmatprep.subr.bf16.mxu0 0
        %2920 = vmatpush2.bf16.msra.mxu0 0
        %2921 = vmatprep.subr.bf16.mxu0 0
        %2922 = vmatpush2.bf16.msra.mxu0 0
        %2923 = vmatprep.mubr.bf16.mxu0 0
        %2924 = vmatmul.mubr.bf16.gmra.mxu0 %v2655
        %v2925 = vpop.f32.mrf.mxu0
        %v2926 = vadd.f32 0.0, %v2925
        %v2927 = vpop.f32.mrf.mxu0
        %v2928 = vpop.f32.mrf.mxu0
        %v2929 = vadd.f32 0.0, %v2928
        %v2930 = vpop.f32.mrf.mxu0
        %2931 = vmatprep.mubr.bf16.mxu0 0
        %2932 = vmatmul.mubr.bf16.gmra.mxu0 %v2658
        %v2933 = vpop.f32.mrf.mxu0
        %v2934 = vadd.f32 0.0, %v2933
        %v2935 = vpop.f32.mrf.mxu0
        %v2936 = vpop.f32.mrf.mxu0
        %v2937 = vadd.f32 0.0, %v2936
        %v2938 = vpop.f32.mrf.mxu0
        %2939 = vmatprep.mubr.bf16.mxu0 0
        %2940 = vmatmul.mubr.bf16.gmra.mxu0 %v2661
        %v2941 = vpop.f32.mrf.mxu0
        %v2942 = vadd.f32 0.0, %v2941
        %v2943 = vpop.f32.mrf.mxu0
        %v2944 = vpop.f32.mrf.mxu0
        %v2945 = vadd.f32 0.0, %v2944
        %v2946 = vpop.f32.mrf.mxu0
        %2947 = vmatprep.mubr.bf16.mxu0 0
        %2948 = vmatmul.mubr.bf16.gmra.mxu0 %v2664
        %v2949 = vpop.f32.mrf.mxu0
        %v2950 = vadd.f32 0.0, %v2949
        %v2951 = vpop.f32.mrf.mxu0
        %v2952 = vpop.f32.mrf.mxu0
        %v2953 = vadd.f32 0.0, %v2952
        %v2954 = vpop.f32.mrf.mxu0
        %2955 = vdwg.mxu0
        %v2956 = vpack.c.bf16 %v2929, %v2926
        %v2957 = vpack.c.bf16 %v2937, %v2934
        %v2958 = vpack.c.bf16 %v2945, %v2942
        %v2959 = vpack.c.bf16 %v2953, %v2950
        %v2960 = vld [vmem:[#allocation8] sm:$0xff]
        %v2961 = vld [vmem:[#allocation8 + $0x8] sm:$0xff]
        %v2962 = vld [vmem:[#allocation8 + $0x10] sm:$0xff]
        %v2963 = vld [vmem:[#allocation8 + $0x18] sm:$0xff]
        %v2964 = vld [vmem:[#allocation8 + $0x20] sm:$0xff]
        %v2965 = vld [vmem:[#allocation8 + $0x28] sm:$0xff]
        %v2966 = vld [vmem:[#allocation8 + $0x30] sm:$0xff]
        %v2967 = vld [vmem:[#allocation8 + $0x38] sm:$0xff]
        %v2976 = vunpack.c.l.b16 %v2960
        %v2977 = vunpack.c.h.b16 %v2960
        %v2978 = vunpack.c.l.b16 %v2961
        %v2979 = vunpack.c.h.b16 %v2961
        %v2980 = vunpack.c.l.b16 %v2962
        %v2981 = vunpack.c.h.b16 %v2962
        %v2982 = vunpack.c.l.b16 %v2963
        %v2983 = vunpack.c.h.b16 %v2963
        %v2984 = vunpack.c.l.b16 %v2964
        %v2985 = vunpack.c.h.b16 %v2964
        %v2986 = vunpack.c.l.b16 %v2965
        %v2987 = vunpack.c.h.b16 %v2965
        %v2988 = vunpack.c.l.b16 %v2966
        %v2989 = vunpack.c.h.b16 %v2966
        %v2990 = vunpack.c.l.b16 %v2967
        %v2991 = vunpack.c.h.b16 %v2967
        %v2992 = vpack.c.b16 %v2978, %v2976
        %v2993 = vpack.c.b16 %v2979, %v2977
        %v2994 = vpack.c.b16 %v2982, %v2980
        %v2995 = vpack.c.b16 %v2983, %v2981
        %v2996 = vpack.c.b16 %v2986, %v2984
        %v2997 = vpack.c.b16 %v2987, %v2985
        %v2998 = vpack.c.b16 %v2990, %v2988
        %v2999 = vpack.c.b16 %v2991, %v2989
        %3008 = vmatprep.subr.bf16.mxu0 0
        %3009 = vmatpush1.bf16.msra.mxu0 %v2811
        %3010 = vmatprep.subr.bf16.mxu0 0
        %3011 = vmatpush1.bf16.msra.mxu0 %v2810
        %3012 = vmatprep.subr.bf16.mxu0 0
        %3013 = vmatpush1.bf16.msra.mxu0 %v2809
        %3014 = vmatprep.subr.bf16.mxu0 0
        %3015 = vmatpush1.bf16.msra.mxu0 %v2808
        %3016 = vmatprep.subr.bf16.mxu0 0
        %3017 = vmatpush1.bf16.msra.mxu0 %v2737
        %3018 = vmatprep.subr.bf16.mxu0 0
        %3019 = vmatpush1.bf16.msra.mxu0 %v2736
        %3020 = vmatprep.subr.bf16.mxu0 0
        %3021 = vmatpush1.bf16.msra.mxu0 %v2735
        %3022 = vmatprep.subr.bf16.mxu0 0
        %3023 = vmatpush1.bf16.msra.mxu0 %v2734
        %3024 = vmatprep.subr.bf16.mxu0 0
        %3025 = vmatpush2.bf16.msra.mxu0 %v2959
        %3026 = vmatprep.subr.bf16.mxu0 0
        %3027 = vmatpush2.bf16.msra.mxu0 %v2958
        %3028 = vmatprep.subr.bf16.mxu0 0
        %3029 = vmatpush2.bf16.msra.mxu0 %v2957
        %3030 = vmatprep.subr.bf16.mxu0 0
        %3031 = vmatpush2.bf16.msra.mxu0 %v2956
        %3032 = vmatprep.subr.bf16.mxu0 0
        %3033 = vmatpush2.bf16.msra.mxu0 %v2885
        %3034 = vmatprep.subr.bf16.mxu0 0
        %3035 = vmatpush2.bf16.msra.mxu0 %v2884
        %3036 = vmatprep.subr.bf16.mxu0 0
        %3037 = vmatpush2.bf16.msra.mxu0 %v2883
        %3038 = vmatprep.subr.bf16.mxu0 0
        %3039 = vmatpush2.bf16.msra.mxu0 %v2882
        %3040 = vmatprep.mubr.bf16.mxu0 %v2993
        %3041 = vmatmul.mubr.bf16.gmra.mxu0 %v2992
        %v3042 = vpop.f32.mrf.mxu0
        %v3043 = vadd.f32 0.0, %v3042
        %v3044 = vpop.f32.mrf.mxu0
        %v3045 = vpop.f32.mrf.mxu0
        %v3046 = vadd.f32 0.0, %v3045
        %v3047 = vpop.f32.mrf.mxu0
        %3048 = vmatprep.mubr.bf16.mxu0 %v2995
        %3049 = vmatmul.mubr.bf16.gmra.mxu0 %v2994
        %v3050 = vpop.f32.mrf.mxu0
        %v3051 = vadd.f32 0.0, %v3050
        %v3052 = vpop.f32.mrf.mxu0
        %v3053 = vpop.f32.mrf.mxu0
        %v3054 = vadd.f32 0.0, %v3053
        %v3055 = vpop.f32.mrf.mxu0
        %3056 = vmatprep.mubr.bf16.mxu0 %v2997
        %3057 = vmatmul.mubr.bf16.gmra.mxu0 %v2996
        %v3058 = vpop.f32.mrf.mxu0
        %v3059 = vadd.f32 0.0, %v3058
        %v3060 = vpop.f32.mrf.mxu0
        %v3061 = vpop.f32.mrf.mxu0
        %v3062 = vadd.f32 0.0, %v3061
        %v3063 = vpop.f32.mrf.mxu0
        %3064 = vmatprep.mubr.bf16.mxu0 %v2999
        %3065 = vmatmul.mubr.bf16.gmra.mxu0 %v2998
        %v3066 = vpop.f32.mrf.mxu0
        %v3067 = vadd.f32 0.0, %v3066
        %v3068 = vpop.f32.mrf.mxu0
        %v3069 = vpop.f32.mrf.mxu0
        %v3070 = vadd.f32 0.0, %v3069
        %v3071 = vpop.f32.mrf.mxu0
        %3072 = vdwg.mxu0
        %vm3073 = vcmp.ge.f32.partialorder %v3043, 0.0
        %vm3074 = vcmp.ge.f32.partialorder %v3046, 0.0
        %vm3075 = vcmp.ge.f32.partialorder %v3051, 0.0
        %vm3076 = vcmp.ge.f32.partialorder %v3054, 0.0
        %vm3077 = vcmp.ge.f32.partialorder %v3059, 0.0
        %vm3078 = vcmp.ge.f32.partialorder %v3062, 0.0
        %vm3079 = vcmp.ge.f32.partialorder %v3067, 0.0
        %vm3080 = vcmp.ge.f32.partialorder %v3070, 0.0
        %v3081 = vmul.f32 %v3043, 0.01
        %v3082 = vmul.f32 %v3046, 0.01
        %v3083 = vmul.f32 %v3051, 0.01
        %v3084 = vmul.f32 %v3054, 0.01
        %v3085 = vmul.f32 %v3059, 0.01
        %v3086 = vmul.f32 %v3062, 0.01
        %v3087 = vmul.f32 %v3067, 0.01
        %v3088 = vmul.f32 %v3070, 0.01
        %v3089 = vsel %vm3073, %v3043, %v3081
        %v3090 = vsel %vm3074, %v3046, %v3082
        %v3091 = vsel %vm3075, %v3051, %v3083
        %v3092 = vsel %vm3076, %v3054, %v3084
        %v3093 = vsel %vm3077, %v3059, %v3085
        %v3094 = vsel %vm3078, %v3062, %v3086
        %v3095 = vsel %vm3079, %v3067, %v3087
        %v3096 = vsel %vm3080, %v3070, %v3088
        %v3097 = vpack.c.bf16 %v3090, %v3089
        %v3098 = vpack.c.bf16 %v3092, %v3091
        %v3099 = vpack.c.bf16 %v3094, %v3093
        %v3100 = vpack.c.bf16 %v3096, %v3095
        %v3101 = vld [vmem:[%s15] sm:$0xf]
        %v3103 = vsel %vm1046, %v3097, 0
        %v3106 = vsel %vm1046, %v3098, 0
        %v3109 = vsel %vm1046, %v3099, 0
        %v3112 = vsel %vm1046, %v3100, 0
        %v3115 = vsel %vm1059, %v3101, 0
        %3117 = vmatprep.subr.bf16.mxu0 0
        %3118 = vmatpush1.bf16.msra.mxu0 0
        %3119 = vmatprep.subr.bf16.mxu0 0
        %3120 = vmatpush1.bf16.msra.mxu0 0
        %3121 = vmatprep.subr.bf16.mxu0 0
        %3122 = vmatpush1.bf16.msra.mxu0 0
        %3123 = vmatprep.subr.bf16.mxu0 0
        %3124 = vmatpush1.bf16.msra.mxu0 0
        %3125 = vmatprep.subr.bf16.mxu0 0
        %3126 = vmatpush1.bf16.msra.mxu0 0
        %3127 = vmatprep.subr.bf16.mxu0 0
        %3128 = vmatpush1.bf16.msra.mxu0 0
        %3129 = vmatprep.subr.bf16.mxu0 0
        %3130 = vmatpush1.bf16.msra.mxu0 0
        %3131 = vmatprep.subr.bf16.mxu0 0
        %3132 = vmatpush1.bf16.msra.mxu0 %v3115
        %3133 = vmatprep.subr.bf16.mxu0 0
        %3134 = vmatpush2.bf16.msra.mxu0 0
        %3135 = vmatprep.subr.bf16.mxu0 0
        %3136 = vmatpush2.bf16.msra.mxu0 0
        %3137 = vmatprep.subr.bf16.mxu0 0
        %3138 = vmatpush2.bf16.msra.mxu0 0
        %3139 = vmatprep.subr.bf16.mxu0 0
        %3140 = vmatpush2.bf16.msra.mxu0 0
        %3141 = vmatprep.subr.bf16.mxu0 0
        %3142 = vmatpush2.bf16.msra.mxu0 0
        %3143 = vmatprep.subr.bf16.mxu0 0
        %3144 = vmatpush2.bf16.msra.mxu0 0
        %3145 = vmatprep.subr.bf16.mxu0 0
        %3146 = vmatpush2.bf16.msra.mxu0 0
        %3147 = vmatprep.subr.bf16.mxu0 0
        %3148 = vmatpush2.bf16.msra.mxu0 0
        %3149 = vmatprep.mubr.bf16.mxu0 0
        %3150 = vmatmul.mubr.bf16.gmra.mxu0 %v3103
        %v3151 = vpop.f32.mrf.mxu0
        %v3152 = vadd.f32 0.0, %v3151
        %v3153 = vpop.f32.mrf.mxu0
        %v3154 = vpop.f32.mrf.mxu0
        %v3155 = vadd.f32 0.0, %v3154
        %v3156 = vpop.f32.mrf.mxu0
        %3157 = vmatprep.mubr.bf16.mxu0 0
        %3158 = vmatmul.mubr.bf16.gmra.mxu0 %v3106
        %v3159 = vpop.f32.mrf.mxu0
        %v3160 = vadd.f32 0.0, %v3159
        %v3161 = vpop.f32.mrf.mxu0
        %v3162 = vpop.f32.mrf.mxu0
        %v3163 = vadd.f32 0.0, %v3162
        %v3164 = vpop.f32.mrf.mxu0
        %3165 = vmatprep.mubr.bf16.mxu0 0
        %3166 = vmatmul.mubr.bf16.gmra.mxu0 %v3109
        %v3167 = vpop.f32.mrf.mxu0
        %v3168 = vadd.f32 0.0, %v3167
        %v3169 = vpop.f32.mrf.mxu0
        %v3170 = vpop.f32.mrf.mxu0
        %v3171 = vadd.f32 0.0, %v3170
        %v3172 = vpop.f32.mrf.mxu0
        %3173 = vmatprep.mubr.bf16.mxu0 0
        %3174 = vmatmul.mubr.bf16.gmra.mxu0 %v3112
        %v3175 = vpop.f32.mrf.mxu0
        %v3176 = vadd.f32 0.0, %v3175
        %v3177 = vpop.f32.mrf.mxu0
        %v3178 = vpop.f32.mrf.mxu0
        %v3179 = vadd.f32 0.0, %v3178
        %v3180 = vpop.f32.mrf.mxu0
        %3181 = vdwg.mxu0
        %v3182 = vpack.c.bf16 %v3155, %v3152
        %v3183 = vpack.c.bf16 %v3163, %v3160
        %v3184 = vpack.c.bf16 %v3171, %v3168
        %v3185 = vpack.c.bf16 %v3179, %v3176
        %s3186 = scalar_lea.vmem %s15, 4
        %v3187 = vld [vmem:[%s3186] sm:$0xf]
        %v3189 = vsel %vm1059, %v3187, 0
        %3191 = vmatprep.subr.bf16.mxu0 0
        %3192 = vmatpush1.bf16.msra.mxu0 0
        %3193 = vmatprep.subr.bf16.mxu0 0
        %3194 = vmatpush1.bf16.msra.mxu0 0
        %3195 = vmatprep.subr.bf16.mxu0 0
        %3196 = vmatpush1.bf16.msra.mxu0 0
        %3197 = vmatprep.subr.bf16.mxu0 0
        %3198 = vmatpush1.bf16.msra.mxu0 0
        %3199 = vmatprep.subr.bf16.mxu0 0
        %3200 = vmatpush1.bf16.msra.mxu0 0
        %3201 = vmatprep.subr.bf16.mxu0 0
        %3202 = vmatpush1.bf16.msra.mxu0 0
        %3203 = vmatprep.subr.bf16.mxu0 0
        %3204 = vmatpush1.bf16.msra.mxu0 0
        %3205 = vmatprep.subr.bf16.mxu0 0
        %3206 = vmatpush1.bf16.msra.mxu0 %v3189
        %3207 = vmatprep.subr.bf16.mxu0 0
        %3208 = vmatpush2.bf16.msra.mxu0 0
        %3209 = vmatprep.subr.bf16.mxu0 0
        %3210 = vmatpush2.bf16.msra.mxu0 0
        %3211 = vmatprep.subr.bf16.mxu0 0
        %3212 = vmatpush2.bf16.msra.mxu0 0
        %3213 = vmatprep.subr.bf16.mxu0 0
        %3214 = vmatpush2.bf16.msra.mxu0 0
        %3215 = vmatprep.subr.bf16.mxu0 0
        %3216 = vmatpush2.bf16.msra.mxu0 0
        %3217 = vmatprep.subr.bf16.mxu0 0
        %3218 = vmatpush2.bf16.msra.mxu0 0
        %3219 = vmatprep.subr.bf16.mxu0 0
        %3220 = vmatpush2.bf16.msra.mxu0 0
        %3221 = vmatprep.subr.bf16.mxu0 0
        %3222 = vmatpush2.bf16.msra.mxu0 0
        %3223 = vmatprep.mubr.bf16.mxu0 0
        %3224 = vmatmul.mubr.bf16.gmra.mxu0 %v3103
        %v3225 = vpop.f32.mrf.mxu0
        %v3226 = vadd.f32 0.0, %v3225
        %v3227 = vpop.f32.mrf.mxu0
        %v3228 = vpop.f32.mrf.mxu0
        %v3229 = vadd.f32 0.0, %v3228
        %v3230 = vpop.f32.mrf.mxu0
        %3231 = vmatprep.mubr.bf16.mxu0 0
        %3232 = vmatmul.mubr.bf16.gmra.mxu0 %v3106
        %v3233 = vpop.f32.mrf.mxu0
        %v3234 = vadd.f32 0.0, %v3233
        %v3235 = vpop.f32.mrf.mxu0
        %v3236 = vpop.f32.mrf.mxu0
        %v3237 = vadd.f32 0.0, %v3236
        %v3238 = vpop.f32.mrf.mxu0
        %3239 = vmatprep.mubr.bf16.mxu0 0
        %3240 = vmatmul.mubr.bf16.gmra.mxu0 %v3109
        %v3241 = vpop.f32.mrf.mxu0
        %v3242 = vadd.f32 0.0, %v3241
        %v3243 = vpop.f32.mrf.mxu0
        %v3244 = vpop.f32.mrf.mxu0
        %v3245 = vadd.f32 0.0, %v3244
        %v3246 = vpop.f32.mrf.mxu0
        %3247 = vmatprep.mubr.bf16.mxu0 0
        %3248 = vmatmul.mubr.bf16.gmra.mxu0 %v3112
        %v3249 = vpop.f32.mrf.mxu0
        %v3250 = vadd.f32 0.0, %v3249
        %v3251 = vpop.f32.mrf.mxu0
        %v3252 = vpop.f32.mrf.mxu0
        %v3253 = vadd.f32 0.0, %v3252
        %v3254 = vpop.f32.mrf.mxu0
        %3255 = vdwg.mxu0
        %v3256 = vpack.c.bf16 %v3229, %v3226
        %v3257 = vpack.c.bf16 %v3237, %v3234
        %v3258 = vpack.c.bf16 %v3245, %v3242
        %v3259 = vpack.c.bf16 %v3253, %v3250
        %s3260 = scalar_lea.vmem %s15, 8
        %v3261 = vld [vmem:[%s3260] sm:$0xf]
        %v3263 = vsel %vm1059, %v3261, 0
        %3265 = vmatprep.subr.bf16.mxu0 0
        %3266 = vmatpush1.bf16.msra.mxu0 0
        %3267 = vmatprep.subr.bf16.mxu0 0
        %3268 = vmatpush1.bf16.msra.mxu0 0
        %3269 = vmatprep.subr.bf16.mxu0 0
        %3270 = vmatpush1.bf16.msra.mxu0 0
        %3271 = vmatprep.subr.bf16.mxu0 0
        %3272 = vmatpush1.bf16.msra.mxu0 0
        %3273 = vmatprep.subr.bf16.mxu0 0
        %3274 = vmatpush1.bf16.msra.mxu0 0
        %3275 = vmatprep.subr.bf16.mxu0 0
        %3276 = vmatpush1.bf16.msra.mxu0 0
        %3277 = vmatprep.subr.bf16.mxu0 0
        %3278 = vmatpush1.bf16.msra.mxu0 0
        %3279 = vmatprep.subr.bf16.mxu0 0
        %3280 = vmatpush1.bf16.msra.mxu0 %v3263
        %3281 = vmatprep.subr.bf16.mxu0 0
        %3282 = vmatpush2.bf16.msra.mxu0 0
        %3283 = vmatprep.subr.bf16.mxu0 0
        %3284 = vmatpush2.bf16.msra.mxu0 0
        %3285 = vmatprep.subr.bf16.mxu0 0
        %3286 = vmatpush2.bf16.msra.mxu0 0
        %3287 = vmatprep.subr.bf16.mxu0 0
        %3288 = vmatpush2.bf16.msra.mxu0 0
        %3289 = vmatprep.subr.bf16.mxu0 0
        %3290 = vmatpush2.bf16.msra.mxu0 0
        %3291 = vmatprep.subr.bf16.mxu0 0
        %3292 = vmatpush2.bf16.msra.mxu0 0
        %3293 = vmatprep.subr.bf16.mxu0 0
        %3294 = vmatpush2.bf16.msra.mxu0 0
        %3295 = vmatprep.subr.bf16.mxu0 0
        %3296 = vmatpush2.bf16.msra.mxu0 0
        %3297 = vmatprep.mubr.bf16.mxu0 0
        %3298 = vmatmul.mubr.bf16.gmra.mxu0 %v3103
        %v3299 = vpop.f32.mrf.mxu0
        %v3300 = vadd.f32 0.0, %v3299
        %v3301 = vpop.f32.mrf.mxu0
        %v3302 = vpop.f32.mrf.mxu0
        %v3303 = vadd.f32 0.0, %v3302
        %v3304 = vpop.f32.mrf.mxu0
        %3305 = vmatprep.mubr.bf16.mxu0 0
        %3306 = vmatmul.mubr.bf16.gmra.mxu0 %v3106
        %v3307 = vpop.f32.mrf.mxu0
        %v3308 = vadd.f32 0.0, %v3307
        %v3309 = vpop.f32.mrf.mxu0
        %v3310 = vpop.f32.mrf.mxu0
        %v3311 = vadd.f32 0.0, %v3310
        %v3312 = vpop.f32.mrf.mxu0
        %3313 = vmatprep.mubr.bf16.mxu0 0
        %3314 = vmatmul.mubr.bf16.gmra.mxu0 %v3109
        %v3315 = vpop.f32.mrf.mxu0
        %v3316 = vadd.f32 0.0, %v3315
        %v3317 = vpop.f32.mrf.mxu0
        %v3318 = vpop.f32.mrf.mxu0
        %v3319 = vadd.f32 0.0, %v3318
        %v3320 = vpop.f32.mrf.mxu0
        %3321 = vmatprep.mubr.bf16.mxu0 0
        %3322 = vmatmul.mubr.bf16.gmra.mxu0 %v3112
        %v3323 = vpop.f32.mrf.mxu0
        %v3324 = vadd.f32 0.0, %v3323
        %v3325 = vpop.f32.mrf.mxu0
        %v3326 = vpop.f32.mrf.mxu0
        %v3327 = vadd.f32 0.0, %v3326
        %v3328 = vpop.f32.mrf.mxu0
        %3329 = vdwg.mxu0
        %v3330 = vpack.c.bf16 %v3303, %v3300
        %v3331 = vpack.c.bf16 %v3311, %v3308
        %v3332 = vpack.c.bf16 %v3319, %v3316
        %v3333 = vpack.c.bf16 %v3327, %v3324
        %s3334 = scalar_lea.vmem %s15, 12
        %v3335 = vld [vmem:[%s3334] sm:$0xf]
        %v3337 = vsel %vm1059, %v3335, 0
        %3339 = vmatprep.subr.bf16.mxu0 0
        %3340 = vmatpush1.bf16.msra.mxu0 0
        %3341 = vmatprep.subr.bf16.mxu0 0
        %3342 = vmatpush1.bf16.msra.mxu0 0
        %3343 = vmatprep.subr.bf16.mxu0 0
        %3344 = vmatpush1.bf16.msra.mxu0 0
        %3345 = vmatprep.subr.bf16.mxu0 0
        %3346 = vmatpush1.bf16.msra.mxu0 0
        %3347 = vmatprep.subr.bf16.mxu0 0
        %3348 = vmatpush1.bf16.msra.mxu0 0
        %3349 = vmatprep.subr.bf16.mxu0 0
        %3350 = vmatpush1.bf16.msra.mxu0 0
        %3351 = vmatprep.subr.bf16.mxu0 0
        %3352 = vmatpush1.bf16.msra.mxu0 0
        %3353 = vmatprep.subr.bf16.mxu0 0
        %3354 = vmatpush1.bf16.msra.mxu0 %v3337
        %3355 = vmatprep.subr.bf16.mxu0 0
        %3356 = vmatpush2.bf16.msra.mxu0 0
        %3357 = vmatprep.subr.bf16.mxu0 0
        %3358 = vmatpush2.bf16.msra.mxu0 0
        %3359 = vmatprep.subr.bf16.mxu0 0
        %3360 = vmatpush2.bf16.msra.mxu0 0
        %3361 = vmatprep.subr.bf16.mxu0 0
        %3362 = vmatpush2.bf16.msra.mxu0 0
        %3363 = vmatprep.subr.bf16.mxu0 0
        %3364 = vmatpush2.bf16.msra.mxu0 0
        %3365 = vmatprep.subr.bf16.mxu0 0
        %3366 = vmatpush2.bf16.msra.mxu0 0
        %3367 = vmatprep.subr.bf16.mxu0 0
        %3368 = vmatpush2.bf16.msra.mxu0 0
        %3369 = vmatprep.subr.bf16.mxu0 0
        %3370 = vmatpush2.bf16.msra.mxu0 0
        %3371 = vmatprep.mubr.bf16.mxu0 0
        %3372 = vmatmul.mubr.bf16.gmra.mxu0 %v3103
        %v3373 = vpop.f32.mrf.mxu0
        %v3374 = vadd.f32 0.0, %v3373
        %v3375 = vpop.f32.mrf.mxu0
        %v3376 = vpop.f32.mrf.mxu0
        %v3377 = vadd.f32 0.0, %v3376
        %v3378 = vpop.f32.mrf.mxu0
        %3379 = vmatprep.mubr.bf16.mxu0 0
        %3380 = vmatmul.mubr.bf16.gmra.mxu0 %v3106
        %v3381 = vpop.f32.mrf.mxu0
        %v3382 = vadd.f32 0.0, %v3381
        %v3383 = vpop.f32.mrf.mxu0
        %v3384 = vpop.f32.mrf.mxu0
        %v3385 = vadd.f32 0.0, %v3384
        %v3386 = vpop.f32.mrf.mxu0
        %3387 = vmatprep.mubr.bf16.mxu0 0
        %3388 = vmatmul.mubr.bf16.gmra.mxu0 %v3109
        %v3389 = vpop.f32.mrf.mxu0
        %v3390 = vadd.f32 0.0, %v3389
        %v3391 = vpop.f32.mrf.mxu0
        %v3392 = vpop.f32.mrf.mxu0
        %v3393 = vadd.f32 0.0, %v3392
        %v3394 = vpop.f32.mrf.mxu0
        %3395 = vmatprep.mubr.bf16.mxu0 0
        %3396 = vmatmul.mubr.bf16.gmra.mxu0 %v3112
        %v3397 = vpop.f32.mrf.mxu0
        %v3398 = vadd.f32 0.0, %v3397
        %v3399 = vpop.f32.mrf.mxu0
        %v3400 = vpop.f32.mrf.mxu0
        %v3401 = vadd.f32 0.0, %v3400
        %v3402 = vpop.f32.mrf.mxu0
        %3403 = vdwg.mxu0
        %v3404 = vpack.c.bf16 %v3377, %v3374
        %v3405 = vpack.c.bf16 %v3385, %v3382
        %v3406 = vpack.c.bf16 %v3393, %v3390
        %v3407 = vpack.c.bf16 %v3401, %v3398
        %v3408 = vld [vmem:[#allocation10] sm:$0xff]
        %v3409 = vld [vmem:[#allocation10 + $0x8] sm:$0xff]
        %v3410 = vld [vmem:[#allocation10 + $0x10] sm:$0xff]
        %v3411 = vld [vmem:[#allocation10 + $0x18] sm:$0xff]
        %v3412 = vld [vmem:[#allocation10 + $0x20] sm:$0xff]
        %v3413 = vld [vmem:[#allocation10 + $0x28] sm:$0xff]
        %v3414 = vld [vmem:[#allocation10 + $0x30] sm:$0xff]
        %v3415 = vld [vmem:[#allocation10 + $0x38] sm:$0xff]
        %v3424 = vunpack.c.l.b16 %v3408
        %v3425 = vunpack.c.h.b16 %v3408
        %v3426 = vunpack.c.l.b16 %v3409
        %v3427 = vunpack.c.h.b16 %v3409
        %v3428 = vunpack.c.l.b16 %v3410
        %v3429 = vunpack.c.h.b16 %v3410
        %v3430 = vunpack.c.l.b16 %v3411
        %v3431 = vunpack.c.h.b16 %v3411
        %v3432 = vunpack.c.l.b16 %v3412
        %v3433 = vunpack.c.h.b16 %v3412
        %v3434 = vunpack.c.l.b16 %v3413
        %v3435 = vunpack.c.h.b16 %v3413
        %v3436 = vunpack.c.l.b16 %v3414
        %v3437 = vunpack.c.h.b16 %v3414
        %v3438 = vunpack.c.l.b16 %v3415
        %v3439 = vunpack.c.h.b16 %v3415
        %v3440 = vpack.c.b16 %v3426, %v3424
        %v3441 = vpack.c.b16 %v3427, %v3425
        %v3442 = vpack.c.b16 %v3430, %v3428
        %v3443 = vpack.c.b16 %v3431, %v3429
        %v3444 = vpack.c.b16 %v3434, %v3432
        %v3445 = vpack.c.b16 %v3435, %v3433
        %v3446 = vpack.c.b16 %v3438, %v3436
        %v3447 = vpack.c.b16 %v3439, %v3437
        %3456 = vmatprep.subr.bf16.mxu0 0
        %3457 = vmatpush1.bf16.msra.mxu0 %v3259
        %3458 = vmatprep.subr.bf16.mxu0 0
        %3459 = vmatpush1.bf16.msra.mxu0 %v3258
        %3460 = vmatprep.subr.bf16.mxu0 0
        %3461 = vmatpush1.bf16.msra.mxu0 %v3257
        %3462 = vmatprep.subr.bf16.mxu0 0
        %3463 = vmatpush1.bf16.msra.mxu0 %v3256
        %3464 = vmatprep.subr.bf16.mxu0 0
        %3465 = vmatpush1.bf16.msra.mxu0 %v3185
        %3466 = vmatprep.subr.bf16.mxu0 0
        %3467 = vmatpush1.bf16.msra.mxu0 %v3184
        %3468 = vmatprep.subr.bf16.mxu0 0
        %3469 = vmatpush1.bf16.msra.mxu0 %v3183
        %3470 = vmatprep.subr.bf16.mxu0 0
        %3471 = vmatpush1.bf16.msra.mxu0 %v3182
        %3472 = vmatprep.subr.bf16.mxu0 0
        %3473 = vmatpush2.bf16.msra.mxu0 %v3407
        %3474 = vmatprep.subr.bf16.mxu0 0
        %3475 = vmatpush2.bf16.msra.mxu0 %v3406
        %3476 = vmatprep.subr.bf16.mxu0 0
        %3477 = vmatpush2.bf16.msra.mxu0 %v3405
        %3478 = vmatprep.subr.bf16.mxu0 0
        %3479 = vmatpush2.bf16.msra.mxu0 %v3404
        %3480 = vmatprep.subr.bf16.mxu0 0
        %3481 = vmatpush2.bf16.msra.mxu0 %v3333
        %3482 = vmatprep.subr.bf16.mxu0 0
        %3483 = vmatpush2.bf16.msra.mxu0 %v3332
        %3484 = vmatprep.subr.bf16.mxu0 0
        %3485 = vmatpush2.bf16.msra.mxu0 %v3331
        %3486 = vmatprep.subr.bf16.mxu0 0
        %3487 = vmatpush2.bf16.msra.mxu0 %v3330
        %3488 = vmatprep.mubr.bf16.mxu0 %v3441
        %3489 = vmatmul.mubr.bf16.gmra.mxu0 %v3440
        %v3490 = vpop.f32.mrf.mxu0
        %v3491 = vadd.f32 0.0, %v3490
        %v3492 = vpop.f32.mrf.mxu0
        %v3493 = vpop.f32.mrf.mxu0
        %v3494 = vadd.f32 0.0, %v3493
        %v3495 = vpop.f32.mrf.mxu0
        %3496 = vmatprep.mubr.bf16.mxu0 %v3443
        %3497 = vmatmul.mubr.bf16.gmra.mxu0 %v3442
        %v3498 = vpop.f32.mrf.mxu0
        %v3499 = vadd.f32 0.0, %v3498
        %v3500 = vpop.f32.mrf.mxu0
        %v3501 = vpop.f32.mrf.mxu0
        %v3502 = vadd.f32 0.0, %v3501
        %v3503 = vpop.f32.mrf.mxu0
        %3504 = vmatprep.mubr.bf16.mxu0 %v3445
        %3505 = vmatmul.mubr.bf16.gmra.mxu0 %v3444
        %v3506 = vpop.f32.mrf.mxu0
        %v3507 = vadd.f32 0.0, %v3506
        %v3508 = vpop.f32.mrf.mxu0
        %v3509 = vpop.f32.mrf.mxu0
        %v3510 = vadd.f32 0.0, %v3509
        %v3511 = vpop.f32.mrf.mxu0
        %3512 = vmatprep.mubr.bf16.mxu0 %v3447
        %3513 = vmatmul.mubr.bf16.gmra.mxu0 %v3446
        %v3514 = vpop.f32.mrf.mxu0
        %v3515 = vadd.f32 0.0, %v3514
        %v3516 = vpop.f32.mrf.mxu0
        %v3517 = vpop.f32.mrf.mxu0
        %v3518 = vadd.f32 0.0, %v3517
        %v3519 = vpop.f32.mrf.mxu0
        %3520 = vdwg.mxu0
        %3521 = vst.msk [vmem:[%s614] sm:$0xff] %vm657, %v3491
        %3522 = vst.msk [vmem:[%s614 + $0x8] sm:$0xff] %vm657, %v3494
        %3523 = vst.msk [vmem:[%s614 + $0x10] sm:$0xff] %vm657, %v3499
        %3524 = vst.msk [vmem:[%s614 + $0x18] sm:$0xff] %vm657, %v3502
        %3525 = vst.msk [vmem:[%s614 + $0x20] sm:$0xff] %vm657, %v3507
        %3526 = vst.msk [vmem:[%s614 + $0x28] sm:$0xff] %vm657, %v3510
        %3527 = vst.msk [vmem:[%s614 + $0x30] sm:$0xff] %vm657, %v3515
        %3528 = vst.msk [vmem:[%s614 + $0x38] sm:$0xff] %vm657, %v3518
        %s3529 = sand.u32 %s404, 1
        %s3530 = scalar_lea.sflag [#allocation4], %s3529
        %s3531 = sand.u32 %s404, 1
        %s3532 = smul.addr %s3531, 64
        %s3533 = scalar_lea.vmem [#allocation11], %s3532
        // Predicated region
        $region109: #{fwd.1} parent=87 // pred_check
          %p3534 = pneg %p414
        $region110: #{fwd.1} parent=87 // pred_check_branch
          %3536 = sbr.rel (%p3534) target = $region112
        $region111: #{fwd.1} parent=87 // pred_region
          %s3538 = ssub.s32 1024, 1024
          %3539 = vsyncadd %s3530, %s3538
          %s3540 = smul.addr %s34, 8
          %s3541 = smul.addr %s3540, 128
          %s3542 = scalar_lea.hbm %s17, %s3541
          %s3543 = sshll.u32 %s3533, 4
          %s3544 = int_to_ptr.vmem [resolvable:$true] %s3543
          %3549 = dma.vmem_to_hbm [thread:$0]  %s3544, 1024, %s3542, %s3530, 128, 128, 8
        $region112: #{fwd.1} parent=87 // pred_fallthru
          _
      $region88: #{fwd.1} parent=5 // pred_fallthru
        _
      %p3550 = scmp.le.s32.totalorder 2, %s29
      // Predicated region
      $region113: #{fwd.1} parent=5 // pred_check
        %p3551 = pneg %p3550
      $region114: #{fwd.1} parent=5 // pred_check_branch
        %3553 = sbr.rel (%p3551) target = $region116
      $region115: #{fwd.1} parent=5 // pred_region
        %s3554 = ssub.s32 %s29, 2
        // Predicated region
        $region117: #{fwd.1} parent=115 // pred_check
          %p3555 = pneg %p420
        $region118: #{fwd.1} parent=115 // pred_check_branch
          %3557 = sbr.rel (%p3555) target = $region120
        $region119: #{fwd.1} parent=115 // pred_region
          %s3558 = sand.u32 %s405, 1
          %s3559 = scalar_lea.sflag [#allocation4], %s3558
          %s3560 = sand.u32 %s405, 1
          %s3561 = smul.addr %s3560, 64
          %s3562 = scalar_lea.vmem [#allocation11], %s3561
          %3563 = dma.done %s3559, 1024
        $region120: #{fwd.1} parent=115 // pred_fallthru
          _
      $region116: #{fwd.1} parent=5 // pred_fallthru
        _
    $region6: #{fwd.1} parent=1 // loop_footer
      %s33 = sadd.s32 1, %s29
    $region7: #{fwd.1} parent=1 // loop_footer_branch
      %28 = sbr.rel target = $region3
    $region8: #{fwd.1} parent=1 // loop_exit
      _
    %3564 = vsyncpa [#allocation3], 1
    %s3565 = scalar_lea.sflag [#allocation3], 1
    %3566 = vsyncpa %s3565, 1
    %3567 = vsyncpa [#allocation6], 1
    %3568 = vsyncpa [#allocation9], 1
    %3569 = vsyncpa [#allocation4], 1
    %s3570 = scalar_lea.sflag [#allocation4], 1
    %3571 = vsyncpa %s3570, 1

</llo_original>
